<compile_context>
chip_gen: v6e
topology: v6e:2x2x1
jax: 0.10.0
libtpu: 0.0.40
codegen_flags: <defaults>
</compile_context>

<pallas_src>
import math
import jax
import jax.numpy as jnp
from jax import lax
from jax.experimental import pallas as pl
from jax.experimental.pallas import tpu as pltpu


# ----------------------------- Pallas kernel -----------------------------

def _layernorm(x, gamma, beta, eps=1e-5):
    mean = jnp.mean(x, axis=-1, keepdims=True)
    var = jnp.mean((x - mean) ** 2, axis=-1, keepdims=True)
    return (x - mean) * lax.rsqrt(var + eps) * gamma + beta


def _mha(q, k, v, mask_bias, *, num_heads, bb, seq):
    """Multi-head attention core.

    q, k, v: (bb*seq, E) float32 (already projected, biases added).
    mask_bias: (num_heads*seq, seq) float32 additive bias (0 / -1e9) or None.
    Returns (bb*seq, E) float32.
    """
    n, E = q.shape
    dh = E // num_heads
    scale = 1.0 / math.sqrt(dh)

    q3 = (q * scale).astype(jnp.bfloat16).reshape(bb, seq, E)   # scale folded into q
    k3 = k.astype(jnp.bfloat16).reshape(bb, seq, E)
    v3 = v.astype(jnp.bfloat16).reshape(bb, seq, E)

    # Per-head scores, batched over the batch dim, stacked along the query (sublane)
    # axis so a single softmax chain covers all heads.
    scores = []
    for h in range(num_heads):  # static unroll; each einsum is batched over bb
        qh = q3[:, :, h * dh:(h + 1) * dh]
        kh = k3[:, :, h * dh:(h + 1) * dh]
        scores.append(jnp.einsum('bqd,bkd->bqk', qh, kh,
                                 preferred_element_type=jnp.float32))
    s = jnp.concatenate(scores, axis=1)                         # (bb, H*seq, seq)
    if mask_bias is not None:
        s = s + mask_bias[None, :, :]

    s = s - jnp.max(s, axis=-1, keepdims=True)
    p = jnp.exp(s)
    p = p * pl.reciprocal(jnp.sum(p, axis=-1, keepdims=True), approx=True)

    outs = []
    for h in range(num_heads):
        ph = p[:, h * seq:(h + 1) * seq, :].astype(jnp.bfloat16)
        vh = v3[:, :, h * dh:(h + 1) * dh]
        outs.append(jnp.einsum('bqk,bkd->bqd', ph, vh,
                               preferred_element_type=jnp.float32))
    attn = jnp.concatenate(outs, axis=-1)                       # (bb, seq, E)
    return attn.reshape(bb * seq, E)


def _make_decoder_kernel(num_heads):
    """Fused kernel: causal self-attn block + cross-attn block for one batch tile."""

    def kernel(x_ref, enc_ref, mask_ref,
               # block 1 (masked self-attention)
               wqkv1_ref, bqkv1_ref, wo1_ref, bo1_ref, g11_ref, b11_ref,
               wf11_ref, bf11_ref, wf21_ref, bf21_ref, g12_ref, b12_ref,
               # block 2 (cross-attention)
               wq2_ref, bq2_ref, wkv2_ref, bkv2_ref, wo2_ref, bo2_ref,
               g21_ref, b21_ref, wf12_ref, bf12_ref, wf22_ref, bf22_ref,
               g22_ref, b22_ref,
               out_ref):
        bb, seq, E = x_ref.shape
        x2 = x_ref[...].reshape(bb * seq, E)       # (bb*seq, E) fp32 residual stream
        enc2 = enc_ref[...].reshape(bb * seq, E)

        # -------- block 1: masked (causal) self-attention --------
        qkv = (jnp.dot(x2.astype(jnp.bfloat16), wqkv1_ref[...],
                       preferred_element_type=jnp.float32) + bqkv1_ref[...])
        q, k, v = qkv[:, :E], qkv[:, E:2 * E], qkv[:, 2 * E:]
        attn = _mha(q, k, v, mask_ref[...], num_heads=num_heads, bb=bb, seq=seq)
        attn = (jnp.dot(attn.astype(jnp.bfloat16), wo1_ref[...],
                        preferred_element_type=jnp.float32) + bo1_ref[...])
        y = _layernorm(attn + x2, g11_ref[...], b11_ref[...])
        h1 = jnp.maximum(jnp.dot(y.astype(jnp.bfloat16), wf11_ref[...],
                                 preferred_element_type=jnp.float32) + bf11_ref[...], 0.0)
        ff = (jnp.dot(h1.astype(jnp.bfloat16), wf21_ref[...],
                      preferred_element_type=jnp.float32) + bf21_ref[...])
        y = _layernorm(ff + y, g12_ref[...], b12_ref[...])

        # -------- block 2: cross-attention (queries from y, keys/values from enc) --------
        q = (jnp.dot(y.astype(jnp.bfloat16), wq2_ref[...],
                     preferred_element_type=jnp.float32) + bq2_ref[...])
        kv = (jnp.dot(enc2.astype(jnp.bfloat16), wkv2_ref[...],
                      preferred_element_type=jnp.float32) + bkv2_ref[...])
        k, v = kv[:, :E], kv[:, E:]
        attn = _mha(q, k, v, None, num_heads=num_heads, bb=bb, seq=seq)
        attn = (jnp.dot(attn.astype(jnp.bfloat16), wo2_ref[...],
                        preferred_element_type=jnp.float32) + bo2_ref[...])
        y2 = _layernorm(attn + y, g21_ref[...], b21_ref[...])
        h1 = jnp.maximum(jnp.dot(y2.astype(jnp.bfloat16), wf12_ref[...],
                                 preferred_element_type=jnp.float32) + bf12_ref[...], 0.0)
        ff = (jnp.dot(h1.astype(jnp.bfloat16), wf22_ref[...],
                      preferred_element_type=jnp.float32) + bf22_ref[...])
        out = _layernorm(ff + y2, g22_ref[...], b22_ref[...])

        out_ref[...] = out.reshape(bb, seq, E)

    return kernel


# ----------------------------- plain-JAX glue -----------------------------

def sinusoidal_positional_encoding(seq_len, embed_size):
    pos = jnp.arange(seq_len, dtype=jnp.float32)[:, None]
    i = jnp.arange(0, embed_size, 2, dtype=jnp.float32)
    angles = pos / jnp.power(10000.0, i / embed_size)
    pe = jnp.zeros((seq_len, embed_size), jnp.float32)
    pe = pe.at[:, 0::2].set(jnp.sin(angles))
    pe = pe.at[:, 1::2].set(jnp.cos(angles))
    return pe[None]  # (1, S, E) -- broadcasts over batch


def init_block_params(key, embed_size, ff_size):
    ks = jax.random.split(key, 6)
    std = 0.02
    return {
        "wq": std * jax.random.normal(ks[0], (embed_size, embed_size), jnp.float32),
        "wk": std * jax.random.normal(ks[1], (embed_size, embed_size), jnp.float32),
        "wv": std * jax.random.normal(ks[2], (embed_size, embed_size), jnp.float32),
        "wo": std * jax.random.normal(ks[3], (embed_size, embed_size), jnp.float32),
        "bq": jnp.zeros((1, embed_size), jnp.float32),
        "bk": jnp.zeros((1, embed_size), jnp.float32),
        "bv": jnp.zeros((1, embed_size), jnp.float32),
        "bo": jnp.zeros((1, embed_size), jnp.float32),
        "g1": jnp.ones((1, embed_size), jnp.float32),
        "be1": jnp.zeros((1, embed_size), jnp.float32),
        "w1": std * jax.random.normal(ks[4], (embed_size, ff_size), jnp.float32),
        "bf1": jnp.zeros((1, ff_size), jnp.float32),
        "w2": std * jax.random.normal(ks[5], (ff_size, embed_size), jnp.float32),
        "bf2": jnp.zeros((1, embed_size), jnp.float32),
        "g2": jnp.ones((1, embed_size), jnp.float32),
        "be2": jnp.zeros((1, embed_size), jnp.float32),
    }


def init_decoder_params(key, ntokens, embed_size, attn_heads=4):
    del attn_heads  # head count is a runtime arg
    k_emb, k_b1, k_b2 = jax.random.split(key, 3)
    return {
        "emb": 0.02 * jax.random.normal(k_emb, (ntokens, embed_size), jnp.float32),
        "block_masked": init_block_params(k_b1, embed_size, 4 * embed_size),
        "block_cross": init_block_params(k_b2, embed_size, 4 * embed_size),
    }


def decoder_forward(tokens, enc_out, params, *, attn_heads=4):
    """tokens: (B, S) int32, enc_out: (B, S, E) float32 -> (B, S, E) float32."""
    B, S = tokens.shape
    E = params["emb"].shape[1]

    # embedding gather + positional encoding (glue; stays in plain JAX)
    embeds = jnp.take(params["emb"], tokens, axis=0)            # (B, S, E)
    inp = (embeds + sinusoidal_positional_encoding(S, E)).astype(jnp.float32)

    # precomputed additive causal-mask bias, pre-tiled over heads: (H*S, S)
    row = lax.broadcasted_iota(jnp.int32, (S, S), 0)
    col = lax.broadcasted_iota(jnp.int32, (S, S), 1)
    base = jnp.where(col <= row, 0.0, -1e9).astype(jnp.float32)
    mask_bias = jnp.tile(base, (attn_heads, 1))

    bf16 = jnp.bfloat16
    p1, p2 = params["block_masked"], params["block_cross"]

    # block 1: fused QKV weight; block 2: separate Q, fused KV (keys/values from encoder)
    weights = [
        jnp.concatenate([p1["wq"], p1["wk"], p1["wv"]], axis=1).astype(bf16),  # wqkv1
        jnp.concatenate([p1["bq"], p1["bk"], p1["bv"]], axis=1),               # bqkv1
        p1["wo"].astype(bf16), p1["bo"], p1["g1"], p1["be1"],
        p1["w1"].astype(bf16), p1["bf1"], p1["w2"].astype(bf16), p1["bf2"],
        p1["g2"], p1["be2"],
        p2["wq"].astype(bf16), p2["bq"],
        jnp.concatenate([p2["wk"], p2["wv"]], axis=1).astype(bf16),            # wkv2
        jnp.concatenate([p2["bk"], p2["bv"]], axis=1),                         # bkv2
        p2["wo"].astype(bf16), p2["bo"], p2["g1"], p2["be1"],
        p2["w1"].astype(bf16), p2["bf1"], p2["w2"].astype(bf16), p2["bf2"],
        p2["g2"], p2["be2"],
    ]

    bb = B  # whole (small) batch per grid step -> grid of a single step
    act_spec = pl.BlockSpec((bb, S, E), lambda b: (b, 0, 0))

    def full_spec(arr):
        nd = arr.ndim
        return pl.BlockSpec(arr.shape, lambda b, _nd=nd: (0,) * _nd)

    in_specs = [act_spec, act_spec, full_spec(mask_bias)] + [full_spec(w) for w in weights]

    kernel = _make_decoder_kernel(attn_heads)
    return pl.pallas_call(
        kernel,
        out_shape=jax.ShapeDtypeStruct((B, S, E), jnp.float32),
        grid_spec=pltpu.PrefetchScalarGridSpec(
            num_scalar_prefetch=0,
            grid=(B // bb,),
            in_specs=in_specs,
            out_specs=act_spec,
        ),
        compiler_params=pltpu.CompilerParams(dimension_semantics=("parallel",)),
    )(inp, enc_out, mask_bias, *weights)


# ----------------------------- main -----------------------------

if __name__ == "__main__":
    B, S, E, H = 2, 8, 32, 4
    NTOKENS = 50

    key = jax.random.PRNGKey(0)
    k_params, k_tok, k_enc = jax.random.split(key, 3)

    params = init_decoder_params(k_params, NTOKENS, E, attn_heads=H)
    tokens = jax.random.randint(k_tok, (B, S), 0, NTOKENS, dtype=jnp.int32)
    enc_out = jax.random.normal(k_enc, (B, S, E), jnp.float32)

    out = decoder_forward(tokens, enc_out, params, attn_heads=H)
    out = jax.block_until_ready(out)
    assert out.shape == (B, S, E) and out.dtype == jnp.float32
    assert bool(jnp.all(jnp.isfinite(out)))
    print("KERNEL_OK")
</pallas_src>

<mosaic_0001>
module attributes {stable_mosaic.version = 11 : i64} {
  func.func @kernel(%arg0: i32, %arg1: memref<2x8x32xf32, #tpu.memory_space<vmem>>, %arg2: memref<2x8x32xf32, #tpu.memory_space<vmem>>, %arg3: memref<32x8xf32, #tpu.memory_space<vmem>>, %arg4: memref<32x96xbf16, #tpu.memory_space<vmem>>, %arg5: memref<1x96xf32, #tpu.memory_space<vmem>>, %arg6: memref<32x32xbf16, #tpu.memory_space<vmem>>, %arg7: memref<1x32xf32, #tpu.memory_space<vmem>>, %arg8: memref<1x32xf32, #tpu.memory_space<vmem>>, %arg9: memref<1x32xf32, #tpu.memory_space<vmem>>, %arg10: memref<32x128xbf16, #tpu.memory_space<vmem>>, %arg11: memref<1x128xf32, #tpu.memory_space<vmem>>, %arg12: memref<128x32xbf16, #tpu.memory_space<vmem>>, %arg13: memref<1x32xf32, #tpu.memory_space<vmem>>, %arg14: memref<1x32xf32, #tpu.memory_space<vmem>>, %arg15: memref<1x32xf32, #tpu.memory_space<vmem>>, %arg16: memref<32x32xbf16, #tpu.memory_space<vmem>>, %arg17: memref<1x32xf32, #tpu.memory_space<vmem>>, %arg18: memref<32x64xbf16, #tpu.memory_space<vmem>>, %arg19: memref<1x64xf32, #tpu.memory_space<vmem>>, %arg20: memref<32x32xbf16, #tpu.memory_space<vmem>>, %arg21: memref<1x32xf32, #tpu.memory_space<vmem>>, %arg22: memref<1x32xf32, #tpu.memory_space<vmem>>, %arg23: memref<1x32xf32, #tpu.memory_space<vmem>>, %arg24: memref<32x128xbf16, #tpu.memory_space<vmem>>, %arg25: memref<1x128xf32, #tpu.memory_space<vmem>>, %arg26: memref<128x32xbf16, #tpu.memory_space<vmem>>, %arg27: memref<1x32xf32, #tpu.memory_space<vmem>>, %arg28: memref<1x32xf32, #tpu.memory_space<vmem>>, %arg29: memref<1x32xf32, #tpu.memory_space<vmem>>, %arg30: memref<2x8x32xf32, #tpu.memory_space<vmem>>) attributes {dimension_semantics = [#tpu.dimension_semantics<parallel>], iteration_bounds = array<i64: 1>, scalar_prefetch = 0 : i64, scratch_operands = 0 : i64, tpu.core_type = #tpu.core_type<tc>, window_params = [{transform_indices = @transform_0, window_bounds = array<i64: 2, 8, 32>}, {transform_indices = @transform_1, window_bounds = array<i64: 2, 8, 32>}, {pipeline_mode = #tpu.pipeline_mode<synchronous>, transform_indices = @transform_2, window_bounds = array<i64: 32, 8>}, {pipeline_mode = #tpu.pipeline_mode<synchronous>, transform_indices = @transform_3, window_bounds = array<i64: 32, 96>}, {pipeline_mode = #tpu.pipeline_mode<synchronous>, transform_indices = @transform_4, window_bounds = array<i64: 1, 96>}, {pipeline_mode = #tpu.pipeline_mode<synchronous>, transform_indices = @transform_5, window_bounds = array<i64: 32, 32>}, {pipeline_mode = #tpu.pipeline_mode<synchronous>, transform_indices = @transform_6, window_bounds = array<i64: 1, 32>}, {pipeline_mode = #tpu.pipeline_mode<synchronous>, transform_indices = @transform_7, window_bounds = array<i64: 1, 32>}, {pipeline_mode = #tpu.pipeline_mode<synchronous>, transform_indices = @transform_8, window_bounds = array<i64: 1, 32>}, {pipeline_mode = #tpu.pipeline_mode<synchronous>, transform_indices = @transform_9, window_bounds = array<i64: 32, 128>}, {pipeline_mode = #tpu.pipeline_mode<synchronous>, transform_indices = @transform_10, window_bounds = array<i64: 1, 128>}, {pipeline_mode = #tpu.pipeline_mode<synchronous>, transform_indices = @transform_11, window_bounds = array<i64: 128, 32>}, {pipeline_mode = #tpu.pipeline_mode<synchronous>, transform_indices = @transform_12, window_bounds = array<i64: 1, 32>}, {pipeline_mode = #tpu.pipeline_mode<synchronous>, transform_indices = @transform_13, window_bounds = array<i64: 1, 32>}, {pipeline_mode = #tpu.pipeline_mode<synchronous>, transform_indices = @transform_14, window_bounds = array<i64: 1, 32>}, {pipeline_mode = #tpu.pipeline_mode<synchronous>, transform_indices = @transform_15, window_bounds = array<i64: 32, 32>}, {pipeline_mode = #tpu.pipeline_mode<synchronous>, transform_indices = @transform_16, window_bounds = array<i64: 1, 32>}, {pipeline_mode = #tpu.pipeline_mode<synchronous>, transform_indices = @transform_17, window_bounds = array<i64: 32, 64>}, {pipeline_mode = #tpu.pipeline_mode<synchronous>, transform_indices = @transform_18, window_bounds = array<i64: 1, 64>}, {pipeline_mode = #tpu.pipeline_mode<synchronous>, transform_indices = @transform_19, window_bounds = array<i64: 32, 32>}, {pipeline_mode = #tpu.pipeline_mode<synchronous>, transform_indices = @transform_20, window_bounds = array<i64: 1, 32>}, {pipeline_mode = #tpu.pipeline_mode<synchronous>, transform_indices = @transform_21, window_bounds = array<i64: 1, 32>}, {pipeline_mode = #tpu.pipeline_mode<synchronous>, transform_indices = @transform_22, window_bounds = array<i64: 1, 32>}, {pipeline_mode = #tpu.pipeline_mode<synchronous>, transform_indices = @transform_23, window_bounds = array<i64: 32, 128>}, {pipeline_mode = #tpu.pipeline_mode<synchronous>, transform_indices = @transform_24, window_bounds = array<i64: 1, 128>}, {pipeline_mode = #tpu.pipeline_mode<synchronous>, transform_indices = @transform_25, window_bounds = array<i64: 128, 32>}, {pipeline_mode = #tpu.pipeline_mode<synchronous>, transform_indices = @transform_26, window_bounds = array<i64: 1, 32>}, {pipeline_mode = #tpu.pipeline_mode<synchronous>, transform_indices = @transform_27, window_bounds = array<i64: 1, 32>}, {pipeline_mode = #tpu.pipeline_mode<synchronous>, transform_indices = @transform_28, window_bounds = array<i64: 1, 32>}, {transform_indices = @transform_29, window_bounds = array<i64: 2, 8, 32>}]} {
    %c0 = arith.constant 0 : index
    %c0_0 = arith.constant 0 : index
    %c0_1 = arith.constant 0 : index
    %0 = vector.load %arg1[%c0, %c0_0, %c0_1] : memref<2x8x32xf32, #tpu.memory_space<vmem>>, vector<2x8x32xf32>
    %1 = vector.shape_cast %0 : vector<2x8x32xf32> to vector<16x32xf32>
    %c0_2 = arith.constant 0 : index
    %c0_3 = arith.constant 0 : index
    %c0_4 = arith.constant 0 : index
    %2 = vector.load %arg2[%c0_2, %c0_3, %c0_4] : memref<2x8x32xf32, #tpu.memory_space<vmem>>, vector<2x8x32xf32>
    %3 = vector.shape_cast %2 : vector<2x8x32xf32> to vector<16x32xf32>
    %4 = arith.truncf %1 : vector<16x32xf32> to vector<16x32xbf16>
    %c0_5 = arith.constant 0 : index
    %c0_6 = arith.constant 0 : index
    %5 = vector.load %arg4[%c0_5, %c0_6] : memref<32x96xbf16, #tpu.memory_space<vmem>>, vector<32x96xbf16>
    %cst = arith.constant dense<0.000000e+00> : vector<16x96xf32>
    %6 = tpu.matmul %4, %5, %cst {dimension_numbers = #tpu.dot_dimension_numbers<[1], [0], [0], [1], [0, 0, 1, 1], [], []>} : vector<16x32xbf16>, vector<32x96xbf16>, vector<16x96xf32> -> vector<16x96xf32>
    %c0_7 = arith.constant 0 : index
    %c0_8 = arith.constant 0 : index
    %7 = vector.load %arg5[%c0_7, %c0_8] : memref<1x96xf32, #tpu.memory_space<vmem>>, vector<1x96xf32>
    %8 = vector.broadcast %7 : vector<1x96xf32> to vector<16x96xf32>
    %9 = arith.addf %6, %8 : vector<16x96xf32>
    %10 = vector.extract_strided_slice %9 {offsets = [0, 0], sizes = [16, 32], strides = [1, 1]} : vector<16x96xf32> to vector<16x32xf32>
    %11 = vector.extract_strided_slice %9 {offsets = [0, 32], sizes = [16, 32], strides = [1, 1]} : vector<16x96xf32> to vector<16x32xf32>
    %12 = vector.extract_strided_slice %9 {offsets = [0, 64], sizes = [16, 32], strides = [1, 1]} : vector<16x96xf32> to vector<16x32xf32>
    %c0_9 = arith.constant 0 : index
    %c0_10 = arith.constant 0 : index
    %13 = vector.load %arg3[%c0_9, %c0_10] : memref<32x8xf32, #tpu.memory_space<vmem>>, vector<32x8xf32>
    %cst_11 = arith.constant 0.353553385 : f32
    %14 = vector.broadcast %cst_11 : f32 to vector<16x32xf32>
    %15 = arith.mulf %10, %14 : vector<16x32xf32>
    %16 = arith.truncf %15 : vector<16x32xf32> to vector<16x32xbf16>
    %17 = vector.shape_cast %16 : vector<16x32xbf16> to vector<2x8x32xbf16>
    %18 = arith.truncf %11 : vector<16x32xf32> to vector<16x32xbf16>
    %19 = vector.shape_cast %18 : vector<16x32xbf16> to vector<2x8x32xbf16>
    %20 = arith.truncf %12 : vector<16x32xf32> to vector<16x32xbf16>
    %21 = vector.shape_cast %20 : vector<16x32xbf16> to vector<2x8x32xbf16>
    %22 = vector.extract_strided_slice %17 {offsets = [0, 0, 0], sizes = [2, 8, 8], strides = [1, 1, 1]} : vector<2x8x32xbf16> to vector<2x8x8xbf16>
    %23 = vector.extract_strided_slice %19 {offsets = [0, 0, 0], sizes = [2, 8, 8], strides = [1, 1, 1]} : vector<2x8x32xbf16> to vector<2x8x8xbf16>
    "tpu.trace_start"() <{level = 10 : i32, message = "bqd,bkd->bqk"}> : () -> ()
    %cst_12 = arith.constant dense<0.000000e+00> : vector<2x8x8xf32>
    %24 = tpu.matmul %22, %23, %cst_12 {dimension_numbers = #tpu.dot_dimension_numbers<[2], [2], [1], [1], [0, 0, 0, 1, 1, 1], [0], [0]>} : vector<2x8x8xbf16>, vector<2x8x8xbf16>, vector<2x8x8xf32> -> vector<2x8x8xf32>
    "tpu.trace_stop"() : () -> ()
    %25 = vector.extract_strided_slice %17 {offsets = [0, 0, 8], sizes = [2, 8, 8], strides = [1, 1, 1]} : vector<2x8x32xbf16> to vector<2x8x8xbf16>
    %26 = vector.extract_strided_slice %19 {offsets = [0, 0, 8], sizes = [2, 8, 8], strides = [1, 1, 1]} : vector<2x8x32xbf16> to vector<2x8x8xbf16>
    "tpu.trace_start"() <{level = 10 : i32, message = "bqd,bkd->bqk"}> : () -> ()
    %cst_13 = arith.constant dense<0.000000e+00> : vector<2x8x8xf32>
    %27 = tpu.matmul %25, %26, %cst_13 {dimension_numbers = #tpu.dot_dimension_numbers<[2], [2], [1], [1], [0, 0, 0, 1, 1, 1], [0], [0]>} : vector<2x8x8xbf16>, vector<2x8x8xbf16>, vector<2x8x8xf32> -> vector<2x8x8xf32>
    "tpu.trace_stop"() : () -> ()
    %28 = vector.extract_strided_slice %17 {offsets = [0, 0, 16], sizes = [2, 8, 8], strides = [1, 1, 1]} : vector<2x8x32xbf16> to vector<2x8x8xbf16>
    %29 = vector.extract_strided_slice %19 {offsets = [0, 0, 16], sizes = [2, 8, 8], strides = [1, 1, 1]} : vector<2x8x32xbf16> to vector<2x8x8xbf16>
    "tpu.trace_start"() <{level = 10 : i32, message = "bqd,bkd->bqk"}> : () -> ()
    %cst_14 = arith.constant dense<0.000000e+00> : vector<2x8x8xf32>
    %30 = tpu.matmul %28, %29, %cst_14 {dimension_numbers = #tpu.dot_dimension_numbers<[2], [2], [1], [1], [0, 0, 0, 1, 1, 1], [0], [0]>} : vector<2x8x8xbf16>, vector<2x8x8xbf16>, vector<2x8x8xf32> -> vector<2x8x8xf32>
    "tpu.trace_stop"() : () -> ()
    %31 = vector.extract_strided_slice %17 {offsets = [0, 0, 24], sizes = [2, 8, 8], strides = [1, 1, 1]} : vector<2x8x32xbf16> to vector<2x8x8xbf16>
    %32 = vector.extract_strided_slice %19 {offsets = [0, 0, 24], sizes = [2, 8, 8], strides = [1, 1, 1]} : vector<2x8x32xbf16> to vector<2x8x8xbf16>
    "tpu.trace_start"() <{level = 10 : i32, message = "bqd,bkd->bqk"}> : () -> ()
    %cst_15 = arith.constant dense<0.000000e+00> : vector<2x8x8xf32>
    %33 = tpu.matmul %31, %32, %cst_15 {dimension_numbers = #tpu.dot_dimension_numbers<[2], [2], [1], [1], [0, 0, 0, 1, 1, 1], [0], [0]>} : vector<2x8x8xbf16>, vector<2x8x8xbf16>, vector<2x8x8xf32> -> vector<2x8x8xf32>
    "tpu.trace_stop"() : () -> ()
    %34 = tpu.concatenate %24, %27, %30, %33 in 1 : vector<2x8x8xf32>, vector<2x8x8xf32>, vector<2x8x8xf32>, vector<2x8x8xf32> -> vector<2x32x8xf32>
    %35 = vector.shape_cast %13 : vector<32x8xf32> to vector<1x32x8xf32>
    %36 = vector.broadcast %35 : vector<1x32x8xf32> to vector<2x32x8xf32>
    %37 = arith.addf %34, %36 : vector<2x32x8xf32>
    %cst_16 = arith.constant dense<0xFF800000> : vector<2x32xf32>
    %38 = vector.multi_reduction <maximumf>, %37, %cst_16 [2] : vector<2x32x8xf32> to vector<2x32xf32>
    %39 = vector.shape_cast %38 : vector<2x32xf32> to vector<2x32x1xf32>
    %40 = vector.broadcast %39 : vector<2x32x1xf32> to vector<2x32x8xf32>
    %41 = arith.subf %37, %40 : vector<2x32x8xf32>
    %42 = math.exp %41 : vector<2x32x8xf32>
    %cst_17 = arith.constant dense<0.000000e+00> : vector<2x32xf32>
    %43 = vector.multi_reduction <add>, %42, %cst_17 [2] : vector<2x32x8xf32> to vector<2x32xf32>
    %44 = vector.shape_cast %43 : vector<2x32xf32> to vector<2x32x1xf32>
    %45 = tpu.reciprocal %44 {approx = true} : vector<2x32x1xf32> -> vector<2x32x1xf32>
    %46 = vector.broadcast %45 : vector<2x32x1xf32> to vector<2x32x8xf32>
    %47 = arith.mulf %42, %46 : vector<2x32x8xf32>
    %48 = vector.extract_strided_slice %47 {offsets = [0, 0, 0], sizes = [2, 8, 8], strides = [1, 1, 1]} : vector<2x32x8xf32> to vector<2x8x8xf32>
    %49 = arith.truncf %48 : vector<2x8x8xf32> to vector<2x8x8xbf16>
    %50 = vector.extract_strided_slice %21 {offsets = [0, 0, 0], sizes = [2, 8, 8], strides = [1, 1, 1]} : vector<2x8x32xbf16> to vector<2x8x8xbf16>
    "tpu.trace_start"() <{level = 10 : i32, message = "bqk,bkd->bqd"}> : () -> ()
    %cst_18 = arith.constant dense<0.000000e+00> : vector<2x8x8xf32>
    %51 = tpu.matmul %49, %50, %cst_18 {dimension_numbers = #tpu.dot_dimension_numbers<[2], [1], [1], [2], [0, 0, 0, 1, 1, 2], [0], [0]>} : vector<2x8x8xbf16>, vector<2x8x8xbf16>, vector<2x8x8xf32> -> vector<2x8x8xf32>
    "tpu.trace_stop"() : () -> ()
    %52 = vector.extract_strided_slice %47 {offsets = [0, 8, 0], sizes = [2, 8, 8], strides = [1, 1, 1]} : vector<2x32x8xf32> to vector<2x8x8xf32>
    %53 = arith.truncf %52 : vector<2x8x8xf32> to vector<2x8x8xbf16>
    %54 = vector.extract_strided_slice %21 {offsets = [0, 0, 8], sizes = [2, 8, 8], strides = [1, 1, 1]} : vector<2x8x32xbf16> to vector<2x8x8xbf16>
    "tpu.trace_start"() <{level = 10 : i32, message = "bqk,bkd->bqd"}> : () -> ()
    %cst_19 = arith.constant dense<0.000000e+00> : vector<2x8x8xf32>
    %55 = tpu.matmul %53, %54, %cst_19 {dimension_numbers = #tpu.dot_dimension_numbers<[2], [1], [1], [2], [0, 0, 0, 1, 1, 2], [0], [0]>} : vector<2x8x8xbf16>, vector<2x8x8xbf16>, vector<2x8x8xf32> -> vector<2x8x8xf32>
    "tpu.trace_stop"() : () -> ()
    %56 = vector.extract_strided_slice %47 {offsets = [0, 16, 0], sizes = [2, 8, 8], strides = [1, 1, 1]} : vector<2x32x8xf32> to vector<2x8x8xf32>
    %57 = arith.truncf %56 : vector<2x8x8xf32> to vector<2x8x8xbf16>
    %58 = vector.extract_strided_slice %21 {offsets = [0, 0, 16], sizes = [2, 8, 8], strides = [1, 1, 1]} : vector<2x8x32xbf16> to vector<2x8x8xbf16>
    "tpu.trace_start"() <{level = 10 : i32, message = "bqk,bkd->bqd"}> : () -> ()
    %cst_20 = arith.constant dense<0.000000e+00> : vector<2x8x8xf32>
    %59 = tpu.matmul %57, %58, %cst_20 {dimension_numbers = #tpu.dot_dimension_numbers<[2], [1], [1], [2], [0, 0, 0, 1, 1, 2], [0], [0]>} : vector<2x8x8xbf16>, vector<2x8x8xbf16>, vector<2x8x8xf32> -> vector<2x8x8xf32>
    "tpu.trace_stop"() : () -> ()
    %60 = vector.extract_strided_slice %47 {offsets = [0, 24, 0], sizes = [2, 8, 8], strides = [1, 1, 1]} : vector<2x32x8xf32> to vector<2x8x8xf32>
    %61 = arith.truncf %60 : vector<2x8x8xf32> to vector<2x8x8xbf16>
    %62 = vector.extract_strided_slice %21 {offsets = [0, 0, 24], sizes = [2, 8, 8], strides = [1, 1, 1]} : vector<2x8x32xbf16> to vector<2x8x8xbf16>
    "tpu.trace_start"() <{level = 10 : i32, message = "bqk,bkd->bqd"}> : () -> ()
    %cst_21 = arith.constant dense<0.000000e+00> : vector<2x8x8xf32>
    %63 = tpu.matmul %61, %62, %cst_21 {dimension_numbers = #tpu.dot_dimension_numbers<[2], [1], [1], [2], [0, 0, 0, 1, 1, 2], [0], [0]>} : vector<2x8x8xbf16>, vector<2x8x8xbf16>, vector<2x8x8xf32> -> vector<2x8x8xf32>
    "tpu.trace_stop"() : () -> ()
    %64 = tpu.concatenate %51, %55, %59, %63 in 2 : vector<2x8x8xf32>, vector<2x8x8xf32>, vector<2x8x8xf32>, vector<2x8x8xf32> -> vector<2x8x32xf32>
    %65 = vector.shape_cast %64 : vector<2x8x32xf32> to vector<16x32xf32>
    %66 = arith.truncf %65 : vector<16x32xf32> to vector<16x32xbf16>
    %c0_22 = arith.constant 0 : index
    %c0_23 = arith.constant 0 : index
    %67 = vector.load %arg6[%c0_22, %c0_23] : memref<32x32xbf16, #tpu.memory_space<vmem>>, vector<32x32xbf16>
    %cst_24 = arith.constant dense<0.000000e+00> : vector<16x32xf32>
    %68 = tpu.matmul %66, %67, %cst_24 {dimension_numbers = #tpu.dot_dimension_numbers<[1], [0], [0], [1], [0, 0, 1, 1], [], []>} : vector<16x32xbf16>, vector<32x32xbf16>, vector<16x32xf32> -> vector<16x32xf32>
    %c0_25 = arith.constant 0 : index
    %c0_26 = arith.constant 0 : index
    %69 = vector.load %arg7[%c0_25, %c0_26] : memref<1x32xf32, #tpu.memory_space<vmem>>, vector<1x32xf32>
    %70 = vector.broadcast %69 : vector<1x32xf32> to vector<16x32xf32>
    %71 = arith.addf %68, %70 : vector<16x32xf32>
    %72 = arith.addf %71, %1 : vector<16x32xf32>
    %c0_27 = arith.constant 0 : index
    %c0_28 = arith.constant 0 : index
    %73 = vector.load %arg8[%c0_27, %c0_28] : memref<1x32xf32, #tpu.memory_space<vmem>>, vector<1x32xf32>
    %c0_29 = arith.constant 0 : index
    %c0_30 = arith.constant 0 : index
    %74 = vector.load %arg9[%c0_29, %c0_30] : memref<1x32xf32, #tpu.memory_space<vmem>>, vector<1x32xf32>
    %cst_31 = arith.constant dense<0.000000e+00> : vector<16xf32>
    %75 = vector.multi_reduction <add>, %72, %cst_31 [1] : vector<16x32xf32> to vector<16xf32>
    %76 = vector.shape_cast %75 : vector<16xf32> to vector<16x1xf32>
    %cst_32 = arith.constant 3.200000e+01 : f32
    %77 = vector.broadcast %cst_32 : f32 to vector<16x1xf32>
    %78 = arith.divf %76, %77 : vector<16x1xf32>
    %79 = vector.broadcast %78 : vector<16x1xf32> to vector<16x32xf32>
    %80 = arith.subf %72, %79 : vector<16x32xf32>
    %81 = arith.mulf %80, %80 : vector<16x32xf32>
    %cst_33 = arith.constant dense<0.000000e+00> : vector<16xf32>
    %82 = vector.multi_reduction <add>, %81, %cst_33 [1] : vector<16x32xf32> to vector<16xf32>
    %83 = vector.shape_cast %82 : vector<16xf32> to vector<16x1xf32>
    %cst_34 = arith.constant 3.200000e+01 : f32
    %84 = vector.broadcast %cst_34 : f32 to vector<16x1xf32>
    %85 = arith.divf %83, %84 : vector<16x1xf32>
    %86 = vector.broadcast %78 : vector<16x1xf32> to vector<16x32xf32>
    %87 = arith.subf %72, %86 : vector<16x32xf32>
    %cst_35 = arith.constant 9.99999974E-6 : f32
    %88 = vector.broadcast %cst_35 : f32 to vector<16x1xf32>
    %89 = arith.addf %85, %88 : vector<16x1xf32>
    %90 = math.rsqrt %89 : vector<16x1xf32>
    %91 = vector.broadcast %90 : vector<16x1xf32> to vector<16x32xf32>
    %92 = arith.mulf %87, %91 : vector<16x32xf32>
    %93 = vector.broadcast %73 : vector<1x32xf32> to vector<16x32xf32>
    %94 = arith.mulf %92, %93 : vector<16x32xf32>
    %95 = vector.broadcast %74 : vector<1x32xf32> to vector<16x32xf32>
    %96 = arith.addf %94, %95 : vector<16x32xf32>
    %97 = arith.truncf %96 : vector<16x32xf32> to vector<16x32xbf16>
    %c0_36 = arith.constant 0 : index
    %c0_37 = arith.constant 0 : index
    %98 = vector.load %arg10[%c0_36, %c0_37] : memref<32x128xbf16, #tpu.memory_space<vmem>>, vector<32x128xbf16>
    %cst_38 = arith.constant dense<0.000000e+00> : vector<16x128xf32>
    %99 = tpu.matmul %97, %98, %cst_38 {dimension_numbers = #tpu.dot_dimension_numbers<[1], [0], [0], [1], [0, 0, 1, 1], [], []>} : vector<16x32xbf16>, vector<32x128xbf16>, vector<16x128xf32> -> vector<16x128xf32>
    %c0_39 = arith.constant 0 : index
    %c0_40 = arith.constant 0 : index
    %100 = vector.load %arg11[%c0_39, %c0_40] : memref<1x128xf32, #tpu.memory_space<vmem>>, vector<1x128xf32>
    %101 = vector.broadcast %100 : vector<1x128xf32> to vector<16x128xf32>
    %102 = arith.addf %99, %101 : vector<16x128xf32>
    %cst_41 = arith.constant 0.000000e+00 : f32
    %103 = vector.broadcast %cst_41 : f32 to vector<16x128xf32>
    %104 = arith.maximumf %102, %103 : vector<16x128xf32>
    %105 = arith.truncf %104 : vector<16x128xf32> to vector<16x128xbf16>
    %c0_42 = arith.constant 0 : index
    %c0_43 = arith.constant 0 : index
    %106 = vector.load %arg12[%c0_42, %c0_43] : memref<128x32xbf16, #tpu.memory_space<vmem>>, vector<128x32xbf16>
    %cst_44 = arith.constant dense<0.000000e+00> : vector<16x32xf32>
    %107 = tpu.matmul %105, %106, %cst_44 {dimension_numbers = #tpu.dot_dimension_numbers<[1], [0], [0], [1], [0, 0, 1, 1], [], []>} : vector<16x128xbf16>, vector<128x32xbf16>, vector<16x32xf32> -> vector<16x32xf32>
    %c0_45 = arith.constant 0 : index
    %c0_46 = arith.constant 0 : index
    %108 = vector.load %arg13[%c0_45, %c0_46] : memref<1x32xf32, #tpu.memory_space<vmem>>, vector<1x32xf32>
    %109 = vector.broadcast %108 : vector<1x32xf32> to vector<16x32xf32>
    %110 = arith.addf %107, %109 : vector<16x32xf32>
    %111 = arith.addf %110, %96 : vector<16x32xf32>
    %c0_47 = arith.constant 0 : index
    %c0_48 = arith.constant 0 : index
    %112 = vector.load %arg14[%c0_47, %c0_48] : memref<1x32xf32, #tpu.memory_space<vmem>>, vector<1x32xf32>
    %c0_49 = arith.constant 0 : index
    %c0_50 = arith.constant 0 : index
    %113 = vector.load %arg15[%c0_49, %c0_50] : memref<1x32xf32, #tpu.memory_space<vmem>>, vector<1x32xf32>
    %cst_51 = arith.constant dense<0.000000e+00> : vector<16xf32>
    %114 = vector.multi_reduction <add>, %111, %cst_51 [1] : vector<16x32xf32> to vector<16xf32>
    %115 = vector.shape_cast %114 : vector<16xf32> to vector<16x1xf32>
    %cst_52 = arith.constant 3.200000e+01 : f32
    %116 = vector.broadcast %cst_52 : f32 to vector<16x1xf32>
    %117 = arith.divf %115, %116 : vector<16x1xf32>
    %118 = vector.broadcast %117 : vector<16x1xf32> to vector<16x32xf32>
    %119 = arith.subf %111, %118 : vector<16x32xf32>
    %120 = arith.mulf %119, %119 : vector<16x32xf32>
    %cst_53 = arith.constant dense<0.000000e+00> : vector<16xf32>
    %121 = vector.multi_reduction <add>, %120, %cst_53 [1] : vector<16x32xf32> to vector<16xf32>
    %122 = vector.shape_cast %121 : vector<16xf32> to vector<16x1xf32>
    %cst_54 = arith.constant 3.200000e+01 : f32
    %123 = vector.broadcast %cst_54 : f32 to vector<16x1xf32>
    %124 = arith.divf %122, %123 : vector<16x1xf32>
    %125 = vector.broadcast %117 : vector<16x1xf32> to vector<16x32xf32>
    %126 = arith.subf %111, %125 : vector<16x32xf32>
    %cst_55 = arith.constant 9.99999974E-6 : f32
    %127 = vector.broadcast %cst_55 : f32 to vector<16x1xf32>
    %128 = arith.addf %124, %127 : vector<16x1xf32>
    %129 = math.rsqrt %128 : vector<16x1xf32>
    %130 = vector.broadcast %129 : vector<16x1xf32> to vector<16x32xf32>
    %131 = arith.mulf %126, %130 : vector<16x32xf32>
    %132 = vector.broadcast %112 : vector<1x32xf32> to vector<16x32xf32>
    %133 = arith.mulf %131, %132 : vector<16x32xf32>
    %134 = vector.broadcast %113 : vector<1x32xf32> to vector<16x32xf32>
    %135 = arith.addf %133, %134 : vector<16x32xf32>
    %136 = arith.truncf %135 : vector<16x32xf32> to vector<16x32xbf16>
    %c0_56 = arith.constant 0 : index
    %c0_57 = arith.constant 0 : index
    %137 = vector.load %arg16[%c0_56, %c0_57] : memref<32x32xbf16, #tpu.memory_space<vmem>>, vector<32x32xbf16>
    %cst_58 = arith.constant dense<0.000000e+00> : vector<16x32xf32>
    %138 = tpu.matmul %136, %137, %cst_58 {dimension_numbers = #tpu.dot_dimension_numbers<[1], [0], [0], [1], [0, 0, 1, 1], [], []>} : vector<16x32xbf16>, vector<32x32xbf16>, vector<16x32xf32> -> vector<16x32xf32>
    %c0_59 = arith.constant 0 : index
    %c0_60 = arith.constant 0 : index
    %139 = vector.load %arg17[%c0_59, %c0_60] : memref<1x32xf32, #tpu.memory_space<vmem>>, vector<1x32xf32>
    %140 = vector.broadcast %139 : vector<1x32xf32> to vector<16x32xf32>
    %141 = arith.addf %138, %140 : vector<16x32xf32>
    %142 = arith.truncf %3 : vector<16x32xf32> to vector<16x32xbf16>
    %c0_61 = arith.constant 0 : index
    %c0_62 = arith.constant 0 : index
    %143 = vector.load %arg18[%c0_61, %c0_62] : memref<32x64xbf16, #tpu.memory_space<vmem>>, vector<32x64xbf16>
    %cst_63 = arith.constant dense<0.000000e+00> : vector<16x64xf32>
    %144 = tpu.matmul %142, %143, %cst_63 {dimension_numbers = #tpu.dot_dimension_numbers<[1], [0], [0], [1], [0, 0, 1, 1], [], []>} : vector<16x32xbf16>, vector<32x64xbf16>, vector<16x64xf32> -> vector<16x64xf32>
    %c0_64 = arith.constant 0 : index
    %c0_65 = arith.constant 0 : index
    %145 = vector.load %arg19[%c0_64, %c0_65] : memref<1x64xf32, #tpu.memory_space<vmem>>, vector<1x64xf32>
    %146 = vector.broadcast %145 : vector<1x64xf32> to vector<16x64xf32>
    %147 = arith.addf %144, %146 : vector<16x64xf32>
    %148 = vector.extract_strided_slice %147 {offsets = [0, 0], sizes = [16, 32], strides = [1, 1]} : vector<16x64xf32> to vector<16x32xf32>
    %149 = vector.extract_strided_slice %147 {offsets = [0, 32], sizes = [16, 32], strides = [1, 1]} : vector<16x64xf32> to vector<16x32xf32>
    %cst_66 = arith.constant 0.353553385 : f32
    %150 = vector.broadcast %cst_66 : f32 to vector<16x32xf32>
    %151 = arith.mulf %141, %150 : vector<16x32xf32>
    %152 = arith.truncf %151 : vector<16x32xf32> to vector<16x32xbf16>
    %153 = vector.shape_cast %152 : vector<16x32xbf16> to vector<2x8x32xbf16>
    %154 = arith.truncf %148 : vector<16x32xf32> to vector<16x32xbf16>
    %155 = vector.shape_cast %154 : vector<16x32xbf16> to vector<2x8x32xbf16>
    %156 = arith.truncf %149 : vector<16x32xf32> to vector<16x32xbf16>
    %157 = vector.shape_cast %156 : vector<16x32xbf16> to vector<2x8x32xbf16>
    %158 = vector.extract_strided_slice %153 {offsets = [0, 0, 0], sizes = [2, 8, 8], strides = [1, 1, 1]} : vector<2x8x32xbf16> to vector<2x8x8xbf16>
    %159 = vector.extract_strided_slice %155 {offsets = [0, 0, 0], sizes = [2, 8, 8], strides = [1, 1, 1]} : vector<2x8x32xbf16> to vector<2x8x8xbf16>
    "tpu.trace_start"() <{level = 10 : i32, message = "bqd,bkd->bqk"}> : () -> ()
    %cst_67 = arith.constant dense<0.000000e+00> : vector<2x8x8xf32>
    %160 = tpu.matmul %158, %159, %cst_67 {dimension_numbers = #tpu.dot_dimension_numbers<[2], [2], [1], [1], [0, 0, 0, 1, 1, 1], [0], [0]>} : vector<2x8x8xbf16>, vector<2x8x8xbf16>, vector<2x8x8xf32> -> vector<2x8x8xf32>
    "tpu.trace_stop"() : () -> ()
    %161 = vector.extract_strided_slice %153 {offsets = [0, 0, 8], sizes = [2, 8, 8], strides = [1, 1, 1]} : vector<2x8x32xbf16> to vector<2x8x8xbf16>
    %162 = vector.extract_strided_slice %155 {offsets = [0, 0, 8], sizes = [2, 8, 8], strides = [1, 1, 1]} : vector<2x8x32xbf16> to vector<2x8x8xbf16>
    "tpu.trace_start"() <{level = 10 : i32, message = "bqd,bkd->bqk"}> : () -> ()
    %cst_68 = arith.constant dense<0.000000e+00> : vector<2x8x8xf32>
    %163 = tpu.matmul %161, %162, %cst_68 {dimension_numbers = #tpu.dot_dimension_numbers<[2], [2], [1], [1], [0, 0, 0, 1, 1, 1], [0], [0]>} : vector<2x8x8xbf16>, vector<2x8x8xbf16>, vector<2x8x8xf32> -> vector<2x8x8xf32>
    "tpu.trace_stop"() : () -> ()
    %164 = vector.extract_strided_slice %153 {offsets = [0, 0, 16], sizes = [2, 8, 8], strides = [1, 1, 1]} : vector<2x8x32xbf16> to vector<2x8x8xbf16>
    %165 = vector.extract_strided_slice %155 {offsets = [0, 0, 16], sizes = [2, 8, 8], strides = [1, 1, 1]} : vector<2x8x32xbf16> to vector<2x8x8xbf16>
    "tpu.trace_start"() <{level = 10 : i32, message = "bqd,bkd->bqk"}> : () -> ()
    %cst_69 = arith.constant dense<0.000000e+00> : vector<2x8x8xf32>
    %166 = tpu.matmul %164, %165, %cst_69 {dimension_numbers = #tpu.dot_dimension_numbers<[2], [2], [1], [1], [0, 0, 0, 1, 1, 1], [0], [0]>} : vector<2x8x8xbf16>, vector<2x8x8xbf16>, vector<2x8x8xf32> -> vector<2x8x8xf32>
    "tpu.trace_stop"() : () -> ()
    %167 = vector.extract_strided_slice %153 {offsets = [0, 0, 24], sizes = [2, 8, 8], strides = [1, 1, 1]} : vector<2x8x32xbf16> to vector<2x8x8xbf16>
    %168 = vector.extract_strided_slice %155 {offsets = [0, 0, 24], sizes = [2, 8, 8], strides = [1, 1, 1]} : vector<2x8x32xbf16> to vector<2x8x8xbf16>
    "tpu.trace_start"() <{level = 10 : i32, message = "bqd,bkd->bqk"}> : () -> ()
    %cst_70 = arith.constant dense<0.000000e+00> : vector<2x8x8xf32>
    %169 = tpu.matmul %167, %168, %cst_70 {dimension_numbers = #tpu.dot_dimension_numbers<[2], [2], [1], [1], [0, 0, 0, 1, 1, 1], [0], [0]>} : vector<2x8x8xbf16>, vector<2x8x8xbf16>, vector<2x8x8xf32> -> vector<2x8x8xf32>
    "tpu.trace_stop"() : () -> ()
    %170 = tpu.concatenate %160, %163, %166, %169 in 1 : vector<2x8x8xf32>, vector<2x8x8xf32>, vector<2x8x8xf32>, vector<2x8x8xf32> -> vector<2x32x8xf32>
    %cst_71 = arith.constant dense<0xFF800000> : vector<2x32xf32>
    %171 = vector.multi_reduction <maximumf>, %170, %cst_71 [2] : vector<2x32x8xf32> to vector<2x32xf32>
    %172 = vector.shape_cast %171 : vector<2x32xf32> to vector<2x32x1xf32>
    %173 = vector.broadcast %172 : vector<2x32x1xf32> to vector<2x32x8xf32>
    %174 = arith.subf %170, %173 : vector<2x32x8xf32>
    %175 = math.exp %174 : vector<2x32x8xf32>
    %cst_72 = arith.constant dense<0.000000e+00> : vector<2x32xf32>
    %176 = vector.multi_reduction <add>, %175, %cst_72 [2] : vector<2x32x8xf32> to vector<2x32xf32>
    %177 = vector.shape_cast %176 : vector<2x32xf32> to vector<2x32x1xf32>
    %178 = tpu.reciprocal %177 {approx = true} : vector<2x32x1xf32> -> vector<2x32x1xf32>
    %179 = vector.broadcast %178 : vector<2x32x1xf32> to vector<2x32x8xf32>
    %180 = arith.mulf %175, %179 : vector<2x32x8xf32>
    %181 = vector.extract_strided_slice %180 {offsets = [0, 0, 0], sizes = [2, 8, 8], strides = [1, 1, 1]} : vector<2x32x8xf32> to vector<2x8x8xf32>
    %182 = arith.truncf %181 : vector<2x8x8xf32> to vector<2x8x8xbf16>
    %183 = vector.extract_strided_slice %157 {offsets = [0, 0, 0], sizes = [2, 8, 8], strides = [1, 1, 1]} : vector<2x8x32xbf16> to vector<2x8x8xbf16>
    "tpu.trace_start"() <{level = 10 : i32, message = "bqk,bkd->bqd"}> : () -> ()
    %cst_73 = arith.constant dense<0.000000e+00> : vector<2x8x8xf32>
    %184 = tpu.matmul %182, %183, %cst_73 {dimension_numbers = #tpu.dot_dimension_numbers<[2], [1], [1], [2], [0, 0, 0, 1, 1, 2], [0], [0]>} : vector<2x8x8xbf16>, vector<2x8x8xbf16>, vector<2x8x8xf32> -> vector<2x8x8xf32>
    "tpu.trace_stop"() : () -> ()
    %185 = vector.extract_strided_slice %180 {offsets = [0, 8, 0], sizes = [2, 8, 8], strides = [1, 1, 1]} : vector<2x32x8xf32> to vector<2x8x8xf32>
    %186 = arith.truncf %185 : vector<2x8x8xf32> to vector<2x8x8xbf16>
    %187 = vector.extract_strided_slice %157 {offsets = [0, 0, 8], sizes = [2, 8, 8], strides = [1, 1, 1]} : vector<2x8x32xbf16> to vector<2x8x8xbf16>
    "tpu.trace_start"() <{level = 10 : i32, message = "bqk,bkd->bqd"}> : () -> ()
    %cst_74 = arith.constant dense<0.000000e+00> : vector<2x8x8xf32>
    %188 = tpu.matmul %186, %187, %cst_74 {dimension_numbers = #tpu.dot_dimension_numbers<[2], [1], [1], [2], [0, 0, 0, 1, 1, 2], [0], [0]>} : vector<2x8x8xbf16>, vector<2x8x8xbf16>, vector<2x8x8xf32> -> vector<2x8x8xf32>
    "tpu.trace_stop"() : () -> ()
    %189 = vector.extract_strided_slice %180 {offsets = [0, 16, 0], sizes = [2, 8, 8], strides = [1, 1, 1]} : vector<2x32x8xf32> to vector<2x8x8xf32>
    %190 = arith.truncf %189 : vector<2x8x8xf32> to vector<2x8x8xbf16>
    %191 = vector.extract_strided_slice %157 {offsets = [0, 0, 16], sizes = [2, 8, 8], strides = [1, 1, 1]} : vector<2x8x32xbf16> to vector<2x8x8xbf16>
    "tpu.trace_start"() <{level = 10 : i32, message = "bqk,bkd->bqd"}> : () -> ()
    %cst_75 = arith.constant dense<0.000000e+00> : vector<2x8x8xf32>
    %192 = tpu.matmul %190, %191, %cst_75 {dimension_numbers = #tpu.dot_dimension_numbers<[2], [1], [1], [2], [0, 0, 0, 1, 1, 2], [0], [0]>} : vector<2x8x8xbf16>, vector<2x8x8xbf16>, vector<2x8x8xf32> -> vector<2x8x8xf32>
    "tpu.trace_stop"() : () -> ()
    %193 = vector.extract_strided_slice %180 {offsets = [0, 24, 0], sizes = [2, 8, 8], strides = [1, 1, 1]} : vector<2x32x8xf32> to vector<2x8x8xf32>
    %194 = arith.truncf %193 : vector<2x8x8xf32> to vector<2x8x8xbf16>
    %195 = vector.extract_strided_slice %157 {offsets = [0, 0, 24], sizes = [2, 8, 8], strides = [1, 1, 1]} : vector<2x8x32xbf16> to vector<2x8x8xbf16>
    "tpu.trace_start"() <{level = 10 : i32, message = "bqk,bkd->bqd"}> : () -> ()
    %cst_76 = arith.constant dense<0.000000e+00> : vector<2x8x8xf32>
    %196 = tpu.matmul %194, %195, %cst_76 {dimension_numbers = #tpu.dot_dimension_numbers<[2], [1], [1], [2], [0, 0, 0, 1, 1, 2], [0], [0]>} : vector<2x8x8xbf16>, vector<2x8x8xbf16>, vector<2x8x8xf32> -> vector<2x8x8xf32>
    "tpu.trace_stop"() : () -> ()
    %197 = tpu.concatenate %184, %188, %192, %196 in 2 : vector<2x8x8xf32>, vector<2x8x8xf32>, vector<2x8x8xf32>, vector<2x8x8xf32> -> vector<2x8x32xf32>
    %198 = vector.shape_cast %197 : vector<2x8x32xf32> to vector<16x32xf32>
    %199 = arith.truncf %198 : vector<16x32xf32> to vector<16x32xbf16>
    %c0_77 = arith.constant 0 : index
    %c0_78 = arith.constant 0 : index
    %200 = vector.load %arg20[%c0_77, %c0_78] : memref<32x32xbf16, #tpu.memory_space<vmem>>, vector<32x32xbf16>
    %cst_79 = arith.constant dense<0.000000e+00> : vector<16x32xf32>
    %201 = tpu.matmul %199, %200, %cst_79 {dimension_numbers = #tpu.dot_dimension_numbers<[1], [0], [0], [1], [0, 0, 1, 1], [], []>} : vector<16x32xbf16>, vector<32x32xbf16>, vector<16x32xf32> -> vector<16x32xf32>
    %c0_80 = arith.constant 0 : index
    %c0_81 = arith.constant 0 : index
    %202 = vector.load %arg21[%c0_80, %c0_81] : memref<1x32xf32, #tpu.memory_space<vmem>>, vector<1x32xf32>
    %203 = vector.broadcast %202 : vector<1x32xf32> to vector<16x32xf32>
    %204 = arith.addf %201, %203 : vector<16x32xf32>
    %205 = arith.addf %204, %135 : vector<16x32xf32>
    %c0_82 = arith.constant 0 : index
    %c0_83 = arith.constant 0 : index
    %206 = vector.load %arg22[%c0_82, %c0_83] : memref<1x32xf32, #tpu.memory_space<vmem>>, vector<1x32xf32>
    %c0_84 = arith.constant 0 : index
    %c0_85 = arith.constant 0 : index
    %207 = vector.load %arg23[%c0_84, %c0_85] : memref<1x32xf32, #tpu.memory_space<vmem>>, vector<1x32xf32>
    %cst_86 = arith.constant dense<0.000000e+00> : vector<16xf32>
    %208 = vector.multi_reduction <add>, %205, %cst_86 [1] : vector<16x32xf32> to vector<16xf32>
    %209 = vector.shape_cast %208 : vector<16xf32> to vector<16x1xf32>
    %cst_87 = arith.constant 3.200000e+01 : f32
    %210 = vector.broadcast %cst_87 : f32 to vector<16x1xf32>
    %211 = arith.divf %209, %210 : vector<16x1xf32>
    %212 = vector.broadcast %211 : vector<16x1xf32> to vector<16x32xf32>
    %213 = arith.subf %205, %212 : vector<16x32xf32>
    %214 = arith.mulf %213, %213 : vector<16x32xf32>
    %cst_88 = arith.constant dense<0.000000e+00> : vector<16xf32>
    %215 = vector.multi_reduction <add>, %214, %cst_88 [1] : vector<16x32xf32> to vector<16xf32>
    %216 = vector.shape_cast %215 : vector<16xf32> to vector<16x1xf32>
    %cst_89 = arith.constant 3.200000e+01 : f32
    %217 = vector.broadcast %cst_89 : f32 to vector<16x1xf32>
    %218 = arith.divf %216, %217 : vector<16x1xf32>
    %219 = vector.broadcast %211 : vector<16x1xf32> to vector<16x32xf32>
    %220 = arith.subf %205, %219 : vector<16x32xf32>
    %cst_90 = arith.constant 9.99999974E-6 : f32
    %221 = vector.broadcast %cst_90 : f32 to vector<16x1xf32>
    %222 = arith.addf %218, %221 : vector<16x1xf32>
    %223 = math.rsqrt %222 : vector<16x1xf32>
    %224 = vector.broadcast %223 : vector<16x1xf32> to vector<16x32xf32>
    %225 = arith.mulf %220, %224 : vector<16x32xf32>
    %226 = vector.broadcast %206 : vector<1x32xf32> to vector<16x32xf32>
    %227 = arith.mulf %225, %226 : vector<16x32xf32>
    %228 = vector.broadcast %207 : vector<1x32xf32> to vector<16x32xf32>
    %229 = arith.addf %227, %228 : vector<16x32xf32>
    %230 = arith.truncf %229 : vector<16x32xf32> to vector<16x32xbf16>
    %c0_91 = arith.constant 0 : index
    %c0_92 = arith.constant 0 : index
    %231 = vector.load %arg24[%c0_91, %c0_92] : memref<32x128xbf16, #tpu.memory_space<vmem>>, vector<32x128xbf16>
    %cst_93 = arith.constant dense<0.000000e+00> : vector<16x128xf32>
    %232 = tpu.matmul %230, %231, %cst_93 {dimension_numbers = #tpu.dot_dimension_numbers<[1], [0], [0], [1], [0, 0, 1, 1], [], []>} : vector<16x32xbf16>, vector<32x128xbf16>, vector<16x128xf32> -> vector<16x128xf32>
    %c0_94 = arith.constant 0 : index
    %c0_95 = arith.constant 0 : index
    %233 = vector.load %arg25[%c0_94, %c0_95] : memref<1x128xf32, #tpu.memory_space<vmem>>, vector<1x128xf32>
    %234 = vector.broadcast %233 : vector<1x128xf32> to vector<16x128xf32>
    %235 = arith.addf %232, %234 : vector<16x128xf32>
    %cst_96 = arith.constant 0.000000e+00 : f32
    %236 = vector.broadcast %cst_96 : f32 to vector<16x128xf32>
    %237 = arith.maximumf %235, %236 : vector<16x128xf32>
    %238 = arith.truncf %237 : vector<16x128xf32> to vector<16x128xbf16>
    %c0_97 = arith.constant 0 : index
    %c0_98 = arith.constant 0 : index
    %239 = vector.load %arg26[%c0_97, %c0_98] : memref<128x32xbf16, #tpu.memory_space<vmem>>, vector<128x32xbf16>
    %cst_99 = arith.constant dense<0.000000e+00> : vector<16x32xf32>
    %240 = tpu.matmul %238, %239, %cst_99 {dimension_numbers = #tpu.dot_dimension_numbers<[1], [0], [0], [1], [0, 0, 1, 1], [], []>} : vector<16x128xbf16>, vector<128x32xbf16>, vector<16x32xf32> -> vector<16x32xf32>
    %c0_100 = arith.constant 0 : index
    %c0_101 = arith.constant 0 : index
    %241 = vector.load %arg27[%c0_100, %c0_101] : memref<1x32xf32, #tpu.memory_space<vmem>>, vector<1x32xf32>
    %242 = vector.broadcast %241 : vector<1x32xf32> to vector<16x32xf32>
    %243 = arith.addf %240, %242 : vector<16x32xf32>
    %244 = arith.addf %243, %229 : vector<16x32xf32>
    %c0_102 = arith.constant 0 : index
    %c0_103 = arith.constant 0 : index
    %245 = vector.load %arg28[%c0_102, %c0_103] : memref<1x32xf32, #tpu.memory_space<vmem>>, vector<1x32xf32>
    %c0_104 = arith.constant 0 : index
    %c0_105 = arith.constant 0 : index
    %246 = vector.load %arg29[%c0_104, %c0_105] : memref<1x32xf32, #tpu.memory_space<vmem>>, vector<1x32xf32>
    %cst_106 = arith.constant dense<0.000000e+00> : vector<16xf32>
    %247 = vector.multi_reduction <add>, %244, %cst_106 [1] : vector<16x32xf32> to vector<16xf32>
    %248 = vector.shape_cast %247 : vector<16xf32> to vector<16x1xf32>
    %cst_107 = arith.constant 3.200000e+01 : f32
    %249 = vector.broadcast %cst_107 : f32 to vector<16x1xf32>
    %250 = arith.divf %248, %249 : vector<16x1xf32>
    %251 = vector.broadcast %250 : vector<16x1xf32> to vector<16x32xf32>
    %252 = arith.subf %244, %251 : vector<16x32xf32>
    %253 = arith.mulf %252, %252 : vector<16x32xf32>
    %cst_108 = arith.constant dense<0.000000e+00> : vector<16xf32>
    %254 = vector.multi_reduction <add>, %253, %cst_108 [1] : vector<16x32xf32> to vector<16xf32>
    %255 = vector.shape_cast %254 : vector<16xf32> to vector<16x1xf32>
    %cst_109 = arith.constant 3.200000e+01 : f32
    %256 = vector.broadcast %cst_109 : f32 to vector<16x1xf32>
    %257 = arith.divf %255, %256 : vector<16x1xf32>
    %258 = vector.broadcast %250 : vector<16x1xf32> to vector<16x32xf32>
    %259 = arith.subf %244, %258 : vector<16x32xf32>
    %cst_110 = arith.constant 9.99999974E-6 : f32
    %260 = vector.broadcast %cst_110 : f32 to vector<16x1xf32>
    %261 = arith.addf %257, %260 : vector<16x1xf32>
    %262 = math.rsqrt %261 : vector<16x1xf32>
    %263 = vector.broadcast %262 : vector<16x1xf32> to vector<16x32xf32>
    %264 = arith.mulf %259, %263 : vector<16x32xf32>
    %265 = vector.broadcast %245 : vector<1x32xf32> to vector<16x32xf32>
    %266 = arith.mulf %264, %265 : vector<16x32xf32>
    %267 = vector.broadcast %246 : vector<1x32xf32> to vector<16x32xf32>
    %268 = arith.addf %266, %267 : vector<16x32xf32>
    %269 = vector.shape_cast %268 : vector<16x32xf32> to vector<2x8x32xf32>
    %c0_111 = arith.constant 0 : index
    %c0_112 = arith.constant 0 : index
    %c0_113 = arith.constant 0 : index
    %270 = vector.load %arg30[%c0_111, %c0_112, %c0_113] : memref<2x8x32xf32, #tpu.memory_space<vmem>>, vector<2x8x32xf32>
    tpu.vector_store %arg30[%c0_111, %c0_112, %c0_113], %269 {strides = array<i32>} : memref<2x8x32xf32, #tpu.memory_space<vmem>>, vector<2x8x32xf32>,
    return
  }
  func.func @transform_0(%arg0: i32) -> (i32, i32, i32) {
    %c0_i32 = arith.constant 0 : i32
    %c0_i32_0 = arith.constant 0 : i32
    %c0_i32_1 = arith.constant 0 : i32
    return %arg0, %c0_i32, %c0_i32_0 : i32, i32, i32
  }
  func.func @transform_1(%arg0: i32) -> (i32, i32, i32) {
    %c0_i32 = arith.constant 0 : i32
    %c0_i32_0 = arith.constant 0 : i32
    %c0_i32_1 = arith.constant 0 : i32
    return %arg0, %c0_i32, %c0_i32_0 : i32, i32, i32
  }
  func.func @transform_2(%arg0: i32) -> (i32, i32) {
    %c0_i32 = arith.constant 0 : i32
    %c0_i32_0 = arith.constant 0 : i32
    %c0_i32_1 = arith.constant 0 : i32
    return %c0_i32, %c0_i32_0 : i32, i32
  }
  func.func @transform_3(%arg0: i32) -> (i32, i32) {
    %c0_i32 = arith.constant 0 : i32
    %c0_i32_0 = arith.constant 0 : i32
    %c0_i32_1 = arith.constant 0 : i32
    return %c0_i32, %c0_i32_0 : i32, i32
  }
  func.func @transform_4(%arg0: i32) -> (i32, i32) {
    %c0_i32 = arith.constant 0 : i32
    %c0_i32_0 = arith.constant 0 : i32
    %c0_i32_1 = arith.constant 0 : i32
    return %c0_i32, %c0_i32_0 : i32, i32
  }
  func.func @transform_5(%arg0: i32) -> (i32, i32) {
    %c0_i32 = arith.constant 0 : i32
    %c0_i32_0 = arith.constant 0 : i32
    %c0_i32_1 = arith.constant 0 : i32
    return %c0_i32, %c0_i32_0 : i32, i32
  }
  func.func @transform_6(%arg0: i32) -> (i32, i32) {
    %c0_i32 = arith.constant 0 : i32
    %c0_i32_0 = arith.constant 0 : i32
    %c0_i32_1 = arith.constant 0 : i32
    return %c0_i32, %c0_i32_0 : i32, i32
  }
  func.func @transform_7(%arg0: i32) -> (i32, i32) {
    %c0_i32 = arith.constant 0 : i32
    %c0_i32_0 = arith.constant 0 : i32
    %c0_i32_1 = arith.constant 0 : i32
    return %c0_i32, %c0_i32_0 : i32, i32
  }
  func.func @transform_8(%arg0: i32) -> (i32, i32) {
    %c0_i32 = arith.constant 0 : i32
    %c0_i32_0 = arith.constant 0 : i32
    %c0_i32_1 = arith.constant 0 : i32
    return %c0_i32, %c0_i32_0 : i32, i32
  }
  func.func @transform_9(%arg0: i32) -> (i32, i32) {
    %c0_i32 = arith.constant 0 : i32
    %c0_i32_0 = arith.constant 0 : i32
    %c0_i32_1 = arith.constant 0 : i32
    return %c0_i32, %c0_i32_0 : i32, i32
  }
  func.func @transform_10(%arg0: i32) -> (i32, i32) {
    %c0_i32 = arith.constant 0 : i32
    %c0_i32_0 = arith.constant 0 : i32
    %c0_i32_1 = arith.constant 0 : i32
    return %c0_i32, %c0_i32_0 : i32, i32
  }
  func.func @transform_11(%arg0: i32) -> (i32, i32) {
    %c0_i32 = arith.constant 0 : i32
    %c0_i32_0 = arith.constant 0 : i32
    %c0_i32_1 = arith.constant 0 : i32
    return %c0_i32, %c0_i32_0 : i32, i32
  }
  func.func @transform_12(%arg0: i32) -> (i32, i32) {
    %c0_i32 = arith.constant 0 : i32
    %c0_i32_0 = arith.constant 0 : i32
    %c0_i32_1 = arith.constant 0 : i32
    return %c0_i32, %c0_i32_0 : i32, i32
  }
  func.func @transform_13(%arg0: i32) -> (i32, i32) {
    %c0_i32 = arith.constant 0 : i32
    %c0_i32_0 = arith.constant 0 : i32
    %c0_i32_1 = arith.constant 0 : i32
    return %c0_i32, %c0_i32_0 : i32, i32
  }
  func.func @transform_14(%arg0: i32) -> (i32, i32) {
    %c0_i32 = arith.constant 0 : i32
    %c0_i32_0 = arith.constant 0 : i32
    %c0_i32_1 = arith.constant 0 : i32
    return %c0_i32, %c0_i32_0 : i32, i32
  }
  func.func @transform_15(%arg0: i32) -> (i32, i32) {
    %c0_i32 = arith.constant 0 : i32
    %c0_i32_0 = arith.constant 0 : i32
    %c0_i32_1 = arith.constant 0 : i32
    return %c0_i32, %c0_i32_0 : i32, i32
  }
  func.func @transform_16(%arg0: i32) -> (i32, i32) {
    %c0_i32 = arith.constant 0 : i32
    %c0_i32_0 = arith.constant 0 : i32
    %c0_i32_1 = arith.constant 0 : i32
    return %c0_i32, %c0_i32_0 : i32, i32
  }
  func.func @transform_17(%arg0: i32) -> (i32, i32) {
    %c0_i32 = arith.constant 0 : i32
    %c0_i32_0 = arith.constant 0 : i32
    %c0_i32_1 = arith.constant 0 : i32
    return %c0_i32, %c0_i32_0 : i32, i32
  }
  func.func @transform_18(%arg0: i32) -> (i32, i32) {
    %c0_i32 = arith.constant 0 : i32
    %c0_i32_0 = arith.constant 0 : i32
    %c0_i32_1 = arith.constant 0 : i32
    return %c0_i32, %c0_i32_0 : i32, i32
  }
  func.func @transform_19(%arg0: i32) -> (i32, i32) {
    %c0_i32 = arith.constant 0 : i32
    %c0_i32_0 = arith.constant 0 : i32
    %c0_i32_1 = arith.constant 0 : i32
    return %c0_i32, %c0_i32_0 : i32, i32
  }
  func.func @transform_20(%arg0: i32) -> (i32, i32) {
    %c0_i32 = arith.constant 0 : i32
    %c0_i32_0 = arith.constant 0 : i32
    %c0_i32_1 = arith.constant 0 : i32
    return %c0_i32, %c0_i32_0 : i32, i32
  }
  func.func @transform_21(%arg0: i32) -> (i32, i32) {
    %c0_i32 = arith.constant 0 : i32
    %c0_i32_0 = arith.constant 0 : i32
    %c0_i32_1 = arith.constant 0 : i32
    return %c0_i32, %c0_i32_0 : i32, i32
  }
  func.func @transform_22(%arg0: i32) -> (i32, i32) {
    %c0_i32 = arith.constant 0 : i32
    %c0_i32_0 = arith.constant 0 : i32
    %c0_i32_1 = arith.constant 0 : i32
    return %c0_i32, %c0_i32_0 : i32, i32
  }
  func.func @transform_23(%arg0: i32) -> (i32, i32) {
    %c0_i32 = arith.constant 0 : i32
    %c0_i32_0 = arith.constant 0 : i32
    %c0_i32_1 = arith.constant 0 : i32
    return %c0_i32, %c0_i32_0 : i32, i32
  }
  func.func @transform_24(%arg0: i32) -> (i32, i32) {
    %c0_i32 = arith.constant 0 : i32
    %c0_i32_0 = arith.constant 0 : i32
    %c0_i32_1 = arith.constant 0 : i32
    return %c0_i32, %c0_i32_0 : i32, i32
  }
  func.func @transform_25(%arg0: i32) -> (i32, i32) {
    %c0_i32 = arith.constant 0 : i32
    %c0_i32_0 = arith.constant 0 : i32
    %c0_i32_1 = arith.constant 0 : i32
    return %c0_i32, %c0_i32_0 : i32, i32
  }
  func.func @transform_26(%arg0: i32) -> (i32, i32) {
    %c0_i32 = arith.constant 0 : i32
    %c0_i32_0 = arith.constant 0 : i32
    %c0_i32_1 = arith.constant 0 : i32
    return %c0_i32, %c0_i32_0 : i32, i32
  }
  func.func @transform_27(%arg0: i32) -> (i32, i32) {
    %c0_i32 = arith.constant 0 : i32
    %c0_i32_0 = arith.constant 0 : i32
    %c0_i32_1 = arith.constant 0 : i32
    return %c0_i32, %c0_i32_0 : i32, i32
  }
  func.func @transform_28(%arg0: i32) -> (i32, i32) {
    %c0_i32 = arith.constant 0 : i32
    %c0_i32_0 = arith.constant 0 : i32
    %c0_i32_1 = arith.constant 0 : i32
    return %c0_i32, %c0_i32_0 : i32, i32
  }
  func.func @transform_29(%arg0: i32) -> (i32, i32, i32) {
    %c0_i32 = arith.constant 0 : i32
    %c0_i32_0 = arith.constant 0 : i32
    %c0_i32_1 = arith.constant 0 : i32
    return %arg0, %c0_i32, %c0_i32_0 : i32, i32, i32
  }
}

</mosaic_0001>

<llo_original>
// kernel: tpu_custom_call.1
$region0: #{tpu_custom_call.1}
  #allocation0 [shape = 'u32[]', space=smem, size = 0x4, offset = 0x4, fixed_abs, tag = 'smem constant byte address 0x4 - core index']
  #allocation1 [shape = 'u32[144,128]{1,0:T(1,128)}', space=vmem, size = 0x12000, scoped, tag = 'internal scratch']
  %s0 = inlined_call_operand.smem [shape: u32[30], index: -1, kind: input, shape index: {}]
  %s1 = sld [smem:[%s0]]
  %s2 = scalar_lea.smem %s0, 1
  %s3 = sld [smem:[%s2]]
  %s4 = scalar_lea.smem %s0, 2
  %s5 = sld [smem:[%s4]]
  %s6 = scalar_lea.smem %s0, 3
  %s7 = sld [smem:[%s6]]
  %s8 = scalar_lea.smem %s0, 4
  %s9 = sld [smem:[%s8]]
  %s10 = scalar_lea.smem %s0, 5
  %s11 = sld [smem:[%s10]]
  %s12 = scalar_lea.smem %s0, 6
  %s13 = sld [smem:[%s12]]
  %s14 = scalar_lea.smem %s0, 7
  %s15 = sld [smem:[%s14]]
  %s16 = scalar_lea.smem %s0, 8
  %s17 = sld [smem:[%s16]]
  %s18 = scalar_lea.smem %s0, 9
  %s19 = sld [smem:[%s18]]
  %s20 = scalar_lea.smem %s0, 10
  %s21 = sld [smem:[%s20]]
  %s22 = scalar_lea.smem %s0, 11
  %s23 = sld [smem:[%s22]]
  %s24 = scalar_lea.smem %s0, 12
  %s25 = sld [smem:[%s24]]
  %s26 = scalar_lea.smem %s0, 13
  %s27 = sld [smem:[%s26]]
  %s28 = scalar_lea.smem %s0, 14
  %s29 = sld [smem:[%s28]]
  %s30 = scalar_lea.smem %s0, 15
  %s31 = sld [smem:[%s30]]
  %s32 = scalar_lea.smem %s0, 16
  %s33 = sld [smem:[%s32]]
  %s34 = scalar_lea.smem %s0, 17
  %s35 = sld [smem:[%s34]]
  %s36 = scalar_lea.smem %s0, 18
  %s37 = sld [smem:[%s36]]
  %s38 = scalar_lea.smem %s0, 19
  %s39 = sld [smem:[%s38]]
  %s40 = scalar_lea.smem %s0, 20
  %s41 = sld [smem:[%s40]]
  %s42 = scalar_lea.smem %s0, 21
  %s43 = sld [smem:[%s42]]
  %s44 = scalar_lea.smem %s0, 22
  %s45 = sld [smem:[%s44]]
  %s46 = scalar_lea.smem %s0, 23
  %s47 = sld [smem:[%s46]]
  %s48 = scalar_lea.smem %s0, 24
  %s49 = sld [smem:[%s48]]
  %s50 = scalar_lea.smem %s0, 25
  %s51 = sld [smem:[%s50]]
  %s52 = scalar_lea.smem %s0, 26
  %s53 = sld [smem:[%s52]]
  %s54 = scalar_lea.smem %s0, 27
  %s55 = sld [smem:[%s54]]
  %s56 = scalar_lea.smem %s0, 28
  %s57 = sld [smem:[%s56]]
  %s58 = scalar_lea.smem %s0, 29
  %s59 = sld [smem:[%s58]]
  %s60 = sld [smem:[#allocation0]]
  $region126: #{tpu_custom_call.1} parent=0
    _
  %s62 = ssub.s32 1, %s60
  %s63 = scalar_select 0, %s62, %s60
  $region1: #{tpu_custom_call.1} parent=0
    #allocation2 [shape = 'u8[8192]{0}', space=vmem, size = 0x2000, scoped, tag = 'output window, operand 0, single buffered']
    #allocation3 [shape = 's32[1]{0}', space=sflag, size = 0x4, scoped, tag = 'scoped memory for tpu_custom_call.1']
    %64 = vsyncpa [#allocation3], 0
    // Predicated region
    $region2: #{tpu_custom_call.1} parent=1 // pred_check
      _
    $region3: #{tpu_custom_call.1} parent=1 // pred_check_branch
      %66 = sbr.rel (0) target = $region5
    $region4: #{tpu_custom_call.1} parent=1 // pred_region
      _
    $region5: #{tpu_custom_call.1} parent=1 // pred_fallthru
      _
    // Predicated region
    $region6: #{tpu_custom_call.1} parent=1 // pred_check
      _
    $region7: #{tpu_custom_call.1} parent=1 // pred_check_branch
      %68 = sbr.rel (0) target = $region9
    $region8: #{tpu_custom_call.1} parent=1 // pred_region
      _
    $region9: #{tpu_custom_call.1} parent=1 // pred_fallthru
      _
    // Predicated region
    $region10: #{tpu_custom_call.1} parent=1 // pred_check
      _
    $region11: #{tpu_custom_call.1} parent=1 // pred_check_branch
      %70 = sbr.rel (0) target = $region13
    $region12: #{tpu_custom_call.1} parent=1 // pred_region
      _
    $region13: #{tpu_custom_call.1} parent=1 // pred_fallthru
      _
    // Predicated region
    $region14: #{tpu_custom_call.1} parent=1 // pred_check
      _
    $region15: #{tpu_custom_call.1} parent=1 // pred_check_branch
      %72 = sbr.rel (0) target = $region17
    $region16: #{tpu_custom_call.1} parent=1 // pred_region
      _
    $region17: #{tpu_custom_call.1} parent=1 // pred_fallthru
      _
    // Predicated region
    $region18: #{tpu_custom_call.1} parent=1 // pred_check
      _
    $region19: #{tpu_custom_call.1} parent=1 // pred_check_branch
      %74 = sbr.rel (0) target = $region21
    $region20: #{tpu_custom_call.1} parent=1 // pred_region
      _
    $region21: #{tpu_custom_call.1} parent=1 // pred_fallthru
      _
    // Predicated region
    $region22: #{tpu_custom_call.1} parent=1 // pred_check
      _
    $region23: #{tpu_custom_call.1} parent=1 // pred_check_branch
      %76 = sbr.rel (0) target = $region25
    $region24: #{tpu_custom_call.1} parent=1 // pred_region
      _
    $region25: #{tpu_custom_call.1} parent=1 // pred_fallthru
      _
    // Predicated region
    $region26: #{tpu_custom_call.1} parent=1 // pred_check
      _
    $region27: #{tpu_custom_call.1} parent=1 // pred_check_branch
      %78 = sbr.rel (0) target = $region29
    $region28: #{tpu_custom_call.1} parent=1 // pred_region
      _
    $region29: #{tpu_custom_call.1} parent=1 // pred_fallthru
      _
    // Predicated region
    $region30: #{tpu_custom_call.1} parent=1 // pred_check
      _
    $region31: #{tpu_custom_call.1} parent=1 // pred_check_branch
      %80 = sbr.rel (0) target = $region33
    $region32: #{tpu_custom_call.1} parent=1 // pred_region
      _
    $region33: #{tpu_custom_call.1} parent=1 // pred_fallthru
      _
    // Predicated region
    $region34: #{tpu_custom_call.1} parent=1 // pred_check
      _
    $region35: #{tpu_custom_call.1} parent=1 // pred_check_branch
      %82 = sbr.rel (0) target = $region37
    $region36: #{tpu_custom_call.1} parent=1 // pred_region
      _
    $region37: #{tpu_custom_call.1} parent=1 // pred_fallthru
      _
    // Predicated region
    $region38: #{tpu_custom_call.1} parent=1 // pred_check
      _
    $region39: #{tpu_custom_call.1} parent=1 // pred_check_branch
      %84 = sbr.rel (0) target = $region41
    $region40: #{tpu_custom_call.1} parent=1 // pred_region
      _
    $region41: #{tpu_custom_call.1} parent=1 // pred_fallthru
      _
    // Predicated region
    $region42: #{tpu_custom_call.1} parent=1 // pred_check
      _
    $region43: #{tpu_custom_call.1} parent=1 // pred_check_branch
      %86 = sbr.rel (0) target = $region45
    $region44: #{tpu_custom_call.1} parent=1 // pred_region
      _
    $region45: #{tpu_custom_call.1} parent=1 // pred_fallthru
      _
    // Predicated region
    $region46: #{tpu_custom_call.1} parent=1 // pred_check
      _
    $region47: #{tpu_custom_call.1} parent=1 // pred_check_branch
      %88 = sbr.rel (0) target = $region49
    $region48: #{tpu_custom_call.1} parent=1 // pred_region
      _
    $region49: #{tpu_custom_call.1} parent=1 // pred_fallthru
      _
    // Predicated region
    $region50: #{tpu_custom_call.1} parent=1 // pred_check
      _
    $region51: #{tpu_custom_call.1} parent=1 // pred_check_branch
      %90 = sbr.rel (0) target = $region53
    $region52: #{tpu_custom_call.1} parent=1 // pred_region
      _
    $region53: #{tpu_custom_call.1} parent=1 // pred_fallthru
      _
    // Predicated region
    $region54: #{tpu_custom_call.1} parent=1 // pred_check
      _
    $region55: #{tpu_custom_call.1} parent=1 // pred_check_branch
      %92 = sbr.rel (0) target = $region57
    $region56: #{tpu_custom_call.1} parent=1 // pred_region
      _
    $region57: #{tpu_custom_call.1} parent=1 // pred_fallthru
      _
    // Predicated region
    $region58: #{tpu_custom_call.1} parent=1 // pred_check
      _
    $region59: #{tpu_custom_call.1} parent=1 // pred_check_branch
      %94 = sbr.rel (0) target = $region61
    $region60: #{tpu_custom_call.1} parent=1 // pred_region
      _
    $region61: #{tpu_custom_call.1} parent=1 // pred_fallthru
      _
    // Predicated region
    $region62: #{tpu_custom_call.1} parent=1 // pred_check
      _
    $region63: #{tpu_custom_call.1} parent=1 // pred_check_branch
      %96 = sbr.rel (0) target = $region65
    $region64: #{tpu_custom_call.1} parent=1 // pred_region
      _
    $region65: #{tpu_custom_call.1} parent=1 // pred_fallthru
      _
    // Predicated region
    $region66: #{tpu_custom_call.1} parent=1 // pred_check
      _
    $region67: #{tpu_custom_call.1} parent=1 // pred_check_branch
      %98 = sbr.rel (0) target = $region69
    $region68: #{tpu_custom_call.1} parent=1 // pred_region
      _
    $region69: #{tpu_custom_call.1} parent=1 // pred_fallthru
      _
    // Predicated region
    $region70: #{tpu_custom_call.1} parent=1 // pred_check
      _
    $region71: #{tpu_custom_call.1} parent=1 // pred_check_branch
      %100 = sbr.rel (0) target = $region73
    $region72: #{tpu_custom_call.1} parent=1 // pred_region
      _
    $region73: #{tpu_custom_call.1} parent=1 // pred_fallthru
      _
    // Predicated region
    $region74: #{tpu_custom_call.1} parent=1 // pred_check
      _
    $region75: #{tpu_custom_call.1} parent=1 // pred_check_branch
      %102 = sbr.rel (0) target = $region77
    $region76: #{tpu_custom_call.1} parent=1 // pred_region
      _
    $region77: #{tpu_custom_call.1} parent=1 // pred_fallthru
      _
    // Predicated region
    $region78: #{tpu_custom_call.1} parent=1 // pred_check
      _
    $region79: #{tpu_custom_call.1} parent=1 // pred_check_branch
      %104 = sbr.rel (0) target = $region81
    $region80: #{tpu_custom_call.1} parent=1 // pred_region
      _
    $region81: #{tpu_custom_call.1} parent=1 // pred_fallthru
      _
    // Predicated region
    $region82: #{tpu_custom_call.1} parent=1 // pred_check
      _
    $region83: #{tpu_custom_call.1} parent=1 // pred_check_branch
      %106 = sbr.rel (0) target = $region85
    $region84: #{tpu_custom_call.1} parent=1 // pred_region
      _
    $region85: #{tpu_custom_call.1} parent=1 // pred_fallthru
      _
    // Predicated region
    $region86: #{tpu_custom_call.1} parent=1 // pred_check
      _
    $region87: #{tpu_custom_call.1} parent=1 // pred_check_branch
      %108 = sbr.rel (0) target = $region89
    $region88: #{tpu_custom_call.1} parent=1 // pred_region
      _
    $region89: #{tpu_custom_call.1} parent=1 // pred_fallthru
      _
    // Predicated region
    $region90: #{tpu_custom_call.1} parent=1 // pred_check
      _
    $region91: #{tpu_custom_call.1} parent=1 // pred_check_branch
      %110 = sbr.rel (0) target = $region93
    $region92: #{tpu_custom_call.1} parent=1 // pred_region
      _
    $region93: #{tpu_custom_call.1} parent=1 // pred_fallthru
      _
    // Predicated region
    $region94: #{tpu_custom_call.1} parent=1 // pred_check
      _
    $region95: #{tpu_custom_call.1} parent=1 // pred_check_branch
      %112 = sbr.rel (0) target = $region97
    $region96: #{tpu_custom_call.1} parent=1 // pred_region
      _
    $region97: #{tpu_custom_call.1} parent=1 // pred_fallthru
      _
    // Predicated region
    $region98: #{tpu_custom_call.1} parent=1 // pred_check
      _
    $region99: #{tpu_custom_call.1} parent=1 // pred_check_branch
      %114 = sbr.rel (0) target = $region101
    $region100: #{tpu_custom_call.1} parent=1 // pred_region
      _
    $region101: #{tpu_custom_call.1} parent=1 // pred_fallthru
      _
    // Predicated region
    $region102: #{tpu_custom_call.1} parent=1 // pred_check
      _
    $region103: #{tpu_custom_call.1} parent=1 // pred_check_branch
      %116 = sbr.rel (0) target = $region105
    $region104: #{tpu_custom_call.1} parent=1 // pred_region
      _
    $region105: #{tpu_custom_call.1} parent=1 // pred_fallthru
      _
    // Predicated region
    $region106: #{tpu_custom_call.1} parent=1 // pred_check
      _
    $region107: #{tpu_custom_call.1} parent=1 // pred_check_branch
      %118 = sbr.rel (0) target = $region109
    $region108: #{tpu_custom_call.1} parent=1 // pred_region
      _
    $region109: #{tpu_custom_call.1} parent=1 // pred_fallthru
      _
    // Predicated region
    $region110: #{tpu_custom_call.1} parent=1 // pred_check
      _
    $region111: #{tpu_custom_call.1} parent=1 // pred_check_branch
      %120 = sbr.rel (0) target = $region113
    $region112: #{tpu_custom_call.1} parent=1 // pred_region
      _
    $region113: #{tpu_custom_call.1} parent=1 // pred_fallthru
      _
    // Predicated region
    $region114: #{tpu_custom_call.1} parent=1 // pred_check
      _
    $region115: #{tpu_custom_call.1} parent=1 // pred_check_branch
      %122 = sbr.rel (0) target = $region117
    $region116: #{tpu_custom_call.1} parent=1 // pred_region
      _
    $region117: #{tpu_custom_call.1} parent=1 // pred_fallthru
      _
    %v124 = vld [vmem:[%s1] sm:$0xff]
    %v125 = vld [vmem:[%s1 + $0x8] sm:$0xff]
    %v126 = vld [vmem:[%s3] sm:$0xff]
    %v127 = vld [vmem:[%s3 + $0x8] sm:$0xff]
    %v128 = vpack.c.bf16 %v125, %v124
    %v129 = vld [vmem:[%s7] sm:$0xf]
    %v130 = vld [vmem:[%s7 + $0x4] sm:$0xf]
    %v131 = vld [vmem:[%s7 + $0x8] sm:$0xf]
    %v132 = vld [vmem:[%s7 + $0xc] sm:$0xf]
    %v133 = vld [vmem:[%s9] sm:$0x1]
    %v135 = vlaneseq
    %v136 = vshrl.u32 %v135, 7
    %v137 = vsub.s32 0, %v136
    %v138 = vrot.slane %v133, %v137
    %v144 = vunpack.c.l.b16 %v129
    %v145 = vunpack.c.l.b16 %v130
    %v146 = vunpack.c.l.b16 %v131
    %v147 = vunpack.c.l.b16 %v132
    %v148 = vpack.c.b16 %v145, %v144
    %v149 = vpack.c.b16 %v147, %v146
    %vm152 = vcmask 261120
    %v154 = vsel %vm152, %v128, 0
    %156 = vmatprep.subr.bf16.mxu0 0
    %157 = vmatpush1.bf16.msra.mxu0 0
    %158 = vmatprep.subr.bf16.mxu0 0
    %159 = vmatpush1.bf16.msra.mxu0 0
    %160 = vmatprep.subr.bf16.mxu0 0
    %161 = vmatpush1.bf16.msra.mxu0 0
    %162 = vmatprep.subr.bf16.mxu0 0
    %163 = vmatpush1.bf16.msra.mxu0 0
    %164 = vmatprep.subr.bf16.mxu0 0
    %165 = vmatpush1.bf16.msra.mxu0 0
    %166 = vmatprep.subr.bf16.mxu0 0
    %167 = vmatpush1.bf16.msra.mxu0 0
    %168 = vmatprep.subr.bf16.mxu0 0
    %169 = vmatpush1.bf16.msra.mxu0 %v149
    %170 = vmatprep.subr.bf16.mxu0 0
    %171 = vmatpush1.bf16.msra.mxu0 %v148
    %172 = vmatprep.subr.bf16.mxu0 0
    %173 = vmatpush2.bf16.msra.mxu0 0
    %174 = vmatprep.subr.bf16.mxu0 0
    %175 = vmatpush2.bf16.msra.mxu0 0
    %176 = vmatprep.subr.bf16.mxu0 0
    %177 = vmatpush2.bf16.msra.mxu0 0
    %178 = vmatprep.subr.bf16.mxu0 0
    %179 = vmatpush2.bf16.msra.mxu0 0
    %180 = vmatprep.subr.bf16.mxu0 0
    %181 = vmatpush2.bf16.msra.mxu0 0
    %182 = vmatprep.subr.bf16.mxu0 0
    %183 = vmatpush2.bf16.msra.mxu0 0
    %184 = vmatprep.subr.bf16.mxu0 0
    %185 = vmatpush2.bf16.msra.mxu0 0
    %186 = vmatprep.subr.bf16.mxu0 0
    %187 = vmatpush2.bf16.msra.mxu0 0
    %188 = vmatprep.mubr.bf16.mxu0 0
    %189 = vmatmul.mubr.bf16.gmra.mxu0 %v154
    %v190 = vpop.f32.mrf.mxu0
    %v191 = vadd.f32 %v138, %v190
    %v192 = vpop.f32.mrf.mxu0
    %v193 = vpop.f32.mrf.mxu0
    %v194 = vadd.f32 %v138, %v193
    %v195 = vpop.f32.mrf.mxu0
    %196 = vdwg.mxu0
    %v197 = vld [vmem:[%s5] sm:$0xff]
    %v198 = vld [vmem:[%s5 + $0x8] sm:$0xff]
    %v199 = vld [vmem:[%s5 + $0x10] sm:$0xff]
    %v200 = vld [vmem:[%s5 + $0x18] sm:$0xff]
    %v201 = vmul.f32 %v191, 0.35355338
    %v202 = vmul.f32 %v194, 0.35355338
    %v203 = vpack.c.bf16 %v202, %v201
    %v205 = vunpack.c.l.b16 %v203
    %v206 = vunpack.c.h.b16 %v203
    %v207 = vpack.c.b16 %v205, %v205
    %v208 = vpack.c.b16 %v206, %v206
    %v209 = vpack.c.bf16 %v194, %v191
    %v211 = vunpack.c.l.b16 %v209
    %v212 = vunpack.c.h.b16 %v209
    %v213 = vpack.c.b16 %v211, %v211
    %214 = vrot.lane.b32.xlu0 %v213, 96
    %v215 = vpop.permute.xlu0 %214
    %vm216 = vcmask 64512
    %v218 = vsel %vm216, %v207, 0
    %v221 = vsel %vm216, %v215, 0
    %223 = vmatprep.subr.bf16.mxu0 0
    %224 = vmatpush1.bf16.xpose.msra.mxu0 0
    %225 = vmatprep.subr.bf16.mxu0 0
    %226 = vmatpush1.bf16.xpose.msra.mxu0 0
    %227 = vmatprep.subr.bf16.mxu0 0
    %228 = vmatpush1.bf16.xpose.msra.mxu0 0
    %229 = vmatprep.subr.bf16.mxu0 0
    %230 = vmatpush1.bf16.xpose.msra.mxu0 0
    %231 = vmatprep.subr.bf16.mxu0 0
    %232 = vmatpush1.bf16.xpose.msra.mxu0 0
    %233 = vmatprep.subr.bf16.mxu0 0
    %234 = vmatpush1.bf16.xpose.msra.mxu0 0
    %235 = vmatprep.subr.bf16.mxu0 0
    %236 = vmatpush1.bf16.xpose.msra.mxu0 0
    %237 = vmatprep.subr.bf16.mxu0 0
    %238 = vmatpush1.bf16.xpose.msra.mxu0 %v221
    %239 = vmatprep.subr.bf16.mxu0 0
    %240 = vmatpush2.bf16.xpose.msra.mxu0 0
    %241 = vmatprep.subr.bf16.mxu0 0
    %242 = vmatpush2.bf16.xpose.msra.mxu0 0
    %243 = vmatprep.subr.bf16.mxu0 0
    %244 = vmatpush2.bf16.xpose.msra.mxu0 0
    %245 = vmatprep.subr.bf16.mxu0 0
    %246 = vmatpush2.bf16.xpose.msra.mxu0 0
    %247 = vmatprep.subr.bf16.mxu0 0
    %248 = vmatpush2.bf16.xpose.msra.mxu0 0
    %249 = vmatprep.subr.bf16.mxu0 0
    %250 = vmatpush2.bf16.xpose.msra.mxu0 0
    %251 = vmatprep.subr.bf16.mxu0 0
    %252 = vmatpush2.bf16.xpose.msra.mxu0 0
    %253 = vmatprep.subr.bf16.mxu0 0
    %254 = vmatpush2.bf16.xpose.msra.mxu0 0
    %255 = vmatprep.mubr.bf16.mxu0 0
    %256 = vmatmul.mubr.bf16.gmra.mxu0 %v218
    %v257 = vpop.f32.mrf.mxu0
    %v258 = vadd.f32 0.0, %v257
    %v259 = vpop.f32.mrf.mxu0
    %v260 = vpop.f32.mrf.mxu0
    %v261 = vpop.f32.mrf.mxu0
    %262 = vdwg.mxu0
    %v263 = vpack.c.b16 %v212, %v212
    %264 = vrot.lane.b32.xlu0 %v263, 96
    %v265 = vpop.permute.xlu0 %264
    %v267 = vsel %vm216, %v208, 0
    %v270 = vsel %vm216, %v265, 0
    %272 = vmatprep.subr.bf16.mxu0 0
    %273 = vmatpush1.bf16.xpose.msra.mxu0 0
    %274 = vmatprep.subr.bf16.mxu0 0
    %275 = vmatpush1.bf16.xpose.msra.mxu0 0
    %276 = vmatprep.subr.bf16.mxu0 0
    %277 = vmatpush1.bf16.xpose.msra.mxu0 0
    %278 = vmatprep.subr.bf16.mxu0 0
    %279 = vmatpush1.bf16.xpose.msra.mxu0 0
    %280 = vmatprep.subr.bf16.mxu0 0
    %281 = vmatpush1.bf16.xpose.msra.mxu0 0
    %282 = vmatprep.subr.bf16.mxu0 0
    %283 = vmatpush1.bf16.xpose.msra.mxu0 0
    %284 = vmatprep.subr.bf16.mxu0 0
    %285 = vmatpush1.bf16.xpose.msra.mxu0 0
    %286 = vmatprep.subr.bf16.mxu0 0
    %287 = vmatpush1.bf16.xpose.msra.mxu0 %v270
    %288 = vmatprep.subr.bf16.mxu0 0
    %289 = vmatpush2.bf16.xpose.msra.mxu0 0
    %290 = vmatprep.subr.bf16.mxu0 0
    %291 = vmatpush2.bf16.xpose.msra.mxu0 0
    %292 = vmatprep.subr.bf16.mxu0 0
    %293 = vmatpush2.bf16.xpose.msra.mxu0 0
    %294 = vmatprep.subr.bf16.mxu0 0
    %295 = vmatpush2.bf16.xpose.msra.mxu0 0
    %296 = vmatprep.subr.bf16.mxu0 0
    %297 = vmatpush2.bf16.xpose.msra.mxu0 0
    %298 = vmatprep.subr.bf16.mxu0 0
    %299 = vmatpush2.bf16.xpose.msra.mxu0 0
    %300 = vmatprep.subr.bf16.mxu0 0
    %301 = vmatpush2.bf16.xpose.msra.mxu0 0
    %302 = vmatprep.subr.bf16.mxu0 0
    %303 = vmatpush2.bf16.xpose.msra.mxu0 0
    %304 = vmatprep.mubr.bf16.mxu0 0
    %305 = vmatmul.mubr.bf16.gmra.mxu0 %v267
    %v306 = vpop.f32.mrf.mxu0
    %v307 = vadd.f32 0.0, %v306
    %v308 = vpop.f32.mrf.mxu0
    %v309 = vpop.f32.mrf.mxu0
    %v310 = vpop.f32.mrf.mxu0
    %311 = vdwg.mxu0
    %312 = vrot.lane.b32.xlu0 %v207, 120
    %v313 = vpop.permute.xlu0 %312
    %314 = vrot.lane.b32.xlu0 %v213, 88
    %v315 = vpop.permute.xlu0 %314
    %v317 = vsel %vm216, %v313, 0
    %v320 = vsel %vm216, %v315, 0
    %322 = vmatprep.subr.bf16.mxu0 0
    %323 = vmatpush1.bf16.xpose.msra.mxu0 0
    %324 = vmatprep.subr.bf16.mxu0 0
    %325 = vmatpush1.bf16.xpose.msra.mxu0 0
    %326 = vmatprep.subr.bf16.mxu0 0
    %327 = vmatpush1.bf16.xpose.msra.mxu0 0
    %328 = vmatprep.subr.bf16.mxu0 0
    %329 = vmatpush1.bf16.xpose.msra.mxu0 0
    %330 = vmatprep.subr.bf16.mxu0 0
    %331 = vmatpush1.bf16.xpose.msra.mxu0 0
    %332 = vmatprep.subr.bf16.mxu0 0
    %333 = vmatpush1.bf16.xpose.msra.mxu0 0
    %334 = vmatprep.subr.bf16.mxu0 0
    %335 = vmatpush1.bf16.xpose.msra.mxu0 0
    %336 = vmatprep.subr.bf16.mxu0 0
    %337 = vmatpush1.bf16.xpose.msra.mxu0 %v320
    %338 = vmatprep.subr.bf16.mxu0 0
    %339 = vmatpush2.bf16.xpose.msra.mxu0 0
    %340 = vmatprep.subr.bf16.mxu0 0
    %341 = vmatpush2.bf16.xpose.msra.mxu0 0
    %342 = vmatprep.subr.bf16.mxu0 0
    %343 = vmatpush2.bf16.xpose.msra.mxu0 0
    %344 = vmatprep.subr.bf16.mxu0 0
    %345 = vmatpush2.bf16.xpose.msra.mxu0 0
    %346 = vmatprep.subr.bf16.mxu0 0
    %347 = vmatpush2.bf16.xpose.msra.mxu0 0
    %348 = vmatprep.subr.bf16.mxu0 0
    %349 = vmatpush2.bf16.xpose.msra.mxu0 0
    %350 = vmatprep.subr.bf16.mxu0 0
    %351 = vmatpush2.bf16.xpose.msra.mxu0 0
    %352 = vmatprep.subr.bf16.mxu0 0
    %353 = vmatpush2.bf16.xpose.msra.mxu0 0
    %354 = vmatprep.mubr.bf16.mxu0 0
    %355 = vmatmul.mubr.bf16.gmra.mxu0 %v317
    %v356 = vpop.f32.mrf.mxu0
    %v357 = vadd.f32 0.0, %v356
    %v358 = vpop.f32.mrf.mxu0
    %v359 = vpop.f32.mrf.mxu0
    %v360 = vpop.f32.mrf.mxu0
    %361 = vdwg.mxu0
    %362 = vrot.lane.b32.xlu0 %v208, 120
    %v363 = vpop.permute.xlu0 %362
    %364 = vrot.lane.b32.xlu0 %v263, 88
    %v365 = vpop.permute.xlu0 %364
    %v367 = vsel %vm216, %v363, 0
    %v370 = vsel %vm216, %v365, 0
    %372 = vmatprep.subr.bf16.mxu0 0
    %373 = vmatpush1.bf16.xpose.msra.mxu0 0
    %374 = vmatprep.subr.bf16.mxu0 0
    %375 = vmatpush1.bf16.xpose.msra.mxu0 0
    %376 = vmatprep.subr.bf16.mxu0 0
    %377 = vmatpush1.bf16.xpose.msra.mxu0 0
    %378 = vmatprep.subr.bf16.mxu0 0
    %379 = vmatpush1.bf16.xpose.msra.mxu0 0
    %380 = vmatprep.subr.bf16.mxu0 0
    %381 = vmatpush1.bf16.xpose.msra.mxu0 0
    %382 = vmatprep.subr.bf16.mxu0 0
    %383 = vmatpush1.bf16.xpose.msra.mxu0 0
    %384 = vmatprep.subr.bf16.mxu0 0
    %385 = vmatpush1.bf16.xpose.msra.mxu0 0
    %386 = vmatprep.subr.bf16.mxu0 0
    %387 = vmatpush1.bf16.xpose.msra.mxu0 %v370
    %388 = vmatprep.subr.bf16.mxu0 0
    %389 = vmatpush2.bf16.xpose.msra.mxu0 0
    %390 = vmatprep.subr.bf16.mxu0 0
    %391 = vmatpush2.bf16.xpose.msra.mxu0 0
    %392 = vmatprep.subr.bf16.mxu0 0
    %393 = vmatpush2.bf16.xpose.msra.mxu0 0
    %394 = vmatprep.subr.bf16.mxu0 0
    %395 = vmatpush2.bf16.xpose.msra.mxu0 0
    %396 = vmatprep.subr.bf16.mxu0 0
    %397 = vmatpush2.bf16.xpose.msra.mxu0 0
    %398 = vmatprep.subr.bf16.mxu0 0
    %399 = vmatpush2.bf16.xpose.msra.mxu0 0
    %400 = vmatprep.subr.bf16.mxu0 0
    %401 = vmatpush2.bf16.xpose.msra.mxu0 0
    %402 = vmatprep.subr.bf16.mxu0 0
    %403 = vmatpush2.bf16.xpose.msra.mxu0 0
    %404 = vmatprep.mubr.bf16.mxu0 0
    %405 = vmatmul.mubr.bf16.gmra.mxu0 %v367
    %v406 = vpop.f32.mrf.mxu0
    %v407 = vadd.f32 0.0, %v406
    %v408 = vpop.f32.mrf.mxu0
    %v409 = vpop.f32.mrf.mxu0
    %v410 = vpop.f32.mrf.mxu0
    %411 = vdwg.mxu0
    %412 = vrot.lane.b32.xlu0 %v207, 112
    %v413 = vpop.permute.xlu0 %412
    %414 = vrot.lane.b32.xlu0 %v213, 80
    %v415 = vpop.permute.xlu0 %414
    %v417 = vsel %vm216, %v413, 0
    %v420 = vsel %vm216, %v415, 0
    %422 = vmatprep.subr.bf16.mxu0 0
    %423 = vmatpush1.bf16.xpose.msra.mxu0 0
    %424 = vmatprep.subr.bf16.mxu0 0
    %425 = vmatpush1.bf16.xpose.msra.mxu0 0
    %426 = vmatprep.subr.bf16.mxu0 0
    %427 = vmatpush1.bf16.xpose.msra.mxu0 0
    %428 = vmatprep.subr.bf16.mxu0 0
    %429 = vmatpush1.bf16.xpose.msra.mxu0 0
    %430 = vmatprep.subr.bf16.mxu0 0
    %431 = vmatpush1.bf16.xpose.msra.mxu0 0
    %432 = vmatprep.subr.bf16.mxu0 0
    %433 = vmatpush1.bf16.xpose.msra.mxu0 0
    %434 = vmatprep.subr.bf16.mxu0 0
    %435 = vmatpush1.bf16.xpose.msra.mxu0 0
    %436 = vmatprep.subr.bf16.mxu0 0
    %437 = vmatpush1.bf16.xpose.msra.mxu0 %v420
    %438 = vmatprep.subr.bf16.mxu0 0
    %439 = vmatpush2.bf16.xpose.msra.mxu0 0
    %440 = vmatprep.subr.bf16.mxu0 0
    %441 = vmatpush2.bf16.xpose.msra.mxu0 0
    %442 = vmatprep.subr.bf16.mxu0 0
    %443 = vmatpush2.bf16.xpose.msra.mxu0 0
    %444 = vmatprep.subr.bf16.mxu0 0
    %445 = vmatpush2.bf16.xpose.msra.mxu0 0
    %446 = vmatprep.subr.bf16.mxu0 0
    %447 = vmatpush2.bf16.xpose.msra.mxu0 0
    %448 = vmatprep.subr.bf16.mxu0 0
    %449 = vmatpush2.bf16.xpose.msra.mxu0 0
    %450 = vmatprep.subr.bf16.mxu0 0
    %451 = vmatpush2.bf16.xpose.msra.mxu0 0
    %452 = vmatprep.subr.bf16.mxu0 0
    %453 = vmatpush2.bf16.xpose.msra.mxu0 0
    %454 = vmatprep.mubr.bf16.mxu0 0
    %455 = vmatmul.mubr.bf16.gmra.mxu0 %v417
    %v456 = vpop.f32.mrf.mxu0
    %v457 = vadd.f32 0.0, %v456
    %v458 = vpop.f32.mrf.mxu0
    %v459 = vpop.f32.mrf.mxu0
    %v460 = vpop.f32.mrf.mxu0
    %461 = vdwg.mxu0
    %462 = vrot.lane.b32.xlu0 %v208, 112
    %v463 = vpop.permute.xlu0 %462
    %464 = vrot.lane.b32.xlu0 %v263, 80
    %v465 = vpop.permute.xlu0 %464
    %v467 = vsel %vm216, %v463, 0
    %v470 = vsel %vm216, %v465, 0
    %472 = vmatprep.subr.bf16.mxu0 0
    %473 = vmatpush1.bf16.xpose.msra.mxu0 0
    %474 = vmatprep.subr.bf16.mxu0 0
    %475 = vmatpush1.bf16.xpose.msra.mxu0 0
    %476 = vmatprep.subr.bf16.mxu0 0
    %477 = vmatpush1.bf16.xpose.msra.mxu0 0
    %478 = vmatprep.subr.bf16.mxu0 0
    %479 = vmatpush1.bf16.xpose.msra.mxu0 0
    %480 = vmatprep.subr.bf16.mxu0 0
    %481 = vmatpush1.bf16.xpose.msra.mxu0 0
    %482 = vmatprep.subr.bf16.mxu0 0
    %483 = vmatpush1.bf16.xpose.msra.mxu0 0
    %484 = vmatprep.subr.bf16.mxu0 0
    %485 = vmatpush1.bf16.xpose.msra.mxu0 0
    %486 = vmatprep.subr.bf16.mxu0 0
    %487 = vmatpush1.bf16.xpose.msra.mxu0 %v470
    %488 = vmatprep.subr.bf16.mxu0 0
    %489 = vmatpush2.bf16.xpose.msra.mxu0 0
    %490 = vmatprep.subr.bf16.mxu0 0
    %491 = vmatpush2.bf16.xpose.msra.mxu0 0
    %492 = vmatprep.subr.bf16.mxu0 0
    %493 = vmatpush2.bf16.xpose.msra.mxu0 0
    %494 = vmatprep.subr.bf16.mxu0 0
    %495 = vmatpush2.bf16.xpose.msra.mxu0 0
    %496 = vmatprep.subr.bf16.mxu0 0
    %497 = vmatpush2.bf16.xpose.msra.mxu0 0
    %498 = vmatprep.subr.bf16.mxu0 0
    %499 = vmatpush2.bf16.xpose.msra.mxu0 0
    %500 = vmatprep.subr.bf16.mxu0 0
    %501 = vmatpush2.bf16.xpose.msra.mxu0 0
    %502 = vmatprep.subr.bf16.mxu0 0
    %503 = vmatpush2.bf16.xpose.msra.mxu0 0
    %504 = vmatprep.mubr.bf16.mxu0 0
    %505 = vmatmul.mubr.bf16.gmra.mxu0 %v467
    %v506 = vpop.f32.mrf.mxu0
    %v507 = vadd.f32 0.0, %v506
    %v508 = vpop.f32.mrf.mxu0
    %v509 = vpop.f32.mrf.mxu0
    %v510 = vpop.f32.mrf.mxu0
    %511 = vdwg.mxu0
    %512 = vrot.lane.b32.xlu0 %v207, 104
    %v513 = vpop.permute.xlu0 %512
    %514 = vrot.lane.b32.xlu0 %v213, 72
    %v515 = vpop.permute.xlu0 %514
    %v517 = vsel %vm216, %v513, 0
    %v520 = vsel %vm216, %v515, 0
    %522 = vmatprep.subr.bf16.mxu0 0
    %523 = vmatpush1.bf16.xpose.msra.mxu0 0
    %524 = vmatprep.subr.bf16.mxu0 0
    %525 = vmatpush1.bf16.xpose.msra.mxu0 0
    %526 = vmatprep.subr.bf16.mxu0 0
    %527 = vmatpush1.bf16.xpose.msra.mxu0 0
    %528 = vmatprep.subr.bf16.mxu0 0
    %529 = vmatpush1.bf16.xpose.msra.mxu0 0
    %530 = vmatprep.subr.bf16.mxu0 0
    %531 = vmatpush1.bf16.xpose.msra.mxu0 0
    %532 = vmatprep.subr.bf16.mxu0 0
    %533 = vmatpush1.bf16.xpose.msra.mxu0 0
    %534 = vmatprep.subr.bf16.mxu0 0
    %535 = vmatpush1.bf16.xpose.msra.mxu0 0
    %536 = vmatprep.subr.bf16.mxu0 0
    %537 = vmatpush1.bf16.xpose.msra.mxu0 %v520
    %538 = vmatprep.subr.bf16.mxu0 0
    %539 = vmatpush2.bf16.xpose.msra.mxu0 0
    %540 = vmatprep.subr.bf16.mxu0 0
    %541 = vmatpush2.bf16.xpose.msra.mxu0 0
    %542 = vmatprep.subr.bf16.mxu0 0
    %543 = vmatpush2.bf16.xpose.msra.mxu0 0
    %544 = vmatprep.subr.bf16.mxu0 0
    %545 = vmatpush2.bf16.xpose.msra.mxu0 0
    %546 = vmatprep.subr.bf16.mxu0 0
    %547 = vmatpush2.bf16.xpose.msra.mxu0 0
    %548 = vmatprep.subr.bf16.mxu0 0
    %549 = vmatpush2.bf16.xpose.msra.mxu0 0
    %550 = vmatprep.subr.bf16.mxu0 0
    %551 = vmatpush2.bf16.xpose.msra.mxu0 0
    %552 = vmatprep.subr.bf16.mxu0 0
    %553 = vmatpush2.bf16.xpose.msra.mxu0 0
    %554 = vmatprep.mubr.bf16.mxu0 0
    %555 = vmatmul.mubr.bf16.gmra.mxu0 %v517
    %v556 = vpop.f32.mrf.mxu0
    %v557 = vadd.f32 0.0, %v556
    %v558 = vpop.f32.mrf.mxu0
    %v559 = vpop.f32.mrf.mxu0
    %v560 = vpop.f32.mrf.mxu0
    %561 = vdwg.mxu0
    %562 = vrot.lane.b32.xlu0 %v208, 104
    %v563 = vpop.permute.xlu0 %562
    %564 = vrot.lane.b32.xlu0 %v263, 72
    %v565 = vpop.permute.xlu0 %564
    %v567 = vsel %vm216, %v563, 0
    %v570 = vsel %vm216, %v565, 0
    %572 = vmatprep.subr.bf16.mxu0 0
    %573 = vmatpush1.bf16.xpose.msra.mxu0 0
    %574 = vmatprep.subr.bf16.mxu0 0
    %575 = vmatpush1.bf16.xpose.msra.mxu0 0
    %576 = vmatprep.subr.bf16.mxu0 0
    %577 = vmatpush1.bf16.xpose.msra.mxu0 0
    %578 = vmatprep.subr.bf16.mxu0 0
    %579 = vmatpush1.bf16.xpose.msra.mxu0 0
    %580 = vmatprep.subr.bf16.mxu0 0
    %581 = vmatpush1.bf16.xpose.msra.mxu0 0
    %582 = vmatprep.subr.bf16.mxu0 0
    %583 = vmatpush1.bf16.xpose.msra.mxu0 0
    %584 = vmatprep.subr.bf16.mxu0 0
    %585 = vmatpush1.bf16.xpose.msra.mxu0 0
    %586 = vmatprep.subr.bf16.mxu0 0
    %587 = vmatpush1.bf16.xpose.msra.mxu0 %v570
    %588 = vmatprep.subr.bf16.mxu0 0
    %589 = vmatpush2.bf16.xpose.msra.mxu0 0
    %590 = vmatprep.subr.bf16.mxu0 0
    %591 = vmatpush2.bf16.xpose.msra.mxu0 0
    %592 = vmatprep.subr.bf16.mxu0 0
    %593 = vmatpush2.bf16.xpose.msra.mxu0 0
    %594 = vmatprep.subr.bf16.mxu0 0
    %595 = vmatpush2.bf16.xpose.msra.mxu0 0
    %596 = vmatprep.subr.bf16.mxu0 0
    %597 = vmatpush2.bf16.xpose.msra.mxu0 0
    %598 = vmatprep.subr.bf16.mxu0 0
    %599 = vmatpush2.bf16.xpose.msra.mxu0 0
    %600 = vmatprep.subr.bf16.mxu0 0
    %601 = vmatpush2.bf16.xpose.msra.mxu0 0
    %602 = vmatprep.subr.bf16.mxu0 0
    %603 = vmatpush2.bf16.xpose.msra.mxu0 0
    %604 = vmatprep.mubr.bf16.mxu0 0
    %605 = vmatmul.mubr.bf16.gmra.mxu0 %v567
    %v606 = vpop.f32.mrf.mxu0
    %v607 = vadd.f32 0.0, %v606
    %v608 = vpop.f32.mrf.mxu0
    %v609 = vpop.f32.mrf.mxu0
    %v610 = vpop.f32.mrf.mxu0
    %611 = vdwg.mxu0
    %v612 = vadd.f32 %v258, %v197
    %v613 = vadd.f32 %v357, %v198
    %v614 = vadd.f32 %v457, %v199
    %v615 = vadd.f32 %v557, %v200
    %v616 = vadd.f32 %v307, %v197
    %v617 = vadd.f32 %v407, %v198
    %v618 = vadd.f32 %v507, %v199
    %v619 = vadd.f32 %v607, %v200
    %v620 = vsel %vm216, %v612, -inf
    %621 = vmax.xlane.f32.xlu0 %v620
    %v622 = vpop.xlane.xlu0 %621
    %v623 = vsel %vm216, %v613, -inf
    %624 = vmax.xlane.f32.xlu0 %v623
    %v625 = vpop.xlane.xlu0 %624
    %v626 = vsel %vm216, %v614, -inf
    %627 = vmax.xlane.f32.xlu0 %v626
    %v628 = vpop.xlane.xlu0 %627
    %v629 = vsel %vm216, %v615, -inf
    %630 = vmax.xlane.f32.xlu0 %v629
    %v631 = vpop.xlane.xlu0 %630
    %v632 = vsel %vm216, %v616, -inf
    %633 = vmax.xlane.f32.xlu0 %v632
    %v634 = vpop.xlane.xlu0 %633
    %v635 = vsel %vm216, %v617, -inf
    %636 = vmax.xlane.f32.xlu0 %v635
    %v637 = vpop.xlane.xlu0 %636
    %v638 = vsel %vm216, %v618, -inf
    %639 = vmax.xlane.f32.xlu0 %v638
    %v640 = vpop.xlane.xlu0 %639
    %v641 = vsel %vm216, %v619, -inf
    %642 = vmax.xlane.f32.xlu0 %v641
    %v643 = vpop.xlane.xlu0 %642
    %v644 = vsub.f32 %v612, %v622
    %v645 = vsub.f32 %v613, %v625
    %v646 = vsub.f32 %v614, %v628
    %v647 = vsub.f32 %v615, %v631
    %v648 = vsub.f32 %v616, %v634
    %v649 = vsub.f32 %v617, %v637
    %v650 = vsub.f32 %v618, %v640
    %v651 = vsub.f32 %v619, %v643
    %v652 = vmul.f32 %v644, 1.442695
    %v653 = vpow.pop %v652
    %v654 = vmul.f32 %v645, 1.442695
    %v655 = vpow.pop %v654
    %v656 = vmul.f32 %v646, 1.442695
    %v657 = vpow.pop %v656
    %v658 = vmul.f32 %v647, 1.442695
    %v659 = vpow.pop %v658
    %v660 = vmul.f32 %v648, 1.442695
    %v661 = vpow.pop %v660
    %v662 = vmul.f32 %v649, 1.442695
    %v663 = vpow.pop %v662
    %v664 = vmul.f32 %v650, 1.442695
    %v665 = vpow.pop %v664
    %v666 = vmul.f32 %v651, 1.442695
    %v667 = vpow.pop %v666
    %v668 = vsel %vm216, %v653, 0.0
    %669 = vadd.xlane.f32.xlu0 %v668
    %v670 = vpop.xlane.xlu0 %669
    %v671 = vsel %vm216, %v655, 0.0
    %672 = vadd.xlane.f32.xlu0 %v671
    %v673 = vpop.xlane.xlu0 %672
    %v674 = vsel %vm216, %v657, 0.0
    %675 = vadd.xlane.f32.xlu0 %v674
    %v676 = vpop.xlane.xlu0 %675
    %v677 = vsel %vm216, %v659, 0.0
    %678 = vadd.xlane.f32.xlu0 %v677
    %v679 = vpop.xlane.xlu0 %678
    %v680 = vsel %vm216, %v661, 0.0
    %681 = vadd.xlane.f32.xlu0 %v680
    %v682 = vpop.xlane.xlu0 %681
    %v683 = vsel %vm216, %v663, 0.0
    %684 = vadd.xlane.f32.xlu0 %v683
    %v685 = vpop.xlane.xlu0 %684
    %v686 = vsel %vm216, %v665, 0.0
    %687 = vadd.xlane.f32.xlu0 %v686
    %v688 = vpop.xlane.xlu0 %687
    %v689 = vsel %vm216, %v667, 0.0
    %690 = vadd.xlane.f32.xlu0 %v689
    %v691 = vpop.xlane.xlu0 %690
    %v692 = vrcp.pop %v670
    %v693 = vrcp.pop %v673
    %v694 = vrcp.pop %v676
    %v695 = vrcp.pop %v679
    %v696 = vrcp.pop %v682
    %v697 = vrcp.pop %v685
    %v698 = vrcp.pop %v688
    %v699 = vrcp.pop %v691
    %v700 = vmul.f32 %v653, %v692
    %v701 = vmul.f32 %v655, %v693
    %v702 = vmul.f32 %v657, %v694
    %v703 = vmul.f32 %v659, %v695
    %v704 = vmul.f32 %v661, %v696
    %v705 = vmul.f32 %v663, %v697
    %v706 = vmul.f32 %v665, %v698
    %v707 = vmul.f32 %v667, %v699
    %v708 = vpack.c.bf16 %v700, %v700
    %v709 = vpack.c.bf16 %v704, %v704
    %710 = vrot.lane.b32.xlu0 %v213, 64
    %v711 = vpop.permute.xlu0 %710
    %v713 = vsel %vm216, %v708, 0
    %vm715 = vcmask 1043456
    %v717 = vsel %vm715, %v711, 0
    %719 = vmatprep.subr.bf16.mxu0 0
    %720 = vmatpush1.bf16.msra.mxu0 0
    %721 = vmatprep.subr.bf16.mxu0 0
    %722 = vmatpush1.bf16.msra.mxu0 0
    %723 = vmatprep.subr.bf16.mxu0 0
    %724 = vmatpush1.bf16.msra.mxu0 0
    %725 = vmatprep.subr.bf16.mxu0 0
    %726 = vmatpush1.bf16.msra.mxu0 0
    %727 = vmatprep.subr.bf16.mxu0 0
    %728 = vmatpush1.bf16.msra.mxu0 0
    %729 = vmatprep.subr.bf16.mxu0 0
    %730 = vmatpush1.bf16.msra.mxu0 0
    %731 = vmatprep.subr.bf16.mxu0 0
    %732 = vmatpush1.bf16.msra.mxu0 0
    %733 = vmatprep.subr.bf16.mxu0 0
    %734 = vmatpush1.bf16.msra.mxu0 %v717
    %735 = vmatprep.subr.bf16.mxu0 0
    %736 = vmatpush2.bf16.msra.mxu0 0
    %737 = vmatprep.subr.bf16.mxu0 0
    %738 = vmatpush2.bf16.msra.mxu0 0
    %739 = vmatprep.subr.bf16.mxu0 0
    %740 = vmatpush2.bf16.msra.mxu0 0
    %741 = vmatprep.subr.bf16.mxu0 0
    %742 = vmatpush2.bf16.msra.mxu0 0
    %743 = vmatprep.subr.bf16.mxu0 0
    %744 = vmatpush2.bf16.msra.mxu0 0
    %745 = vmatprep.subr.bf16.mxu0 0
    %746 = vmatpush2.bf16.msra.mxu0 0
    %747 = vmatprep.subr.bf16.mxu0 0
    %748 = vmatpush2.bf16.msra.mxu0 0
    %749 = vmatprep.subr.bf16.mxu0 0
    %750 = vmatpush2.bf16.msra.mxu0 0
    %751 = vmatprep.mubr.bf16.mxu0 0
    %752 = vmatmul.mubr.bf16.gmra.mxu0 %v713
    %v753 = vpop.f32.mrf.mxu0
    %v754 = vadd.f32 0.0, %v753
    %v755 = vpop.f32.mrf.mxu0
    %v756 = vpop.f32.mrf.mxu0
    %v757 = vpop.f32.mrf.mxu0
    %758 = vdwg.mxu0
    %759 = vrot.lane.b32.xlu0 %v263, 64
    %v760 = vpop.permute.xlu0 %759
    %v762 = vsel %vm216, %v709, 0
    %v765 = vsel %vm715, %v760, 0
    %767 = vmatprep.subr.bf16.mxu0 0
    %768 = vmatpush1.bf16.msra.mxu0 0
    %769 = vmatprep.subr.bf16.mxu0 0
    %770 = vmatpush1.bf16.msra.mxu0 0
    %771 = vmatprep.subr.bf16.mxu0 0
    %772 = vmatpush1.bf16.msra.mxu0 0
    %773 = vmatprep.subr.bf16.mxu0 0
    %774 = vmatpush1.bf16.msra.mxu0 0
    %775 = vmatprep.subr.bf16.mxu0 0
    %776 = vmatpush1.bf16.msra.mxu0 0
    %777 = vmatprep.subr.bf16.mxu0 0
    %778 = vmatpush1.bf16.msra.mxu0 0
    %779 = vmatprep.subr.bf16.mxu0 0
    %780 = vmatpush1.bf16.msra.mxu0 0
    %781 = vmatprep.subr.bf16.mxu0 0
    %782 = vmatpush1.bf16.msra.mxu0 %v765
    %783 = vmatprep.subr.bf16.mxu0 0
    %784 = vmatpush2.bf16.msra.mxu0 0
    %785 = vmatprep.subr.bf16.mxu0 0
    %786 = vmatpush2.bf16.msra.mxu0 0
    %787 = vmatprep.subr.bf16.mxu0 0
    %788 = vmatpush2.bf16.msra.mxu0 0
    %789 = vmatprep.subr.bf16.mxu0 0
    %790 = vmatpush2.bf16.msra.mxu0 0
    %791 = vmatprep.subr.bf16.mxu0 0
    %792 = vmatpush2.bf16.msra.mxu0 0
    %793 = vmatprep.subr.bf16.mxu0 0
    %794 = vmatpush2.bf16.msra.mxu0 0
    %795 = vmatprep.subr.bf16.mxu0 0
    %796 = vmatpush2.bf16.msra.mxu0 0
    %797 = vmatprep.subr.bf16.mxu0 0
    %798 = vmatpush2.bf16.msra.mxu0 0
    %799 = vmatprep.mubr.bf16.mxu0 0
    %800 = vmatmul.mubr.bf16.gmra.mxu0 %v762
    %v801 = vpop.f32.mrf.mxu0
    %v802 = vadd.f32 0.0, %v801
    %v803 = vpop.f32.mrf.mxu0
    %v804 = vpop.f32.mrf.mxu0
    %v805 = vpop.f32.mrf.mxu0
    %806 = vdwg.mxu0
    %v807 = vpack.c.bf16 %v701, %v701
    %v808 = vpack.c.bf16 %v705, %v705
    %809 = vrot.lane.b32.xlu0 %v213, 56
    %v810 = vpop.permute.xlu0 %809
    %v812 = vsel %vm216, %v807, 0
    %v815 = vsel %vm715, %v810, 0
    %817 = vmatprep.subr.bf16.mxu0 0
    %818 = vmatpush1.bf16.msra.mxu0 0
    %819 = vmatprep.subr.bf16.mxu0 0
    %820 = vmatpush1.bf16.msra.mxu0 0
    %821 = vmatprep.subr.bf16.mxu0 0
    %822 = vmatpush1.bf16.msra.mxu0 0
    %823 = vmatprep.subr.bf16.mxu0 0
    %824 = vmatpush1.bf16.msra.mxu0 0
    %825 = vmatprep.subr.bf16.mxu0 0
    %826 = vmatpush1.bf16.msra.mxu0 0
    %827 = vmatprep.subr.bf16.mxu0 0
    %828 = vmatpush1.bf16.msra.mxu0 0
    %829 = vmatprep.subr.bf16.mxu0 0
    %830 = vmatpush1.bf16.msra.mxu0 0
    %831 = vmatprep.subr.bf16.mxu0 0
    %832 = vmatpush1.bf16.msra.mxu0 %v815
    %833 = vmatprep.subr.bf16.mxu0 0
    %834 = vmatpush2.bf16.msra.mxu0 0
    %835 = vmatprep.subr.bf16.mxu0 0
    %836 = vmatpush2.bf16.msra.mxu0 0
    %837 = vmatprep.subr.bf16.mxu0 0
    %838 = vmatpush2.bf16.msra.mxu0 0
    %839 = vmatprep.subr.bf16.mxu0 0
    %840 = vmatpush2.bf16.msra.mxu0 0
    %841 = vmatprep.subr.bf16.mxu0 0
    %842 = vmatpush2.bf16.msra.mxu0 0
    %843 = vmatprep.subr.bf16.mxu0 0
    %844 = vmatpush2.bf16.msra.mxu0 0
    %845 = vmatprep.subr.bf16.mxu0 0
    %846 = vmatpush2.bf16.msra.mxu0 0
    %847 = vmatprep.subr.bf16.mxu0 0
    %848 = vmatpush2.bf16.msra.mxu0 0
    %849 = vmatprep.mubr.bf16.mxu0 0
    %850 = vmatmul.mubr.bf16.gmra.mxu0 %v812
    %v851 = vpop.f32.mrf.mxu0
    %v852 = vadd.f32 0.0, %v851
    %v853 = vpop.f32.mrf.mxu0
    %v854 = vpop.f32.mrf.mxu0
    %v855 = vpop.f32.mrf.mxu0
    %856 = vdwg.mxu0
    %857 = vrot.lane.b32.xlu0 %v263, 56
    %v858 = vpop.permute.xlu0 %857
    %v860 = vsel %vm216, %v808, 0
    %v863 = vsel %vm715, %v858, 0
    %865 = vmatprep.subr.bf16.mxu0 0
    %866 = vmatpush1.bf16.msra.mxu0 0
    %867 = vmatprep.subr.bf16.mxu0 0
    %868 = vmatpush1.bf16.msra.mxu0 0
    %869 = vmatprep.subr.bf16.mxu0 0
    %870 = vmatpush1.bf16.msra.mxu0 0
    %871 = vmatprep.subr.bf16.mxu0 0
    %872 = vmatpush1.bf16.msra.mxu0 0
    %873 = vmatprep.subr.bf16.mxu0 0
    %874 = vmatpush1.bf16.msra.mxu0 0
    %875 = vmatprep.subr.bf16.mxu0 0
    %876 = vmatpush1.bf16.msra.mxu0 0
    %877 = vmatprep.subr.bf16.mxu0 0
    %878 = vmatpush1.bf16.msra.mxu0 0
    %879 = vmatprep.subr.bf16.mxu0 0
    %880 = vmatpush1.bf16.msra.mxu0 %v863
    %881 = vmatprep.subr.bf16.mxu0 0
    %882 = vmatpush2.bf16.msra.mxu0 0
    %883 = vmatprep.subr.bf16.mxu0 0
    %884 = vmatpush2.bf16.msra.mxu0 0
    %885 = vmatprep.subr.bf16.mxu0 0
    %886 = vmatpush2.bf16.msra.mxu0 0
    %887 = vmatprep.subr.bf16.mxu0 0
    %888 = vmatpush2.bf16.msra.mxu0 0
    %889 = vmatprep.subr.bf16.mxu0 0
    %890 = vmatpush2.bf16.msra.mxu0 0
    %891 = vmatprep.subr.bf16.mxu0 0
    %892 = vmatpush2.bf16.msra.mxu0 0
    %893 = vmatprep.subr.bf16.mxu0 0
    %894 = vmatpush2.bf16.msra.mxu0 0
    %895 = vmatprep.subr.bf16.mxu0 0
    %896 = vmatpush2.bf16.msra.mxu0 0
    %897 = vmatprep.mubr.bf16.mxu0 0
    %898 = vmatmul.mubr.bf16.gmra.mxu0 %v860
    %v899 = vpop.f32.mrf.mxu0
    %v900 = vadd.f32 0.0, %v899
    %v901 = vpop.f32.mrf.mxu0
    %v902 = vpop.f32.mrf.mxu0
    %v903 = vpop.f32.mrf.mxu0
    %904 = vdwg.mxu0
    %v905 = vpack.c.bf16 %v702, %v702
    %v906 = vpack.c.bf16 %v706, %v706
    %907 = vrot.lane.b32.xlu0 %v213, 48
    %v908 = vpop.permute.xlu0 %907
    %v910 = vsel %vm216, %v905, 0
    %v913 = vsel %vm715, %v908, 0
    %915 = vmatprep.subr.bf16.mxu0 0
    %916 = vmatpush1.bf16.msra.mxu0 0
    %917 = vmatprep.subr.bf16.mxu0 0
    %918 = vmatpush1.bf16.msra.mxu0 0
    %919 = vmatprep.subr.bf16.mxu0 0
    %920 = vmatpush1.bf16.msra.mxu0 0
    %921 = vmatprep.subr.bf16.mxu0 0
    %922 = vmatpush1.bf16.msra.mxu0 0
    %923 = vmatprep.subr.bf16.mxu0 0
    %924 = vmatpush1.bf16.msra.mxu0 0
    %925 = vmatprep.subr.bf16.mxu0 0
    %926 = vmatpush1.bf16.msra.mxu0 0
    %927 = vmatprep.subr.bf16.mxu0 0
    %928 = vmatpush1.bf16.msra.mxu0 0
    %929 = vmatprep.subr.bf16.mxu0 0
    %930 = vmatpush1.bf16.msra.mxu0 %v913
    %931 = vmatprep.subr.bf16.mxu0 0
    %932 = vmatpush2.bf16.msra.mxu0 0
    %933 = vmatprep.subr.bf16.mxu0 0
    %934 = vmatpush2.bf16.msra.mxu0 0
    %935 = vmatprep.subr.bf16.mxu0 0
    %936 = vmatpush2.bf16.msra.mxu0 0
    %937 = vmatprep.subr.bf16.mxu0 0
    %938 = vmatpush2.bf16.msra.mxu0 0
    %939 = vmatprep.subr.bf16.mxu0 0
    %940 = vmatpush2.bf16.msra.mxu0 0
    %941 = vmatprep.subr.bf16.mxu0 0
    %942 = vmatpush2.bf16.msra.mxu0 0
    %943 = vmatprep.subr.bf16.mxu0 0
    %944 = vmatpush2.bf16.msra.mxu0 0
    %945 = vmatprep.subr.bf16.mxu0 0
    %946 = vmatpush2.bf16.msra.mxu0 0
    %947 = vmatprep.mubr.bf16.mxu0 0
    %948 = vmatmul.mubr.bf16.gmra.mxu0 %v910
    %v949 = vpop.f32.mrf.mxu0
    %v950 = vadd.f32 0.0, %v949
    %v951 = vpop.f32.mrf.mxu0
    %v952 = vpop.f32.mrf.mxu0
    %v953 = vpop.f32.mrf.mxu0
    %954 = vdwg.mxu0
    %955 = vrot.lane.b32.xlu0 %v263, 48
    %v956 = vpop.permute.xlu0 %955
    %v958 = vsel %vm216, %v906, 0
    %v961 = vsel %vm715, %v956, 0
    %963 = vmatprep.subr.bf16.mxu0 0
    %964 = vmatpush1.bf16.msra.mxu0 0
    %965 = vmatprep.subr.bf16.mxu0 0
    %966 = vmatpush1.bf16.msra.mxu0 0
    %967 = vmatprep.subr.bf16.mxu0 0
    %968 = vmatpush1.bf16.msra.mxu0 0
    %969 = vmatprep.subr.bf16.mxu0 0
    %970 = vmatpush1.bf16.msra.mxu0 0
    %971 = vmatprep.subr.bf16.mxu0 0
    %972 = vmatpush1.bf16.msra.mxu0 0
    %973 = vmatprep.subr.bf16.mxu0 0
    %974 = vmatpush1.bf16.msra.mxu0 0
    %975 = vmatprep.subr.bf16.mxu0 0
    %976 = vmatpush1.bf16.msra.mxu0 0
    %977 = vmatprep.subr.bf16.mxu0 0
    %978 = vmatpush1.bf16.msra.mxu0 %v961
    %979 = vmatprep.subr.bf16.mxu0 0
    %980 = vmatpush2.bf16.msra.mxu0 0
    %981 = vmatprep.subr.bf16.mxu0 0
    %982 = vmatpush2.bf16.msra.mxu0 0
    %983 = vmatprep.subr.bf16.mxu0 0
    %984 = vmatpush2.bf16.msra.mxu0 0
    %985 = vmatprep.subr.bf16.mxu0 0
    %986 = vmatpush2.bf16.msra.mxu0 0
    %987 = vmatprep.subr.bf16.mxu0 0
    %988 = vmatpush2.bf16.msra.mxu0 0
    %989 = vmatprep.subr.bf16.mxu0 0
    %990 = vmatpush2.bf16.msra.mxu0 0
    %991 = vmatprep.subr.bf16.mxu0 0
    %992 = vmatpush2.bf16.msra.mxu0 0
    %993 = vmatprep.subr.bf16.mxu0 0
    %994 = vmatpush2.bf16.msra.mxu0 0
    %995 = vmatprep.mubr.bf16.mxu0 0
    %996 = vmatmul.mubr.bf16.gmra.mxu0 %v958
    %v997 = vpop.f32.mrf.mxu0
    %v998 = vadd.f32 0.0, %v997
    %v999 = vpop.f32.mrf.mxu0
    %v1000 = vpop.f32.mrf.mxu0
    %v1001 = vpop.f32.mrf.mxu0
    %1002 = vdwg.mxu0
    %v1003 = vpack.c.bf16 %v703, %v703
    %v1004 = vpack.c.bf16 %v707, %v707
    %1005 = vrot.lane.b32.xlu0 %v213, 40
    %v1006 = vpop.permute.xlu0 %1005
    %v1008 = vsel %vm216, %v1003, 0
    %v1011 = vsel %vm715, %v1006, 0
    %1013 = vmatprep.subr.bf16.mxu0 0
    %1014 = vmatpush1.bf16.msra.mxu0 0
    %1015 = vmatprep.subr.bf16.mxu0 0
    %1016 = vmatpush1.bf16.msra.mxu0 0
    %1017 = vmatprep.subr.bf16.mxu0 0
    %1018 = vmatpush1.bf16.msra.mxu0 0
    %1019 = vmatprep.subr.bf16.mxu0 0
    %1020 = vmatpush1.bf16.msra.mxu0 0
    %1021 = vmatprep.subr.bf16.mxu0 0
    %1022 = vmatpush1.bf16.msra.mxu0 0
    %1023 = vmatprep.subr.bf16.mxu0 0
    %1024 = vmatpush1.bf16.msra.mxu0 0
    %1025 = vmatprep.subr.bf16.mxu0 0
    %1026 = vmatpush1.bf16.msra.mxu0 0
    %1027 = vmatprep.subr.bf16.mxu0 0
    %1028 = vmatpush1.bf16.msra.mxu0 %v1011
    %1029 = vmatprep.subr.bf16.mxu0 0
    %1030 = vmatpush2.bf16.msra.mxu0 0
    %1031 = vmatprep.subr.bf16.mxu0 0
    %1032 = vmatpush2.bf16.msra.mxu0 0
    %1033 = vmatprep.subr.bf16.mxu0 0
    %1034 = vmatpush2.bf16.msra.mxu0 0
    %1035 = vmatprep.subr.bf16.mxu0 0
    %1036 = vmatpush2.bf16.msra.mxu0 0
    %1037 = vmatprep.subr.bf16.mxu0 0
    %1038 = vmatpush2.bf16.msra.mxu0 0
    %1039 = vmatprep.subr.bf16.mxu0 0
    %1040 = vmatpush2.bf16.msra.mxu0 0
    %1041 = vmatprep.subr.bf16.mxu0 0
    %1042 = vmatpush2.bf16.msra.mxu0 0
    %1043 = vmatprep.subr.bf16.mxu0 0
    %1044 = vmatpush2.bf16.msra.mxu0 0
    %1045 = vmatprep.mubr.bf16.mxu0 0
    %1046 = vmatmul.mubr.bf16.gmra.mxu0 %v1008
    %v1047 = vpop.f32.mrf.mxu0
    %v1048 = vadd.f32 0.0, %v1047
    %v1049 = vpop.f32.mrf.mxu0
    %v1050 = vpop.f32.mrf.mxu0
    %v1051 = vpop.f32.mrf.mxu0
    %1052 = vdwg.mxu0
    %1053 = vrot.lane.b32.xlu0 %v263, 40
    %v1054 = vpop.permute.xlu0 %1053
    %v1056 = vsel %vm216, %v1004, 0
    %v1059 = vsel %vm715, %v1054, 0
    %1061 = vmatprep.subr.bf16.mxu0 0
    %1062 = vmatpush1.bf16.msra.mxu0 0
    %1063 = vmatprep.subr.bf16.mxu0 0
    %1064 = vmatpush1.bf16.msra.mxu0 0
    %1065 = vmatprep.subr.bf16.mxu0 0
    %1066 = vmatpush1.bf16.msra.mxu0 0
    %1067 = vmatprep.subr.bf16.mxu0 0
    %1068 = vmatpush1.bf16.msra.mxu0 0
    %1069 = vmatprep.subr.bf16.mxu0 0
    %1070 = vmatpush1.bf16.msra.mxu0 0
    %1071 = vmatprep.subr.bf16.mxu0 0
    %1072 = vmatpush1.bf16.msra.mxu0 0
    %1073 = vmatprep.subr.bf16.mxu0 0
    %1074 = vmatpush1.bf16.msra.mxu0 0
    %1075 = vmatprep.subr.bf16.mxu0 0
    %1076 = vmatpush1.bf16.msra.mxu0 %v1059
    %1077 = vmatprep.subr.bf16.mxu0 0
    %1078 = vmatpush2.bf16.msra.mxu0 0
    %1079 = vmatprep.subr.bf16.mxu0 0
    %1080 = vmatpush2.bf16.msra.mxu0 0
    %1081 = vmatprep.subr.bf16.mxu0 0
    %1082 = vmatpush2.bf16.msra.mxu0 0
    %1083 = vmatprep.subr.bf16.mxu0 0
    %1084 = vmatpush2.bf16.msra.mxu0 0
    %1085 = vmatprep.subr.bf16.mxu0 0
    %1086 = vmatpush2.bf16.msra.mxu0 0
    %1087 = vmatprep.subr.bf16.mxu0 0
    %1088 = vmatpush2.bf16.msra.mxu0 0
    %1089 = vmatprep.subr.bf16.mxu0 0
    %1090 = vmatpush2.bf16.msra.mxu0 0
    %1091 = vmatprep.subr.bf16.mxu0 0
    %1092 = vmatpush2.bf16.msra.mxu0 0
    %1093 = vmatprep.mubr.bf16.mxu0 0
    %1094 = vmatmul.mubr.bf16.gmra.mxu0 %v1056
    %v1095 = vpop.f32.mrf.mxu0
    %v1096 = vadd.f32 0.0, %v1095
    %v1097 = vpop.f32.mrf.mxu0
    %v1098 = vpop.f32.mrf.mxu0
    %v1099 = vpop.f32.mrf.mxu0
    %1100 = vdwg.mxu0
    %1103 = vrot.lane.b32.xlu0 %v852, 8
    %v1104 = vpop.permute.xlu0 %1103
    %1105 = vrot.lane.b32.xlu0 %v900, 8
    %v1106 = vpop.permute.xlu0 %1105
    %1111 = vrot.lane.b32.xlu0 %v950, 16
    %v1112 = vpop.permute.xlu0 %1111
    %1113 = vrot.lane.b32.xlu0 %v998, 16
    %v1114 = vpop.permute.xlu0 %1113
    %1119 = vrot.lane.b32.xlu0 %v1048, 24
    %v1120 = vpop.permute.xlu0 %1119
    %1121 = vrot.lane.b32.xlu0 %v1096, 24
    %v1122 = vpop.permute.xlu0 %1121
    %v1125 = vsel %vm216, %v754, %v1104
    %v1126 = vsel %vm216, %v802, %v1106
    %vm1127 = vcmask 130048
    %v1128 = vsel %vm1127, %v1125, %v1112
    %v1129 = vsel %vm1127, %v1126, %v1114
    %vm1130 = vcmask 195584
    %v1131 = vsel %vm1130, %v1128, %v1120
    %v1132 = vsel %vm1130, %v1129, %v1122
    %v1133 = vpack.c.bf16 %v1132, %v1131
    %v1134 = vld [vmem:[%s11] sm:$0xf]
    %v1135 = vld [vmem:[%s11 + $0x4] sm:$0xf]
    %v1136 = vld [vmem:[%s11 + $0x8] sm:$0xf]
    %v1137 = vld [vmem:[%s11 + $0xc] sm:$0xf]
    %v1138 = vld [vmem:[%s13] sm:$0x1]
    %v1140 = vlaneseq
    %v1141 = vshrl.u32 %v1140, 7
    %v1142 = vsub.s32 0, %v1141
    %v1143 = vrot.slane %v1138, %v1142
    %v1149 = vunpack.c.l.b16 %v1134
    %v1150 = vunpack.c.l.b16 %v1135
    %v1151 = vunpack.c.l.b16 %v1136
    %v1152 = vunpack.c.l.b16 %v1137
    %v1153 = vpack.c.b16 %v1150, %v1149
    %v1154 = vpack.c.b16 %v1152, %v1151
    %v1158 = vsel %vm152, %v1133, 0
    %1160 = vmatprep.subr.bf16.mxu0 0
    %1161 = vmatpush1.bf16.msra.mxu0 0
    %1162 = vmatprep.subr.bf16.mxu0 0
    %1163 = vmatpush1.bf16.msra.mxu0 0
    %1164 = vmatprep.subr.bf16.mxu0 0
    %1165 = vmatpush1.bf16.msra.mxu0 0
    %1166 = vmatprep.subr.bf16.mxu0 0
    %1167 = vmatpush1.bf16.msra.mxu0 0
    %1168 = vmatprep.subr.bf16.mxu0 0
    %1169 = vmatpush1.bf16.msra.mxu0 0
    %1170 = vmatprep.subr.bf16.mxu0 0
    %1171 = vmatpush1.bf16.msra.mxu0 0
    %1172 = vmatprep.subr.bf16.mxu0 0
    %1173 = vmatpush1.bf16.msra.mxu0 %v1154
    %1174 = vmatprep.subr.bf16.mxu0 0
    %1175 = vmatpush1.bf16.msra.mxu0 %v1153
    %1176 = vmatprep.subr.bf16.mxu0 0
    %1177 = vmatpush2.bf16.msra.mxu0 0
    %1178 = vmatprep.subr.bf16.mxu0 0
    %1179 = vmatpush2.bf16.msra.mxu0 0
    %1180 = vmatprep.subr.bf16.mxu0 0
    %1181 = vmatpush2.bf16.msra.mxu0 0
    %1182 = vmatprep.subr.bf16.mxu0 0
    %1183 = vmatpush2.bf16.msra.mxu0 0
    %1184 = vmatprep.subr.bf16.mxu0 0
    %1185 = vmatpush2.bf16.msra.mxu0 0
    %1186 = vmatprep.subr.bf16.mxu0 0
    %1187 = vmatpush2.bf16.msra.mxu0 0
    %1188 = vmatprep.subr.bf16.mxu0 0
    %1189 = vmatpush2.bf16.msra.mxu0 0
    %1190 = vmatprep.subr.bf16.mxu0 0
    %1191 = vmatpush2.bf16.msra.mxu0 0
    %1192 = vmatprep.mubr.bf16.mxu0 0
    %1193 = vmatmul.mubr.bf16.gmra.mxu0 %v1158
    %v1194 = vpop.f32.mrf.mxu0
    %v1195 = vadd.f32 %v1143, %v1194
    %v1196 = vpop.f32.mrf.mxu0
    %v1197 = vpop.f32.mrf.mxu0
    %v1198 = vadd.f32 %v1143, %v1197
    %v1199 = vpop.f32.mrf.mxu0
    %1200 = vdwg.mxu0
    %v1201 = vadd.f32 %v1195, %v124
    %v1202 = vadd.f32 %v1198, %v125
    %v1203 = vld [vmem:[%s15] sm:$0x1]
    %v1204 = vld [vmem:[%s17] sm:$0x1]
    %v1205 = vsel %vm152, %v1201, 0.0
    %1206 = vadd.xlane.f32.xlu0 %v1205
    %v1207 = vpop.xlane.xlu0 %1206
    %v1208 = vsel %vm152, %v1202, 0.0
    %1209 = vadd.xlane.f32.xlu0 %v1208
    %v1210 = vpop.xlane.xlu0 %1209
    %v1211 = vrcp.pop 32.0
    %v1212 = vmul.f32 %v1207, %v1211
    %v1213 = vmul.f32 %v1210, %v1211
    %v1214 = vsub.f32 %v1201, %v1212
    %v1215 = vsub.f32 %v1202, %v1213
    %v1216 = vmul.f32 %v1214, %v1214
    %v1217 = vmul.f32 %v1215, %v1215
    %v1218 = vsel %vm152, %v1216, 0.0
    %1219 = vadd.xlane.f32.xlu0 %v1218
    %v1220 = vpop.xlane.xlu0 %1219
    %v1221 = vsel %vm152, %v1217, 0.0
    %1222 = vadd.xlane.f32.xlu0 %v1221
    %v1223 = vpop.xlane.xlu0 %1222
    %v1224 = vmul.f32 %v1220, %v1211
    %v1225 = vmul.f32 %v1223, %v1211
    %v1226 = vadd.f32 %v1224, 1e-05
    %v1227 = vadd.f32 %v1225, 1e-05
    %v1228 = vrsqrt.pop %v1226
    %v1229 = vrsqrt.pop %v1227
    %v1230 = vmul.f32 %v1214, %v1228
    %v1231 = vmul.f32 %v1215, %v1229
    %v1233 = vlaneseq
    %v1234 = vshrl.u32 %v1233, 7
    %v1235 = vsub.s32 0, %v1234
    %v1236 = vrot.slane %v1203, %v1235
    %v1238 = vmul.f32 %v1230, %v1236
    %v1239 = vmul.f32 %v1231, %v1236
    %v1241 = vlaneseq
    %v1242 = vshrl.u32 %v1241, 7
    %v1243 = vsub.s32 0, %v1242
    %v1244 = vrot.slane %v1204, %v1243
    %v1246 = vadd.f32 %v1238, %v1244
    %v1247 = vadd.f32 %v1239, %v1244
    %v1248 = vpack.c.bf16 %v1247, %v1246
    %v1249 = vld [vmem:[%s19] sm:$0xf]
    %v1250 = vld [vmem:[%s19 + $0x4] sm:$0xf]
    %v1251 = vld [vmem:[%s19 + $0x8] sm:$0xf]
    %v1252 = vld [vmem:[%s19 + $0xc] sm:$0xf]
    %v1253 = vld [vmem:[%s21] sm:$0x1]
    %v1255 = vlaneseq
    %v1256 = vshrl.u32 %v1255, 7
    %v1257 = vsub.s32 0, %v1256
    %v1258 = vrot.slane %v1253, %v1257
    %v1264 = vunpack.c.l.b16 %v1249
    %v1265 = vunpack.c.l.b16 %v1250
    %v1266 = vunpack.c.l.b16 %v1251
    %v1267 = vunpack.c.l.b16 %v1252
    %v1268 = vpack.c.b16 %v1265, %v1264
    %v1269 = vpack.c.b16 %v1267, %v1266
    %v1273 = vsel %vm152, %v1248, 0
    %1275 = vmatprep.subr.bf16.mxu0 0
    %1276 = vmatpush1.bf16.msra.mxu0 0
    %1277 = vmatprep.subr.bf16.mxu0 0
    %1278 = vmatpush1.bf16.msra.mxu0 0
    %1279 = vmatprep.subr.bf16.mxu0 0
    %1280 = vmatpush1.bf16.msra.mxu0 0
    %1281 = vmatprep.subr.bf16.mxu0 0
    %1282 = vmatpush1.bf16.msra.mxu0 0
    %1283 = vmatprep.subr.bf16.mxu0 0
    %1284 = vmatpush1.bf16.msra.mxu0 0
    %1285 = vmatprep.subr.bf16.mxu0 0
    %1286 = vmatpush1.bf16.msra.mxu0 0
    %1287 = vmatprep.subr.bf16.mxu0 0
    %1288 = vmatpush1.bf16.msra.mxu0 %v1269
    %1289 = vmatprep.subr.bf16.mxu0 0
    %1290 = vmatpush1.bf16.msra.mxu0 %v1268
    %1291 = vmatprep.subr.bf16.mxu0 0
    %1292 = vmatpush2.bf16.msra.mxu0 0
    %1293 = vmatprep.subr.bf16.mxu0 0
    %1294 = vmatpush2.bf16.msra.mxu0 0
    %1295 = vmatprep.subr.bf16.mxu0 0
    %1296 = vmatpush2.bf16.msra.mxu0 0
    %1297 = vmatprep.subr.bf16.mxu0 0
    %1298 = vmatpush2.bf16.msra.mxu0 0
    %1299 = vmatprep.subr.bf16.mxu0 0
    %1300 = vmatpush2.bf16.msra.mxu0 0
    %1301 = vmatprep.subr.bf16.mxu0 0
    %1302 = vmatpush2.bf16.msra.mxu0 0
    %1303 = vmatprep.subr.bf16.mxu0 0
    %1304 = vmatpush2.bf16.msra.mxu0 0
    %1305 = vmatprep.subr.bf16.mxu0 0
    %1306 = vmatpush2.bf16.msra.mxu0 0
    %1307 = vmatprep.mubr.bf16.mxu0 0
    %1308 = vmatmul.mubr.bf16.gmra.mxu0 %v1273
    %v1309 = vpop.f32.mrf.mxu0
    %v1310 = vadd.f32 %v1258, %v1309
    %v1311 = vpop.f32.mrf.mxu0
    %v1312 = vpop.f32.mrf.mxu0
    %v1313 = vadd.f32 %v1258, %v1312
    %v1314 = vpop.f32.mrf.mxu0
    %1315 = vdwg.mxu0
    %v1316 = vmax.f32 %v1310, 0.0
    %v1317 = vmax.f32 %v1313, 0.0
    %v1318 = vpack.c.bf16 %v1317, %v1316
    %v1319 = vld [vmem:[%s23] sm:$0xf]
    %v1320 = vld [vmem:[%s23 + $0x4] sm:$0xf]
    %v1321 = vld [vmem:[%s23 + $0x8] sm:$0xf]
    %v1322 = vld [vmem:[%s23 + $0xc] sm:$0xf]
    %v1323 = vld [vmem:[%s23 + $0x10] sm:$0xf]
    %v1324 = vld [vmem:[%s23 + $0x14] sm:$0xf]
    %v1325 = vld [vmem:[%s23 + $0x18] sm:$0xf]
    %v1326 = vld [vmem:[%s23 + $0x1c] sm:$0xf]
    %v1327 = vld [vmem:[%s23 + $0x20] sm:$0xf]
    %v1328 = vld [vmem:[%s23 + $0x24] sm:$0xf]
    %v1329 = vld [vmem:[%s23 + $0x28] sm:$0xf]
    %v1330 = vld [vmem:[%s23 + $0x2c] sm:$0xf]
    %v1331 = vld [vmem:[%s23 + $0x30] sm:$0xf]
    %v1332 = vld [vmem:[%s23 + $0x34] sm:$0xf]
    %v1333 = vld [vmem:[%s23 + $0x38] sm:$0xf]
    %v1334 = vld [vmem:[%s23 + $0x3c] sm:$0xf]
    %v1335 = vld [vmem:[%s25] sm:$0x1]
    %v1337 = vlaneseq
    %v1338 = vshrl.u32 %v1337, 7
    %v1339 = vsub.s32 0, %v1338
    %v1340 = vrot.slane %v1335, %v1339
    %v1358 = vunpack.c.l.b16 %v1319
    %v1359 = vunpack.c.l.b16 %v1320
    %v1360 = vunpack.c.l.b16 %v1321
    %v1361 = vunpack.c.l.b16 %v1322
    %v1362 = vunpack.c.l.b16 %v1323
    %v1363 = vunpack.c.l.b16 %v1324
    %v1364 = vunpack.c.l.b16 %v1325
    %v1365 = vunpack.c.l.b16 %v1326
    %v1366 = vunpack.c.l.b16 %v1327
    %v1367 = vunpack.c.l.b16 %v1328
    %v1368 = vunpack.c.l.b16 %v1329
    %v1369 = vunpack.c.l.b16 %v1330
    %v1370 = vunpack.c.l.b16 %v1331
    %v1371 = vunpack.c.l.b16 %v1332
    %v1372 = vunpack.c.l.b16 %v1333
    %v1373 = vunpack.c.l.b16 %v1334
    %v1374 = vpack.c.b16 %v1359, %v1358
    %v1375 = vpack.c.b16 %v1361, %v1360
    %v1376 = vpack.c.b16 %v1363, %v1362
    %v1377 = vpack.c.b16 %v1365, %v1364
    %v1378 = vpack.c.b16 %v1367, %v1366
    %v1379 = vpack.c.b16 %v1369, %v1368
    %v1380 = vpack.c.b16 %v1371, %v1370
    %v1381 = vpack.c.b16 %v1373, %v1372
    %1390 = vmatprep.subr.bf16.mxu0 0
    %1391 = vmatpush1.bf16.msra.mxu0 %v1381
    %1392 = vmatprep.subr.bf16.mxu0 0
    %1393 = vmatpush1.bf16.msra.mxu0 %v1380
    %1394 = vmatprep.subr.bf16.mxu0 0
    %1395 = vmatpush1.bf16.msra.mxu0 %v1379
    %1396 = vmatprep.subr.bf16.mxu0 0
    %1397 = vmatpush1.bf16.msra.mxu0 %v1378
    %1398 = vmatprep.subr.bf16.mxu0 0
    %1399 = vmatpush1.bf16.msra.mxu0 %v1377
    %1400 = vmatprep.subr.bf16.mxu0 0
    %1401 = vmatpush1.bf16.msra.mxu0 %v1376
    %1402 = vmatprep.subr.bf16.mxu0 0
    %1403 = vmatpush1.bf16.msra.mxu0 %v1375
    %1404 = vmatprep.subr.bf16.mxu0 0
    %1405 = vmatpush1.bf16.msra.mxu0 %v1374
    %1406 = vmatprep.subr.bf16.mxu0 0
    %1407 = vmatpush2.bf16.msra.mxu0 0
    %1408 = vmatprep.subr.bf16.mxu0 0
    %1409 = vmatpush2.bf16.msra.mxu0 0
    %1410 = vmatprep.subr.bf16.mxu0 0
    %1411 = vmatpush2.bf16.msra.mxu0 0
    %1412 = vmatprep.subr.bf16.mxu0 0
    %1413 = vmatpush2.bf16.msra.mxu0 0
    %1414 = vmatprep.subr.bf16.mxu0 0
    %1415 = vmatpush2.bf16.msra.mxu0 0
    %1416 = vmatprep.subr.bf16.mxu0 0
    %1417 = vmatpush2.bf16.msra.mxu0 0
    %1418 = vmatprep.subr.bf16.mxu0 0
    %1419 = vmatpush2.bf16.msra.mxu0 0
    %1420 = vmatprep.subr.bf16.mxu0 0
    %1421 = vmatpush2.bf16.msra.mxu0 0
    %1422 = vmatprep.mubr.bf16.mxu0 0
    %1423 = vmatmul.mubr.bf16.gmra.mxu0 %v1318
    %v1424 = vpop.f32.mrf.mxu0
    %v1425 = vadd.f32 %v1340, %v1424
    %v1426 = vpop.f32.mrf.mxu0
    %v1427 = vpop.f32.mrf.mxu0
    %v1428 = vadd.f32 %v1340, %v1427
    %v1429 = vpop.f32.mrf.mxu0
    %1430 = vdwg.mxu0
    %v1431 = vadd.f32 %v1425, %v1246
    %v1432 = vadd.f32 %v1428, %v1247
    %v1433 = vld [vmem:[%s27] sm:$0x1]
    %v1434 = vld [vmem:[%s29] sm:$0x1]
    %v1435 = vsel %vm152, %v1431, 0.0
    %1436 = vadd.xlane.f32.xlu0 %v1435
    %v1437 = vpop.xlane.xlu0 %1436
    %v1438 = vsel %vm152, %v1432, 0.0
    %1439 = vadd.xlane.f32.xlu0 %v1438
    %v1440 = vpop.xlane.xlu0 %1439
    %v1441 = vmul.f32 %v1437, %v1211
    %v1442 = vmul.f32 %v1440, %v1211
    %v1443 = vsub.f32 %v1431, %v1441
    %v1444 = vsub.f32 %v1432, %v1442
    %v1445 = vmul.f32 %v1443, %v1443
    %v1446 = vmul.f32 %v1444, %v1444
    %v1447 = vsel %vm152, %v1445, 0.0
    %1448 = vadd.xlane.f32.xlu0 %v1447
    %v1449 = vpop.xlane.xlu0 %1448
    %v1450 = vsel %vm152, %v1446, 0.0
    %1451 = vadd.xlane.f32.xlu0 %v1450
    %v1452 = vpop.xlane.xlu0 %1451
    %v1453 = vmul.f32 %v1449, %v1211
    %v1454 = vmul.f32 %v1452, %v1211
    %v1455 = vadd.f32 %v1453, 1e-05
    %v1456 = vadd.f32 %v1454, 1e-05
    %v1457 = vrsqrt.pop %v1455
    %v1458 = vrsqrt.pop %v1456
    %v1459 = vmul.f32 %v1443, %v1457
    %v1460 = vmul.f32 %v1444, %v1458
    %v1462 = vlaneseq
    %v1463 = vshrl.u32 %v1462, 7
    %v1464 = vsub.s32 0, %v1463
    %v1465 = vrot.slane %v1433, %v1464
    %v1467 = vmul.f32 %v1459, %v1465
    %v1468 = vmul.f32 %v1460, %v1465
    %v1470 = vlaneseq
    %v1471 = vshrl.u32 %v1470, 7
    %v1472 = vsub.s32 0, %v1471
    %v1473 = vrot.slane %v1434, %v1472
    %v1475 = vadd.f32 %v1467, %v1473
    %v1476 = vadd.f32 %v1468, %v1473
    %v1477 = vpack.c.bf16 %v1476, %v1475
    %v1478 = vld [vmem:[%s31] sm:$0xf]
    %v1479 = vld [vmem:[%s31 + $0x4] sm:$0xf]
    %v1480 = vld [vmem:[%s31 + $0x8] sm:$0xf]
    %v1481 = vld [vmem:[%s31 + $0xc] sm:$0xf]
    %v1482 = vld [vmem:[%s33] sm:$0x1]
    %v1484 = vlaneseq
    %v1485 = vshrl.u32 %v1484, 7
    %v1486 = vsub.s32 0, %v1485
    %v1487 = vrot.slane %v1482, %v1486
    %v1493 = vunpack.c.l.b16 %v1478
    %v1494 = vunpack.c.l.b16 %v1479
    %v1495 = vunpack.c.l.b16 %v1480
    %v1496 = vunpack.c.l.b16 %v1481
    %v1497 = vpack.c.b16 %v1494, %v1493
    %v1498 = vpack.c.b16 %v1496, %v1495
    %v1502 = vsel %vm152, %v1477, 0
    %1504 = vmatprep.subr.bf16.mxu0 0
    %1505 = vmatpush1.bf16.msra.mxu0 0
    %1506 = vmatprep.subr.bf16.mxu0 0
    %1507 = vmatpush1.bf16.msra.mxu0 0
    %1508 = vmatprep.subr.bf16.mxu0 0
    %1509 = vmatpush1.bf16.msra.mxu0 0
    %1510 = vmatprep.subr.bf16.mxu0 0
    %1511 = vmatpush1.bf16.msra.mxu0 0
    %1512 = vmatprep.subr.bf16.mxu0 0
    %1513 = vmatpush1.bf16.msra.mxu0 0
    %1514 = vmatprep.subr.bf16.mxu0 0
    %1515 = vmatpush1.bf16.msra.mxu0 0
    %1516 = vmatprep.subr.bf16.mxu0 0
    %1517 = vmatpush1.bf16.msra.mxu0 %v1498
    %1518 = vmatprep.subr.bf16.mxu0 0
    %1519 = vmatpush1.bf16.msra.mxu0 %v1497
    %1520 = vmatprep.subr.bf16.mxu0 0
    %1521 = vmatpush2.bf16.msra.mxu0 0
    %1522 = vmatprep.subr.bf16.mxu0 0
    %1523 = vmatpush2.bf16.msra.mxu0 0
    %1524 = vmatprep.subr.bf16.mxu0 0
    %1525 = vmatpush2.bf16.msra.mxu0 0
    %1526 = vmatprep.subr.bf16.mxu0 0
    %1527 = vmatpush2.bf16.msra.mxu0 0
    %1528 = vmatprep.subr.bf16.mxu0 0
    %1529 = vmatpush2.bf16.msra.mxu0 0
    %1530 = vmatprep.subr.bf16.mxu0 0
    %1531 = vmatpush2.bf16.msra.mxu0 0
    %1532 = vmatprep.subr.bf16.mxu0 0
    %1533 = vmatpush2.bf16.msra.mxu0 0
    %1534 = vmatprep.subr.bf16.mxu0 0
    %1535 = vmatpush2.bf16.msra.mxu0 0
    %1536 = vmatprep.mubr.bf16.mxu0 0
    %1537 = vmatmul.mubr.bf16.gmra.mxu0 %v1502
    %v1538 = vpop.f32.mrf.mxu0
    %v1539 = vadd.f32 %v1487, %v1538
    %v1540 = vpop.f32.mrf.mxu0
    %v1541 = vpop.f32.mrf.mxu0
    %v1542 = vadd.f32 %v1487, %v1541
    %v1543 = vpop.f32.mrf.mxu0
    %1544 = vdwg.mxu0
    %v1545 = vpack.c.bf16 %v127, %v126
    %v1546 = vld [vmem:[%s35] sm:$0xf]
    %v1547 = vld [vmem:[%s35 + $0x4] sm:$0xf]
    %v1548 = vld [vmem:[%s35 + $0x8] sm:$0xf]
    %v1549 = vld [vmem:[%s35 + $0xc] sm:$0xf]
    %v1550 = vld [vmem:[%s37] sm:$0x1]
    %v1552 = vlaneseq
    %v1553 = vshrl.u32 %v1552, 7
    %v1554 = vsub.s32 0, %v1553
    %v1555 = vrot.slane %v1550, %v1554
    %v1561 = vunpack.c.l.b16 %v1546
    %v1562 = vunpack.c.l.b16 %v1547
    %v1563 = vunpack.c.l.b16 %v1548
    %v1564 = vunpack.c.l.b16 %v1549
    %v1565 = vpack.c.b16 %v1562, %v1561
    %v1566 = vpack.c.b16 %v1564, %v1563
    %v1570 = vsel %vm152, %v1545, 0
    %1572 = vmatprep.subr.bf16.mxu0 0
    %1573 = vmatpush1.bf16.msra.mxu0 0
    %1574 = vmatprep.subr.bf16.mxu0 0
    %1575 = vmatpush1.bf16.msra.mxu0 0
    %1576 = vmatprep.subr.bf16.mxu0 0
    %1577 = vmatpush1.bf16.msra.mxu0 0
    %1578 = vmatprep.subr.bf16.mxu0 0
    %1579 = vmatpush1.bf16.msra.mxu0 0
    %1580 = vmatprep.subr.bf16.mxu0 0
    %1581 = vmatpush1.bf16.msra.mxu0 0
    %1582 = vmatprep.subr.bf16.mxu0 0
    %1583 = vmatpush1.bf16.msra.mxu0 0
    %1584 = vmatprep.subr.bf16.mxu0 0
    %1585 = vmatpush1.bf16.msra.mxu0 %v1566
    %1586 = vmatprep.subr.bf16.mxu0 0
    %1587 = vmatpush1.bf16.msra.mxu0 %v1565
    %1588 = vmatprep.subr.bf16.mxu0 0
    %1589 = vmatpush2.bf16.msra.mxu0 0
    %1590 = vmatprep.subr.bf16.mxu0 0
    %1591 = vmatpush2.bf16.msra.mxu0 0
    %1592 = vmatprep.subr.bf16.mxu0 0
    %1593 = vmatpush2.bf16.msra.mxu0 0
    %1594 = vmatprep.subr.bf16.mxu0 0
    %1595 = vmatpush2.bf16.msra.mxu0 0
    %1596 = vmatprep.subr.bf16.mxu0 0
    %1597 = vmatpush2.bf16.msra.mxu0 0
    %1598 = vmatprep.subr.bf16.mxu0 0
    %1599 = vmatpush2.bf16.msra.mxu0 0
    %1600 = vmatprep.subr.bf16.mxu0 0
    %1601 = vmatpush2.bf16.msra.mxu0 0
    %1602 = vmatprep.subr.bf16.mxu0 0
    %1603 = vmatpush2.bf16.msra.mxu0 0
    %1604 = vmatprep.mubr.bf16.mxu0 0
    %1605 = vmatmul.mubr.bf16.gmra.mxu0 %v1570
    %v1606 = vpop.f32.mrf.mxu0
    %v1607 = vadd.f32 %v1555, %v1606
    %v1608 = vpop.f32.mrf.mxu0
    %v1609 = vpop.f32.mrf.mxu0
    %v1610 = vadd.f32 %v1555, %v1609
    %v1611 = vpop.f32.mrf.mxu0
    %1612 = vdwg.mxu0
    %v1613 = vmul.f32 %v1539, 0.35355338
    %v1614 = vmul.f32 %v1542, 0.35355338
    %v1615 = vpack.c.bf16 %v1614, %v1613
    %v1617 = vunpack.c.l.b16 %v1615
    %v1618 = vunpack.c.h.b16 %v1615
    %v1619 = vpack.c.b16 %v1617, %v1617
    %v1620 = vpack.c.b16 %v1618, %v1618
    %v1621 = vpack.c.bf16 %v1610, %v1607
    %v1623 = vunpack.c.l.b16 %v1621
    %v1624 = vunpack.c.h.b16 %v1621
    %v1625 = vpack.c.b16 %v1623, %v1623
    %v1626 = vpack.c.b16 %v1624, %v1624
    %v1628 = vsel %vm216, %v1619, 0
    %v1631 = vsel %vm216, %v1625, 0
    %1633 = vmatprep.subr.bf16.mxu0 0
    %1634 = vmatpush1.bf16.xpose.msra.mxu0 0
    %1635 = vmatprep.subr.bf16.mxu0 0
    %1636 = vmatpush1.bf16.xpose.msra.mxu0 0
    %1637 = vmatprep.subr.bf16.mxu0 0
    %1638 = vmatpush1.bf16.xpose.msra.mxu0 0
    %1639 = vmatprep.subr.bf16.mxu0 0
    %1640 = vmatpush1.bf16.xpose.msra.mxu0 0
    %1641 = vmatprep.subr.bf16.mxu0 0
    %1642 = vmatpush1.bf16.xpose.msra.mxu0 0
    %1643 = vmatprep.subr.bf16.mxu0 0
    %1644 = vmatpush1.bf16.xpose.msra.mxu0 0
    %1645 = vmatprep.subr.bf16.mxu0 0
    %1646 = vmatpush1.bf16.xpose.msra.mxu0 0
    %1647 = vmatprep.subr.bf16.mxu0 0
    %1648 = vmatpush1.bf16.xpose.msra.mxu0 %v1631
    %1649 = vmatprep.subr.bf16.mxu0 0
    %1650 = vmatpush2.bf16.xpose.msra.mxu0 0
    %1651 = vmatprep.subr.bf16.mxu0 0
    %1652 = vmatpush2.bf16.xpose.msra.mxu0 0
    %1653 = vmatprep.subr.bf16.mxu0 0
    %1654 = vmatpush2.bf16.xpose.msra.mxu0 0
    %1655 = vmatprep.subr.bf16.mxu0 0
    %1656 = vmatpush2.bf16.xpose.msra.mxu0 0
    %1657 = vmatprep.subr.bf16.mxu0 0
    %1658 = vmatpush2.bf16.xpose.msra.mxu0 0
    %1659 = vmatprep.subr.bf16.mxu0 0
    %1660 = vmatpush2.bf16.xpose.msra.mxu0 0
    %1661 = vmatprep.subr.bf16.mxu0 0
    %1662 = vmatpush2.bf16.xpose.msra.mxu0 0
    %1663 = vmatprep.subr.bf16.mxu0 0
    %1664 = vmatpush2.bf16.xpose.msra.mxu0 0
    %1665 = vmatprep.mubr.bf16.mxu0 0
    %1666 = vmatmul.mubr.bf16.gmra.mxu0 %v1628
    %v1667 = vpop.f32.mrf.mxu0
    %v1668 = vadd.f32 0.0, %v1667
    %v1669 = vpop.f32.mrf.mxu0
    %v1670 = vpop.f32.mrf.mxu0
    %v1671 = vpop.f32.mrf.mxu0
    %1672 = vdwg.mxu0
    %v1674 = vsel %vm216, %v1620, 0
    %v1677 = vsel %vm216, %v1626, 0
    %1679 = vmatprep.subr.bf16.mxu0 0
    %1680 = vmatpush1.bf16.xpose.msra.mxu0 0
    %1681 = vmatprep.subr.bf16.mxu0 0
    %1682 = vmatpush1.bf16.xpose.msra.mxu0 0
    %1683 = vmatprep.subr.bf16.mxu0 0
    %1684 = vmatpush1.bf16.xpose.msra.mxu0 0
    %1685 = vmatprep.subr.bf16.mxu0 0
    %1686 = vmatpush1.bf16.xpose.msra.mxu0 0
    %1687 = vmatprep.subr.bf16.mxu0 0
    %1688 = vmatpush1.bf16.xpose.msra.mxu0 0
    %1689 = vmatprep.subr.bf16.mxu0 0
    %1690 = vmatpush1.bf16.xpose.msra.mxu0 0
    %1691 = vmatprep.subr.bf16.mxu0 0
    %1692 = vmatpush1.bf16.xpose.msra.mxu0 0
    %1693 = vmatprep.subr.bf16.mxu0 0
    %1694 = vmatpush1.bf16.xpose.msra.mxu0 %v1677
    %1695 = vmatprep.subr.bf16.mxu0 0
    %1696 = vmatpush2.bf16.xpose.msra.mxu0 0
    %1697 = vmatprep.subr.bf16.mxu0 0
    %1698 = vmatpush2.bf16.xpose.msra.mxu0 0
    %1699 = vmatprep.subr.bf16.mxu0 0
    %1700 = vmatpush2.bf16.xpose.msra.mxu0 0
    %1701 = vmatprep.subr.bf16.mxu0 0
    %1702 = vmatpush2.bf16.xpose.msra.mxu0 0
    %1703 = vmatprep.subr.bf16.mxu0 0
    %1704 = vmatpush2.bf16.xpose.msra.mxu0 0
    %1705 = vmatprep.subr.bf16.mxu0 0
    %1706 = vmatpush2.bf16.xpose.msra.mxu0 0
    %1707 = vmatprep.subr.bf16.mxu0 0
    %1708 = vmatpush2.bf16.xpose.msra.mxu0 0
    %1709 = vmatprep.subr.bf16.mxu0 0
    %1710 = vmatpush2.bf16.xpose.msra.mxu0 0
    %1711 = vmatprep.mubr.bf16.mxu0 0
    %1712 = vmatmul.mubr.bf16.gmra.mxu0 %v1674
    %v1713 = vpop.f32.mrf.mxu0
    %v1714 = vadd.f32 0.0, %v1713
    %v1715 = vpop.f32.mrf.mxu0
    %v1716 = vpop.f32.mrf.mxu0
    %v1717 = vpop.f32.mrf.mxu0
    %1718 = vdwg.mxu0
    %1719 = vrot.lane.b32.xlu0 %v1619, 120
    %v1720 = vpop.permute.xlu0 %1719
    %1721 = vrot.lane.b32.xlu0 %v1625, 120
    %v1722 = vpop.permute.xlu0 %1721
    %v1724 = vsel %vm216, %v1720, 0
    %v1727 = vsel %vm216, %v1722, 0
    %1729 = vmatprep.subr.bf16.mxu0 0
    %1730 = vmatpush1.bf16.xpose.msra.mxu0 0
    %1731 = vmatprep.subr.bf16.mxu0 0
    %1732 = vmatpush1.bf16.xpose.msra.mxu0 0
    %1733 = vmatprep.subr.bf16.mxu0 0
    %1734 = vmatpush1.bf16.xpose.msra.mxu0 0
    %1735 = vmatprep.subr.bf16.mxu0 0
    %1736 = vmatpush1.bf16.xpose.msra.mxu0 0
    %1737 = vmatprep.subr.bf16.mxu0 0
    %1738 = vmatpush1.bf16.xpose.msra.mxu0 0
    %1739 = vmatprep.subr.bf16.mxu0 0
    %1740 = vmatpush1.bf16.xpose.msra.mxu0 0
    %1741 = vmatprep.subr.bf16.mxu0 0
    %1742 = vmatpush1.bf16.xpose.msra.mxu0 0
    %1743 = vmatprep.subr.bf16.mxu0 0
    %1744 = vmatpush1.bf16.xpose.msra.mxu0 %v1727
    %1745 = vmatprep.subr.bf16.mxu0 0
    %1746 = vmatpush2.bf16.xpose.msra.mxu0 0
    %1747 = vmatprep.subr.bf16.mxu0 0
    %1748 = vmatpush2.bf16.xpose.msra.mxu0 0
    %1749 = vmatprep.subr.bf16.mxu0 0
    %1750 = vmatpush2.bf16.xpose.msra.mxu0 0
    %1751 = vmatprep.subr.bf16.mxu0 0
    %1752 = vmatpush2.bf16.xpose.msra.mxu0 0
    %1753 = vmatprep.subr.bf16.mxu0 0
    %1754 = vmatpush2.bf16.xpose.msra.mxu0 0
    %1755 = vmatprep.subr.bf16.mxu0 0
    %1756 = vmatpush2.bf16.xpose.msra.mxu0 0
    %1757 = vmatprep.subr.bf16.mxu0 0
    %1758 = vmatpush2.bf16.xpose.msra.mxu0 0
    %1759 = vmatprep.subr.bf16.mxu0 0
    %1760 = vmatpush2.bf16.xpose.msra.mxu0 0
    %1761 = vmatprep.mubr.bf16.mxu0 0
    %1762 = vmatmul.mubr.bf16.gmra.mxu0 %v1724
    %v1763 = vpop.f32.mrf.mxu0
    %v1764 = vadd.f32 0.0, %v1763
    %v1765 = vpop.f32.mrf.mxu0
    %v1766 = vpop.f32.mrf.mxu0
    %v1767 = vpop.f32.mrf.mxu0
    %1768 = vdwg.mxu0
    %1769 = vrot.lane.b32.xlu0 %v1620, 120
    %v1770 = vpop.permute.xlu0 %1769
    %1771 = vrot.lane.b32.xlu0 %v1626, 120
    %v1772 = vpop.permute.xlu0 %1771
    %v1774 = vsel %vm216, %v1770, 0
    %v1777 = vsel %vm216, %v1772, 0
    %1779 = vmatprep.subr.bf16.mxu0 0
    %1780 = vmatpush1.bf16.xpose.msra.mxu0 0
    %1781 = vmatprep.subr.bf16.mxu0 0
    %1782 = vmatpush1.bf16.xpose.msra.mxu0 0
    %1783 = vmatprep.subr.bf16.mxu0 0
    %1784 = vmatpush1.bf16.xpose.msra.mxu0 0
    %1785 = vmatprep.subr.bf16.mxu0 0
    %1786 = vmatpush1.bf16.xpose.msra.mxu0 0
    %1787 = vmatprep.subr.bf16.mxu0 0
    %1788 = vmatpush1.bf16.xpose.msra.mxu0 0
    %1789 = vmatprep.subr.bf16.mxu0 0
    %1790 = vmatpush1.bf16.xpose.msra.mxu0 0
    %1791 = vmatprep.subr.bf16.mxu0 0
    %1792 = vmatpush1.bf16.xpose.msra.mxu0 0
    %1793 = vmatprep.subr.bf16.mxu0 0
    %1794 = vmatpush1.bf16.xpose.msra.mxu0 %v1777
    %1795 = vmatprep.subr.bf16.mxu0 0
    %1796 = vmatpush2.bf16.xpose.msra.mxu0 0
    %1797 = vmatprep.subr.bf16.mxu0 0
    %1798 = vmatpush2.bf16.xpose.msra.mxu0 0
    %1799 = vmatprep.subr.bf16.mxu0 0
    %1800 = vmatpush2.bf16.xpose.msra.mxu0 0
    %1801 = vmatprep.subr.bf16.mxu0 0
    %1802 = vmatpush2.bf16.xpose.msra.mxu0 0
    %1803 = vmatprep.subr.bf16.mxu0 0
    %1804 = vmatpush2.bf16.xpose.msra.mxu0 0
    %1805 = vmatprep.subr.bf16.mxu0 0
    %1806 = vmatpush2.bf16.xpose.msra.mxu0 0
    %1807 = vmatprep.subr.bf16.mxu0 0
    %1808 = vmatpush2.bf16.xpose.msra.mxu0 0
    %1809 = vmatprep.subr.bf16.mxu0 0
    %1810 = vmatpush2.bf16.xpose.msra.mxu0 0
    %1811 = vmatprep.mubr.bf16.mxu0 0
    %1812 = vmatmul.mubr.bf16.gmra.mxu0 %v1774
    %v1813 = vpop.f32.mrf.mxu0
    %v1814 = vadd.f32 0.0, %v1813
    %v1815 = vpop.f32.mrf.mxu0
    %v1816 = vpop.f32.mrf.mxu0
    %v1817 = vpop.f32.mrf.mxu0
    %1818 = vdwg.mxu0
    %1819 = vrot.lane.b32.xlu0 %v1619, 112
    %v1820 = vpop.permute.xlu0 %1819
    %1821 = vrot.lane.b32.xlu0 %v1625, 112
    %v1822 = vpop.permute.xlu0 %1821
    %v1824 = vsel %vm216, %v1820, 0
    %v1827 = vsel %vm216, %v1822, 0
    %1829 = vmatprep.subr.bf16.mxu0 0
    %1830 = vmatpush1.bf16.xpose.msra.mxu0 0
    %1831 = vmatprep.subr.bf16.mxu0 0
    %1832 = vmatpush1.bf16.xpose.msra.mxu0 0
    %1833 = vmatprep.subr.bf16.mxu0 0
    %1834 = vmatpush1.bf16.xpose.msra.mxu0 0
    %1835 = vmatprep.subr.bf16.mxu0 0
    %1836 = vmatpush1.bf16.xpose.msra.mxu0 0
    %1837 = vmatprep.subr.bf16.mxu0 0
    %1838 = vmatpush1.bf16.xpose.msra.mxu0 0
    %1839 = vmatprep.subr.bf16.mxu0 0
    %1840 = vmatpush1.bf16.xpose.msra.mxu0 0
    %1841 = vmatprep.subr.bf16.mxu0 0
    %1842 = vmatpush1.bf16.xpose.msra.mxu0 0
    %1843 = vmatprep.subr.bf16.mxu0 0
    %1844 = vmatpush1.bf16.xpose.msra.mxu0 %v1827
    %1845 = vmatprep.subr.bf16.mxu0 0
    %1846 = vmatpush2.bf16.xpose.msra.mxu0 0
    %1847 = vmatprep.subr.bf16.mxu0 0
    %1848 = vmatpush2.bf16.xpose.msra.mxu0 0
    %1849 = vmatprep.subr.bf16.mxu0 0
    %1850 = vmatpush2.bf16.xpose.msra.mxu0 0
    %1851 = vmatprep.subr.bf16.mxu0 0
    %1852 = vmatpush2.bf16.xpose.msra.mxu0 0
    %1853 = vmatprep.subr.bf16.mxu0 0
    %1854 = vmatpush2.bf16.xpose.msra.mxu0 0
    %1855 = vmatprep.subr.bf16.mxu0 0
    %1856 = vmatpush2.bf16.xpose.msra.mxu0 0
    %1857 = vmatprep.subr.bf16.mxu0 0
    %1858 = vmatpush2.bf16.xpose.msra.mxu0 0
    %1859 = vmatprep.subr.bf16.mxu0 0
    %1860 = vmatpush2.bf16.xpose.msra.mxu0 0
    %1861 = vmatprep.mubr.bf16.mxu0 0
    %1862 = vmatmul.mubr.bf16.gmra.mxu0 %v1824
    %v1863 = vpop.f32.mrf.mxu0
    %v1864 = vadd.f32 0.0, %v1863
    %v1865 = vpop.f32.mrf.mxu0
    %v1866 = vpop.f32.mrf.mxu0
    %v1867 = vpop.f32.mrf.mxu0
    %1868 = vdwg.mxu0
    %1869 = vrot.lane.b32.xlu0 %v1620, 112
    %v1870 = vpop.permute.xlu0 %1869
    %1871 = vrot.lane.b32.xlu0 %v1626, 112
    %v1872 = vpop.permute.xlu0 %1871
    %v1874 = vsel %vm216, %v1870, 0
    %v1877 = vsel %vm216, %v1872, 0
    %1879 = vmatprep.subr.bf16.mxu0 0
    %1880 = vmatpush1.bf16.xpose.msra.mxu0 0
    %1881 = vmatprep.subr.bf16.mxu0 0
    %1882 = vmatpush1.bf16.xpose.msra.mxu0 0
    %1883 = vmatprep.subr.bf16.mxu0 0
    %1884 = vmatpush1.bf16.xpose.msra.mxu0 0
    %1885 = vmatprep.subr.bf16.mxu0 0
    %1886 = vmatpush1.bf16.xpose.msra.mxu0 0
    %1887 = vmatprep.subr.bf16.mxu0 0
    %1888 = vmatpush1.bf16.xpose.msra.mxu0 0
    %1889 = vmatprep.subr.bf16.mxu0 0
    %1890 = vmatpush1.bf16.xpose.msra.mxu0 0
    %1891 = vmatprep.subr.bf16.mxu0 0
    %1892 = vmatpush1.bf16.xpose.msra.mxu0 0
    %1893 = vmatprep.subr.bf16.mxu0 0
    %1894 = vmatpush1.bf16.xpose.msra.mxu0 %v1877
    %1895 = vmatprep.subr.bf16.mxu0 0
    %1896 = vmatpush2.bf16.xpose.msra.mxu0 0
    %1897 = vmatprep.subr.bf16.mxu0 0
    %1898 = vmatpush2.bf16.xpose.msra.mxu0 0
    %1899 = vmatprep.subr.bf16.mxu0 0
    %1900 = vmatpush2.bf16.xpose.msra.mxu0 0
    %1901 = vmatprep.subr.bf16.mxu0 0
    %1902 = vmatpush2.bf16.xpose.msra.mxu0 0
    %1903 = vmatprep.subr.bf16.mxu0 0
    %1904 = vmatpush2.bf16.xpose.msra.mxu0 0
    %1905 = vmatprep.subr.bf16.mxu0 0
    %1906 = vmatpush2.bf16.xpose.msra.mxu0 0
    %1907 = vmatprep.subr.bf16.mxu0 0
    %1908 = vmatpush2.bf16.xpose.msra.mxu0 0
    %1909 = vmatprep.subr.bf16.mxu0 0
    %1910 = vmatpush2.bf16.xpose.msra.mxu0 0
    %1911 = vmatprep.mubr.bf16.mxu0 0
    %1912 = vmatmul.mubr.bf16.gmra.mxu0 %v1874
    %v1913 = vpop.f32.mrf.mxu0
    %v1914 = vadd.f32 0.0, %v1913
    %v1915 = vpop.f32.mrf.mxu0
    %v1916 = vpop.f32.mrf.mxu0
    %v1917 = vpop.f32.mrf.mxu0
    %1918 = vdwg.mxu0
    %1919 = vrot.lane.b32.xlu0 %v1619, 104
    %v1920 = vpop.permute.xlu0 %1919
    %1921 = vrot.lane.b32.xlu0 %v1625, 104
    %v1922 = vpop.permute.xlu0 %1921
    %v1924 = vsel %vm216, %v1920, 0
    %v1927 = vsel %vm216, %v1922, 0
    %1929 = vmatprep.subr.bf16.mxu0 0
    %1930 = vmatpush1.bf16.xpose.msra.mxu0 0
    %1931 = vmatprep.subr.bf16.mxu0 0
    %1932 = vmatpush1.bf16.xpose.msra.mxu0 0
    %1933 = vmatprep.subr.bf16.mxu0 0
    %1934 = vmatpush1.bf16.xpose.msra.mxu0 0
    %1935 = vmatprep.subr.bf16.mxu0 0
    %1936 = vmatpush1.bf16.xpose.msra.mxu0 0
    %1937 = vmatprep.subr.bf16.mxu0 0
    %1938 = vmatpush1.bf16.xpose.msra.mxu0 0
    %1939 = vmatprep.subr.bf16.mxu0 0
    %1940 = vmatpush1.bf16.xpose.msra.mxu0 0
    %1941 = vmatprep.subr.bf16.mxu0 0
    %1942 = vmatpush1.bf16.xpose.msra.mxu0 0
    %1943 = vmatprep.subr.bf16.mxu0 0
    %1944 = vmatpush1.bf16.xpose.msra.mxu0 %v1927
    %1945 = vmatprep.subr.bf16.mxu0 0
    %1946 = vmatpush2.bf16.xpose.msra.mxu0 0
    %1947 = vmatprep.subr.bf16.mxu0 0
    %1948 = vmatpush2.bf16.xpose.msra.mxu0 0
    %1949 = vmatprep.subr.bf16.mxu0 0
    %1950 = vmatpush2.bf16.xpose.msra.mxu0 0
    %1951 = vmatprep.subr.bf16.mxu0 0
    %1952 = vmatpush2.bf16.xpose.msra.mxu0 0
    %1953 = vmatprep.subr.bf16.mxu0 0
    %1954 = vmatpush2.bf16.xpose.msra.mxu0 0
    %1955 = vmatprep.subr.bf16.mxu0 0
    %1956 = vmatpush2.bf16.xpose.msra.mxu0 0
    %1957 = vmatprep.subr.bf16.mxu0 0
    %1958 = vmatpush2.bf16.xpose.msra.mxu0 0
    %1959 = vmatprep.subr.bf16.mxu0 0
    %1960 = vmatpush2.bf16.xpose.msra.mxu0 0
    %1961 = vmatprep.mubr.bf16.mxu0 0
    %1962 = vmatmul.mubr.bf16.gmra.mxu0 %v1924
    %v1963 = vpop.f32.mrf.mxu0
    %v1964 = vadd.f32 0.0, %v1963
    %v1965 = vpop.f32.mrf.mxu0
    %v1966 = vpop.f32.mrf.mxu0
    %v1967 = vpop.f32.mrf.mxu0
    %1968 = vdwg.mxu0
    %1969 = vrot.lane.b32.xlu0 %v1620, 104
    %v1970 = vpop.permute.xlu0 %1969
    %1971 = vrot.lane.b32.xlu0 %v1626, 104
    %v1972 = vpop.permute.xlu0 %1971
    %v1974 = vsel %vm216, %v1970, 0
    %v1977 = vsel %vm216, %v1972, 0
    %1979 = vmatprep.subr.bf16.mxu0 0
    %1980 = vmatpush1.bf16.xpose.msra.mxu0 0
    %1981 = vmatprep.subr.bf16.mxu0 0
    %1982 = vmatpush1.bf16.xpose.msra.mxu0 0
    %1983 = vmatprep.subr.bf16.mxu0 0
    %1984 = vmatpush1.bf16.xpose.msra.mxu0 0
    %1985 = vmatprep.subr.bf16.mxu0 0
    %1986 = vmatpush1.bf16.xpose.msra.mxu0 0
    %1987 = vmatprep.subr.bf16.mxu0 0
    %1988 = vmatpush1.bf16.xpose.msra.mxu0 0
    %1989 = vmatprep.subr.bf16.mxu0 0
    %1990 = vmatpush1.bf16.xpose.msra.mxu0 0
    %1991 = vmatprep.subr.bf16.mxu0 0
    %1992 = vmatpush1.bf16.xpose.msra.mxu0 0
    %1993 = vmatprep.subr.bf16.mxu0 0
    %1994 = vmatpush1.bf16.xpose.msra.mxu0 %v1977
    %1995 = vmatprep.subr.bf16.mxu0 0
    %1996 = vmatpush2.bf16.xpose.msra.mxu0 0
    %1997 = vmatprep.subr.bf16.mxu0 0
    %1998 = vmatpush2.bf16.xpose.msra.mxu0 0
    %1999 = vmatprep.subr.bf16.mxu0 0
    %2000 = vmatpush2.bf16.xpose.msra.mxu0 0
    %2001 = vmatprep.subr.bf16.mxu0 0
    %2002 = vmatpush2.bf16.xpose.msra.mxu0 0
    %2003 = vmatprep.subr.bf16.mxu0 0
    %2004 = vmatpush2.bf16.xpose.msra.mxu0 0
    %2005 = vmatprep.subr.bf16.mxu0 0
    %2006 = vmatpush2.bf16.xpose.msra.mxu0 0
    %2007 = vmatprep.subr.bf16.mxu0 0
    %2008 = vmatpush2.bf16.xpose.msra.mxu0 0
    %2009 = vmatprep.subr.bf16.mxu0 0
    %2010 = vmatpush2.bf16.xpose.msra.mxu0 0
    %2011 = vmatprep.mubr.bf16.mxu0 0
    %2012 = vmatmul.mubr.bf16.gmra.mxu0 %v1974
    %v2013 = vpop.f32.mrf.mxu0
    %v2014 = vadd.f32 0.0, %v2013
    %v2015 = vpop.f32.mrf.mxu0
    %v2016 = vpop.f32.mrf.mxu0
    %v2017 = vpop.f32.mrf.mxu0
    %2018 = vdwg.mxu0
    %v2019 = vsel %vm216, %v1668, -inf
    %2020 = vmax.xlane.f32.xlu0 %v2019
    %v2021 = vpop.xlane.xlu0 %2020
    %v2022 = vsel %vm216, %v1764, -inf
    %2023 = vmax.xlane.f32.xlu0 %v2022
    %v2024 = vpop.xlane.xlu0 %2023
    %v2025 = vsel %vm216, %v1864, -inf
    %2026 = vmax.xlane.f32.xlu0 %v2025
    %v2027 = vpop.xlane.xlu0 %2026
    %v2028 = vsel %vm216, %v1964, -inf
    %2029 = vmax.xlane.f32.xlu0 %v2028
    %v2030 = vpop.xlane.xlu0 %2029
    %v2031 = vsel %vm216, %v1714, -inf
    %2032 = vmax.xlane.f32.xlu0 %v2031
    %v2033 = vpop.xlane.xlu0 %2032
    %v2034 = vsel %vm216, %v1814, -inf
    %2035 = vmax.xlane.f32.xlu0 %v2034
    %v2036 = vpop.xlane.xlu0 %2035
    %v2037 = vsel %vm216, %v1914, -inf
    %2038 = vmax.xlane.f32.xlu0 %v2037
    %v2039 = vpop.xlane.xlu0 %2038
    %v2040 = vsel %vm216, %v2014, -inf
    %2041 = vmax.xlane.f32.xlu0 %v2040
    %v2042 = vpop.xlane.xlu0 %2041
    %v2043 = vsub.f32 %v1668, %v2021
    %v2044 = vsub.f32 %v1764, %v2024
    %v2045 = vsub.f32 %v1864, %v2027
    %v2046 = vsub.f32 %v1964, %v2030
    %v2047 = vsub.f32 %v1714, %v2033
    %v2048 = vsub.f32 %v1814, %v2036
    %v2049 = vsub.f32 %v1914, %v2039
    %v2050 = vsub.f32 %v2014, %v2042
    %v2051 = vmul.f32 %v2043, 1.442695
    %v2052 = vpow.pop %v2051
    %v2053 = vmul.f32 %v2044, 1.442695
    %v2054 = vpow.pop %v2053
    %v2055 = vmul.f32 %v2045, 1.442695
    %v2056 = vpow.pop %v2055
    %v2057 = vmul.f32 %v2046, 1.442695
    %v2058 = vpow.pop %v2057
    %v2059 = vmul.f32 %v2047, 1.442695
    %v2060 = vpow.pop %v2059
    %v2061 = vmul.f32 %v2048, 1.442695
    %v2062 = vpow.pop %v2061
    %v2063 = vmul.f32 %v2049, 1.442695
    %v2064 = vpow.pop %v2063
    %v2065 = vmul.f32 %v2050, 1.442695
    %v2066 = vpow.pop %v2065
    %v2067 = vsel %vm216, %v2052, 0.0
    %2068 = vadd.xlane.f32.xlu0 %v2067
    %v2069 = vpop.xlane.xlu0 %2068
    %v2070 = vsel %vm216, %v2054, 0.0
    %2071 = vadd.xlane.f32.xlu0 %v2070
    %v2072 = vpop.xlane.xlu0 %2071
    %v2073 = vsel %vm216, %v2056, 0.0
    %2074 = vadd.xlane.f32.xlu0 %v2073
    %v2075 = vpop.xlane.xlu0 %2074
    %v2076 = vsel %vm216, %v2058, 0.0
    %2077 = vadd.xlane.f32.xlu0 %v2076
    %v2078 = vpop.xlane.xlu0 %2077
    %v2079 = vsel %vm216, %v2060, 0.0
    %2080 = vadd.xlane.f32.xlu0 %v2079
    %v2081 = vpop.xlane.xlu0 %2080
    %v2082 = vsel %vm216, %v2062, 0.0
    %2083 = vadd.xlane.f32.xlu0 %v2082
    %v2084 = vpop.xlane.xlu0 %2083
    %v2085 = vsel %vm216, %v2064, 0.0
    %2086 = vadd.xlane.f32.xlu0 %v2085
    %v2087 = vpop.xlane.xlu0 %2086
    %v2088 = vsel %vm216, %v2066, 0.0
    %2089 = vadd.xlane.f32.xlu0 %v2088
    %v2090 = vpop.xlane.xlu0 %2089
    %v2091 = vrcp.pop %v2069
    %v2092 = vrcp.pop %v2072
    %v2093 = vrcp.pop %v2075
    %v2094 = vrcp.pop %v2078
    %v2095 = vrcp.pop %v2081
    %v2096 = vrcp.pop %v2084
    %v2097 = vrcp.pop %v2087
    %v2098 = vrcp.pop %v2090
    %v2099 = vmul.f32 %v2052, %v2091
    %v2100 = vmul.f32 %v2054, %v2092
    %v2101 = vmul.f32 %v2056, %v2093
    %v2102 = vmul.f32 %v2058, %v2094
    %v2103 = vmul.f32 %v2060, %v2095
    %v2104 = vmul.f32 %v2062, %v2096
    %v2105 = vmul.f32 %v2064, %v2097
    %v2106 = vmul.f32 %v2066, %v2098
    %v2107 = vpack.c.bf16 %v2099, %v2099
    %v2108 = vpack.c.bf16 %v2103, %v2103
    %2109 = vrot.lane.b32.xlu0 %v1625, 96
    %v2110 = vpop.permute.xlu0 %2109
    %v2112 = vsel %vm216, %v2107, 0
    %v2115 = vsel %vm715, %v2110, 0
    %2117 = vmatprep.subr.bf16.mxu0 0
    %2118 = vmatpush1.bf16.msra.mxu0 0
    %2119 = vmatprep.subr.bf16.mxu0 0
    %2120 = vmatpush1.bf16.msra.mxu0 0
    %2121 = vmatprep.subr.bf16.mxu0 0
    %2122 = vmatpush1.bf16.msra.mxu0 0
    %2123 = vmatprep.subr.bf16.mxu0 0
    %2124 = vmatpush1.bf16.msra.mxu0 0
    %2125 = vmatprep.subr.bf16.mxu0 0
    %2126 = vmatpush1.bf16.msra.mxu0 0
    %2127 = vmatprep.subr.bf16.mxu0 0
    %2128 = vmatpush1.bf16.msra.mxu0 0
    %2129 = vmatprep.subr.bf16.mxu0 0
    %2130 = vmatpush1.bf16.msra.mxu0 0
    %2131 = vmatprep.subr.bf16.mxu0 0
    %2132 = vmatpush1.bf16.msra.mxu0 %v2115
    %2133 = vmatprep.subr.bf16.mxu0 0
    %2134 = vmatpush2.bf16.msra.mxu0 0
    %2135 = vmatprep.subr.bf16.mxu0 0
    %2136 = vmatpush2.bf16.msra.mxu0 0
    %2137 = vmatprep.subr.bf16.mxu0 0
    %2138 = vmatpush2.bf16.msra.mxu0 0
    %2139 = vmatprep.subr.bf16.mxu0 0
    %2140 = vmatpush2.bf16.msra.mxu0 0
    %2141 = vmatprep.subr.bf16.mxu0 0
    %2142 = vmatpush2.bf16.msra.mxu0 0
    %2143 = vmatprep.subr.bf16.mxu0 0
    %2144 = vmatpush2.bf16.msra.mxu0 0
    %2145 = vmatprep.subr.bf16.mxu0 0
    %2146 = vmatpush2.bf16.msra.mxu0 0
    %2147 = vmatprep.subr.bf16.mxu0 0
    %2148 = vmatpush2.bf16.msra.mxu0 0
    %2149 = vmatprep.mubr.bf16.mxu0 0
    %2150 = vmatmul.mubr.bf16.gmra.mxu0 %v2112
    %v2151 = vpop.f32.mrf.mxu0
    %v2152 = vadd.f32 0.0, %v2151
    %v2153 = vpop.f32.mrf.mxu0
    %v2154 = vpop.f32.mrf.mxu0
    %v2155 = vpop.f32.mrf.mxu0
    %2156 = vdwg.mxu0
    %2157 = vrot.lane.b32.xlu0 %v1626, 96
    %v2158 = vpop.permute.xlu0 %2157
    %v2160 = vsel %vm216, %v2108, 0
    %v2163 = vsel %vm715, %v2158, 0
    %2165 = vmatprep.subr.bf16.mxu0 0
    %2166 = vmatpush1.bf16.msra.mxu0 0
    %2167 = vmatprep.subr.bf16.mxu0 0
    %2168 = vmatpush1.bf16.msra.mxu0 0
    %2169 = vmatprep.subr.bf16.mxu0 0
    %2170 = vmatpush1.bf16.msra.mxu0 0
    %2171 = vmatprep.subr.bf16.mxu0 0
    %2172 = vmatpush1.bf16.msra.mxu0 0
    %2173 = vmatprep.subr.bf16.mxu0 0
    %2174 = vmatpush1.bf16.msra.mxu0 0
    %2175 = vmatprep.subr.bf16.mxu0 0
    %2176 = vmatpush1.bf16.msra.mxu0 0
    %2177 = vmatprep.subr.bf16.mxu0 0
    %2178 = vmatpush1.bf16.msra.mxu0 0
    %2179 = vmatprep.subr.bf16.mxu0 0
    %2180 = vmatpush1.bf16.msra.mxu0 %v2163
    %2181 = vmatprep.subr.bf16.mxu0 0
    %2182 = vmatpush2.bf16.msra.mxu0 0
    %2183 = vmatprep.subr.bf16.mxu0 0
    %2184 = vmatpush2.bf16.msra.mxu0 0
    %2185 = vmatprep.subr.bf16.mxu0 0
    %2186 = vmatpush2.bf16.msra.mxu0 0
    %2187 = vmatprep.subr.bf16.mxu0 0
    %2188 = vmatpush2.bf16.msra.mxu0 0
    %2189 = vmatprep.subr.bf16.mxu0 0
    %2190 = vmatpush2.bf16.msra.mxu0 0
    %2191 = vmatprep.subr.bf16.mxu0 0
    %2192 = vmatpush2.bf16.msra.mxu0 0
    %2193 = vmatprep.subr.bf16.mxu0 0
    %2194 = vmatpush2.bf16.msra.mxu0 0
    %2195 = vmatprep.subr.bf16.mxu0 0
    %2196 = vmatpush2.bf16.msra.mxu0 0
    %2197 = vmatprep.mubr.bf16.mxu0 0
    %2198 = vmatmul.mubr.bf16.gmra.mxu0 %v2160
    %v2199 = vpop.f32.mrf.mxu0
    %v2200 = vadd.f32 0.0, %v2199
    %v2201 = vpop.f32.mrf.mxu0
    %v2202 = vpop.f32.mrf.mxu0
    %v2203 = vpop.f32.mrf.mxu0
    %2204 = vdwg.mxu0
    %v2205 = vpack.c.bf16 %v2100, %v2100
    %v2206 = vpack.c.bf16 %v2104, %v2104
    %2207 = vrot.lane.b32.xlu0 %v1625, 88
    %v2208 = vpop.permute.xlu0 %2207
    %v2210 = vsel %vm216, %v2205, 0
    %v2213 = vsel %vm715, %v2208, 0
    %2215 = vmatprep.subr.bf16.mxu0 0
    %2216 = vmatpush1.bf16.msra.mxu0 0
    %2217 = vmatprep.subr.bf16.mxu0 0
    %2218 = vmatpush1.bf16.msra.mxu0 0
    %2219 = vmatprep.subr.bf16.mxu0 0
    %2220 = vmatpush1.bf16.msra.mxu0 0
    %2221 = vmatprep.subr.bf16.mxu0 0
    %2222 = vmatpush1.bf16.msra.mxu0 0
    %2223 = vmatprep.subr.bf16.mxu0 0
    %2224 = vmatpush1.bf16.msra.mxu0 0
    %2225 = vmatprep.subr.bf16.mxu0 0
    %2226 = vmatpush1.bf16.msra.mxu0 0
    %2227 = vmatprep.subr.bf16.mxu0 0
    %2228 = vmatpush1.bf16.msra.mxu0 0
    %2229 = vmatprep.subr.bf16.mxu0 0
    %2230 = vmatpush1.bf16.msra.mxu0 %v2213
    %2231 = vmatprep.subr.bf16.mxu0 0
    %2232 = vmatpush2.bf16.msra.mxu0 0
    %2233 = vmatprep.subr.bf16.mxu0 0
    %2234 = vmatpush2.bf16.msra.mxu0 0
    %2235 = vmatprep.subr.bf16.mxu0 0
    %2236 = vmatpush2.bf16.msra.mxu0 0
    %2237 = vmatprep.subr.bf16.mxu0 0
    %2238 = vmatpush2.bf16.msra.mxu0 0
    %2239 = vmatprep.subr.bf16.mxu0 0
    %2240 = vmatpush2.bf16.msra.mxu0 0
    %2241 = vmatprep.subr.bf16.mxu0 0
    %2242 = vmatpush2.bf16.msra.mxu0 0
    %2243 = vmatprep.subr.bf16.mxu0 0
    %2244 = vmatpush2.bf16.msra.mxu0 0
    %2245 = vmatprep.subr.bf16.mxu0 0
    %2246 = vmatpush2.bf16.msra.mxu0 0
    %2247 = vmatprep.mubr.bf16.mxu0 0
    %2248 = vmatmul.mubr.bf16.gmra.mxu0 %v2210
    %v2249 = vpop.f32.mrf.mxu0
    %v2250 = vadd.f32 0.0, %v2249
    %v2251 = vpop.f32.mrf.mxu0
    %v2252 = vpop.f32.mrf.mxu0
    %v2253 = vpop.f32.mrf.mxu0
    %2254 = vdwg.mxu0
    %2255 = vrot.lane.b32.xlu0 %v1626, 88
    %v2256 = vpop.permute.xlu0 %2255
    %v2258 = vsel %vm216, %v2206, 0
    %v2261 = vsel %vm715, %v2256, 0
    %2263 = vmatprep.subr.bf16.mxu0 0
    %2264 = vmatpush1.bf16.msra.mxu0 0
    %2265 = vmatprep.subr.bf16.mxu0 0
    %2266 = vmatpush1.bf16.msra.mxu0 0
    %2267 = vmatprep.subr.bf16.mxu0 0
    %2268 = vmatpush1.bf16.msra.mxu0 0
    %2269 = vmatprep.subr.bf16.mxu0 0
    %2270 = vmatpush1.bf16.msra.mxu0 0
    %2271 = vmatprep.subr.bf16.mxu0 0
    %2272 = vmatpush1.bf16.msra.mxu0 0
    %2273 = vmatprep.subr.bf16.mxu0 0
    %2274 = vmatpush1.bf16.msra.mxu0 0
    %2275 = vmatprep.subr.bf16.mxu0 0
    %2276 = vmatpush1.bf16.msra.mxu0 0
    %2277 = vmatprep.subr.bf16.mxu0 0
    %2278 = vmatpush1.bf16.msra.mxu0 %v2261
    %2279 = vmatprep.subr.bf16.mxu0 0
    %2280 = vmatpush2.bf16.msra.mxu0 0
    %2281 = vmatprep.subr.bf16.mxu0 0
    %2282 = vmatpush2.bf16.msra.mxu0 0
    %2283 = vmatprep.subr.bf16.mxu0 0
    %2284 = vmatpush2.bf16.msra.mxu0 0
    %2285 = vmatprep.subr.bf16.mxu0 0
    %2286 = vmatpush2.bf16.msra.mxu0 0
    %2287 = vmatprep.subr.bf16.mxu0 0
    %2288 = vmatpush2.bf16.msra.mxu0 0
    %2289 = vmatprep.subr.bf16.mxu0 0
    %2290 = vmatpush2.bf16.msra.mxu0 0
    %2291 = vmatprep.subr.bf16.mxu0 0
    %2292 = vmatpush2.bf16.msra.mxu0 0
    %2293 = vmatprep.subr.bf16.mxu0 0
    %2294 = vmatpush2.bf16.msra.mxu0 0
    %2295 = vmatprep.mubr.bf16.mxu0 0
    %2296 = vmatmul.mubr.bf16.gmra.mxu0 %v2258
    %v2297 = vpop.f32.mrf.mxu0
    %v2298 = vadd.f32 0.0, %v2297
    %v2299 = vpop.f32.mrf.mxu0
    %v2300 = vpop.f32.mrf.mxu0
    %v2301 = vpop.f32.mrf.mxu0
    %2302 = vdwg.mxu0
    %v2303 = vpack.c.bf16 %v2101, %v2101
    %v2304 = vpack.c.bf16 %v2105, %v2105
    %2305 = vrot.lane.b32.xlu0 %v1625, 80
    %v2306 = vpop.permute.xlu0 %2305
    %v2308 = vsel %vm216, %v2303, 0
    %v2311 = vsel %vm715, %v2306, 0
    %2313 = vmatprep.subr.bf16.mxu0 0
    %2314 = vmatpush1.bf16.msra.mxu0 0
    %2315 = vmatprep.subr.bf16.mxu0 0
    %2316 = vmatpush1.bf16.msra.mxu0 0
    %2317 = vmatprep.subr.bf16.mxu0 0
    %2318 = vmatpush1.bf16.msra.mxu0 0
    %2319 = vmatprep.subr.bf16.mxu0 0
    %2320 = vmatpush1.bf16.msra.mxu0 0
    %2321 = vmatprep.subr.bf16.mxu0 0
    %2322 = vmatpush1.bf16.msra.mxu0 0
    %2323 = vmatprep.subr.bf16.mxu0 0
    %2324 = vmatpush1.bf16.msra.mxu0 0
    %2325 = vmatprep.subr.bf16.mxu0 0
    %2326 = vmatpush1.bf16.msra.mxu0 0
    %2327 = vmatprep.subr.bf16.mxu0 0
    %2328 = vmatpush1.bf16.msra.mxu0 %v2311
    %2329 = vmatprep.subr.bf16.mxu0 0
    %2330 = vmatpush2.bf16.msra.mxu0 0
    %2331 = vmatprep.subr.bf16.mxu0 0
    %2332 = vmatpush2.bf16.msra.mxu0 0
    %2333 = vmatprep.subr.bf16.mxu0 0
    %2334 = vmatpush2.bf16.msra.mxu0 0
    %2335 = vmatprep.subr.bf16.mxu0 0
    %2336 = vmatpush2.bf16.msra.mxu0 0
    %2337 = vmatprep.subr.bf16.mxu0 0
    %2338 = vmatpush2.bf16.msra.mxu0 0
    %2339 = vmatprep.subr.bf16.mxu0 0
    %2340 = vmatpush2.bf16.msra.mxu0 0
    %2341 = vmatprep.subr.bf16.mxu0 0
    %2342 = vmatpush2.bf16.msra.mxu0 0
    %2343 = vmatprep.subr.bf16.mxu0 0
    %2344 = vmatpush2.bf16.msra.mxu0 0
    %2345 = vmatprep.mubr.bf16.mxu0 0
    %2346 = vmatmul.mubr.bf16.gmra.mxu0 %v2308
    %v2347 = vpop.f32.mrf.mxu0
    %v2348 = vadd.f32 0.0, %v2347
    %v2349 = vpop.f32.mrf.mxu0
    %v2350 = vpop.f32.mrf.mxu0
    %v2351 = vpop.f32.mrf.mxu0
    %2352 = vdwg.mxu0
    %2353 = vrot.lane.b32.xlu0 %v1626, 80
    %v2354 = vpop.permute.xlu0 %2353
    %v2356 = vsel %vm216, %v2304, 0
    %v2359 = vsel %vm715, %v2354, 0
    %2361 = vmatprep.subr.bf16.mxu0 0
    %2362 = vmatpush1.bf16.msra.mxu0 0
    %2363 = vmatprep.subr.bf16.mxu0 0
    %2364 = vmatpush1.bf16.msra.mxu0 0
    %2365 = vmatprep.subr.bf16.mxu0 0
    %2366 = vmatpush1.bf16.msra.mxu0 0
    %2367 = vmatprep.subr.bf16.mxu0 0
    %2368 = vmatpush1.bf16.msra.mxu0 0
    %2369 = vmatprep.subr.bf16.mxu0 0
    %2370 = vmatpush1.bf16.msra.mxu0 0
    %2371 = vmatprep.subr.bf16.mxu0 0
    %2372 = vmatpush1.bf16.msra.mxu0 0
    %2373 = vmatprep.subr.bf16.mxu0 0
    %2374 = vmatpush1.bf16.msra.mxu0 0
    %2375 = vmatprep.subr.bf16.mxu0 0
    %2376 = vmatpush1.bf16.msra.mxu0 %v2359
    %2377 = vmatprep.subr.bf16.mxu0 0
    %2378 = vmatpush2.bf16.msra.mxu0 0
    %2379 = vmatprep.subr.bf16.mxu0 0
    %2380 = vmatpush2.bf16.msra.mxu0 0
    %2381 = vmatprep.subr.bf16.mxu0 0
    %2382 = vmatpush2.bf16.msra.mxu0 0
    %2383 = vmatprep.subr.bf16.mxu0 0
    %2384 = vmatpush2.bf16.msra.mxu0 0
    %2385 = vmatprep.subr.bf16.mxu0 0
    %2386 = vmatpush2.bf16.msra.mxu0 0
    %2387 = vmatprep.subr.bf16.mxu0 0
    %2388 = vmatpush2.bf16.msra.mxu0 0
    %2389 = vmatprep.subr.bf16.mxu0 0
    %2390 = vmatpush2.bf16.msra.mxu0 0
    %2391 = vmatprep.subr.bf16.mxu0 0
    %2392 = vmatpush2.bf16.msra.mxu0 0
    %2393 = vmatprep.mubr.bf16.mxu0 0
    %2394 = vmatmul.mubr.bf16.gmra.mxu0 %v2356
    %v2395 = vpop.f32.mrf.mxu0
    %v2396 = vadd.f32 0.0, %v2395
    %v2397 = vpop.f32.mrf.mxu0
    %v2398 = vpop.f32.mrf.mxu0
    %v2399 = vpop.f32.mrf.mxu0
    %2400 = vdwg.mxu0
    %v2401 = vpack.c.bf16 %v2102, %v2102
    %v2402 = vpack.c.bf16 %v2106, %v2106
    %2403 = vrot.lane.b32.xlu0 %v1625, 72
    %v2404 = vpop.permute.xlu0 %2403
    %v2406 = vsel %vm216, %v2401, 0
    %v2409 = vsel %vm715, %v2404, 0
    %2411 = vmatprep.subr.bf16.mxu0 0
    %2412 = vmatpush1.bf16.msra.mxu0 0
    %2413 = vmatprep.subr.bf16.mxu0 0
    %2414 = vmatpush1.bf16.msra.mxu0 0
    %2415 = vmatprep.subr.bf16.mxu0 0
    %2416 = vmatpush1.bf16.msra.mxu0 0
    %2417 = vmatprep.subr.bf16.mxu0 0
    %2418 = vmatpush1.bf16.msra.mxu0 0
    %2419 = vmatprep.subr.bf16.mxu0 0
    %2420 = vmatpush1.bf16.msra.mxu0 0
    %2421 = vmatprep.subr.bf16.mxu0 0
    %2422 = vmatpush1.bf16.msra.mxu0 0
    %2423 = vmatprep.subr.bf16.mxu0 0
    %2424 = vmatpush1.bf16.msra.mxu0 0
    %2425 = vmatprep.subr.bf16.mxu0 0
    %2426 = vmatpush1.bf16.msra.mxu0 %v2409
    %2427 = vmatprep.subr.bf16.mxu0 0
    %2428 = vmatpush2.bf16.msra.mxu0 0
    %2429 = vmatprep.subr.bf16.mxu0 0
    %2430 = vmatpush2.bf16.msra.mxu0 0
    %2431 = vmatprep.subr.bf16.mxu0 0
    %2432 = vmatpush2.bf16.msra.mxu0 0
    %2433 = vmatprep.subr.bf16.mxu0 0
    %2434 = vmatpush2.bf16.msra.mxu0 0
    %2435 = vmatprep.subr.bf16.mxu0 0
    %2436 = vmatpush2.bf16.msra.mxu0 0
    %2437 = vmatprep.subr.bf16.mxu0 0
    %2438 = vmatpush2.bf16.msra.mxu0 0
    %2439 = vmatprep.subr.bf16.mxu0 0
    %2440 = vmatpush2.bf16.msra.mxu0 0
    %2441 = vmatprep.subr.bf16.mxu0 0
    %2442 = vmatpush2.bf16.msra.mxu0 0
    %2443 = vmatprep.mubr.bf16.mxu0 0
    %2444 = vmatmul.mubr.bf16.gmra.mxu0 %v2406
    %v2445 = vpop.f32.mrf.mxu0
    %v2446 = vadd.f32 0.0, %v2445
    %v2447 = vpop.f32.mrf.mxu0
    %v2448 = vpop.f32.mrf.mxu0
    %v2449 = vpop.f32.mrf.mxu0
    %2450 = vdwg.mxu0
    %2451 = vrot.lane.b32.xlu0 %v1626, 72
    %v2452 = vpop.permute.xlu0 %2451
    %v2454 = vsel %vm216, %v2402, 0
    %v2457 = vsel %vm715, %v2452, 0
    %2459 = vmatprep.subr.bf16.mxu0 0
    %2460 = vmatpush1.bf16.msra.mxu0 0
    %2461 = vmatprep.subr.bf16.mxu0 0
    %2462 = vmatpush1.bf16.msra.mxu0 0
    %2463 = vmatprep.subr.bf16.mxu0 0
    %2464 = vmatpush1.bf16.msra.mxu0 0
    %2465 = vmatprep.subr.bf16.mxu0 0
    %2466 = vmatpush1.bf16.msra.mxu0 0
    %2467 = vmatprep.subr.bf16.mxu0 0
    %2468 = vmatpush1.bf16.msra.mxu0 0
    %2469 = vmatprep.subr.bf16.mxu0 0
    %2470 = vmatpush1.bf16.msra.mxu0 0
    %2471 = vmatprep.subr.bf16.mxu0 0
    %2472 = vmatpush1.bf16.msra.mxu0 0
    %2473 = vmatprep.subr.bf16.mxu0 0
    %2474 = vmatpush1.bf16.msra.mxu0 %v2457
    %2475 = vmatprep.subr.bf16.mxu0 0
    %2476 = vmatpush2.bf16.msra.mxu0 0
    %2477 = vmatprep.subr.bf16.mxu0 0
    %2478 = vmatpush2.bf16.msra.mxu0 0
    %2479 = vmatprep.subr.bf16.mxu0 0
    %2480 = vmatpush2.bf16.msra.mxu0 0
    %2481 = vmatprep.subr.bf16.mxu0 0
    %2482 = vmatpush2.bf16.msra.mxu0 0
    %2483 = vmatprep.subr.bf16.mxu0 0
    %2484 = vmatpush2.bf16.msra.mxu0 0
    %2485 = vmatprep.subr.bf16.mxu0 0
    %2486 = vmatpush2.bf16.msra.mxu0 0
    %2487 = vmatprep.subr.bf16.mxu0 0
    %2488 = vmatpush2.bf16.msra.mxu0 0
    %2489 = vmatprep.subr.bf16.mxu0 0
    %2490 = vmatpush2.bf16.msra.mxu0 0
    %2491 = vmatprep.mubr.bf16.mxu0 0
    %2492 = vmatmul.mubr.bf16.gmra.mxu0 %v2454
    %v2493 = vpop.f32.mrf.mxu0
    %v2494 = vadd.f32 0.0, %v2493
    %v2495 = vpop.f32.mrf.mxu0
    %v2496 = vpop.f32.mrf.mxu0
    %v2497 = vpop.f32.mrf.mxu0
    %2498 = vdwg.mxu0
    %2501 = vrot.lane.b32.xlu0 %v2250, 8
    %v2502 = vpop.permute.xlu0 %2501
    %2503 = vrot.lane.b32.xlu0 %v2298, 8
    %v2504 = vpop.permute.xlu0 %2503
    %2509 = vrot.lane.b32.xlu0 %v2348, 16
    %v2510 = vpop.permute.xlu0 %2509
    %2511 = vrot.lane.b32.xlu0 %v2396, 16
    %v2512 = vpop.permute.xlu0 %2511
    %2517 = vrot.lane.b32.xlu0 %v2446, 24
    %v2518 = vpop.permute.xlu0 %2517
    %2519 = vrot.lane.b32.xlu0 %v2494, 24
    %v2520 = vpop.permute.xlu0 %2519
    %v2523 = vsel %vm216, %v2152, %v2502
    %v2524 = vsel %vm216, %v2200, %v2504
    %v2525 = vsel %vm1127, %v2523, %v2510
    %v2526 = vsel %vm1127, %v2524, %v2512
    %v2527 = vsel %vm1130, %v2525, %v2518
    %v2528 = vsel %vm1130, %v2526, %v2520
    %v2529 = vpack.c.bf16 %v2528, %v2527
    %v2530 = vld [vmem:[%s39] sm:$0xf]
    %v2531 = vld [vmem:[%s39 + $0x4] sm:$0xf]
    %v2532 = vld [vmem:[%s39 + $0x8] sm:$0xf]
    %v2533 = vld [vmem:[%s39 + $0xc] sm:$0xf]
    %v2534 = vld [vmem:[%s41] sm:$0x1]
    %v2536 = vlaneseq
    %v2537 = vshrl.u32 %v2536, 7
    %v2538 = vsub.s32 0, %v2537
    %v2539 = vrot.slane %v2534, %v2538
    %v2545 = vunpack.c.l.b16 %v2530
    %v2546 = vunpack.c.l.b16 %v2531
    %v2547 = vunpack.c.l.b16 %v2532
    %v2548 = vunpack.c.l.b16 %v2533
    %v2549 = vpack.c.b16 %v2546, %v2545
    %v2550 = vpack.c.b16 %v2548, %v2547
    %v2554 = vsel %vm152, %v2529, 0
    %2556 = vmatprep.subr.bf16.mxu0 0
    %2557 = vmatpush1.bf16.msra.mxu0 0
    %2558 = vmatprep.subr.bf16.mxu0 0
    %2559 = vmatpush1.bf16.msra.mxu0 0
    %2560 = vmatprep.subr.bf16.mxu0 0
    %2561 = vmatpush1.bf16.msra.mxu0 0
    %2562 = vmatprep.subr.bf16.mxu0 0
    %2563 = vmatpush1.bf16.msra.mxu0 0
    %2564 = vmatprep.subr.bf16.mxu0 0
    %2565 = vmatpush1.bf16.msra.mxu0 0
    %2566 = vmatprep.subr.bf16.mxu0 0
    %2567 = vmatpush1.bf16.msra.mxu0 0
    %2568 = vmatprep.subr.bf16.mxu0 0
    %2569 = vmatpush1.bf16.msra.mxu0 %v2550
    %2570 = vmatprep.subr.bf16.mxu0 0
    %2571 = vmatpush1.bf16.msra.mxu0 %v2549
    %2572 = vmatprep.subr.bf16.mxu0 0
    %2573 = vmatpush2.bf16.msra.mxu0 0
    %2574 = vmatprep.subr.bf16.mxu0 0
    %2575 = vmatpush2.bf16.msra.mxu0 0
    %2576 = vmatprep.subr.bf16.mxu0 0
    %2577 = vmatpush2.bf16.msra.mxu0 0
    %2578 = vmatprep.subr.bf16.mxu0 0
    %2579 = vmatpush2.bf16.msra.mxu0 0
    %2580 = vmatprep.subr.bf16.mxu0 0
    %2581 = vmatpush2.bf16.msra.mxu0 0
    %2582 = vmatprep.subr.bf16.mxu0 0
    %2583 = vmatpush2.bf16.msra.mxu0 0
    %2584 = vmatprep.subr.bf16.mxu0 0
    %2585 = vmatpush2.bf16.msra.mxu0 0
    %2586 = vmatprep.subr.bf16.mxu0 0
    %2587 = vmatpush2.bf16.msra.mxu0 0
    %2588 = vmatprep.mubr.bf16.mxu0 0
    %2589 = vmatmul.mubr.bf16.gmra.mxu0 %v2554
    %v2590 = vpop.f32.mrf.mxu0
    %v2591 = vadd.f32 %v2539, %v2590
    %v2592 = vpop.f32.mrf.mxu0
    %v2593 = vpop.f32.mrf.mxu0
    %v2594 = vadd.f32 %v2539, %v2593
    %v2595 = vpop.f32.mrf.mxu0
    %2596 = vdwg.mxu0
    %v2597 = vadd.f32 %v2591, %v1475
    %v2598 = vadd.f32 %v2594, %v1476
    %v2599 = vld [vmem:[%s43] sm:$0x1]
    %v2600 = vld [vmem:[%s45] sm:$0x1]
    %v2601 = vsel %vm152, %v2597, 0.0
    %2602 = vadd.xlane.f32.xlu0 %v2601
    %v2603 = vpop.xlane.xlu0 %2602
    %v2604 = vsel %vm152, %v2598, 0.0
    %2605 = vadd.xlane.f32.xlu0 %v2604
    %v2606 = vpop.xlane.xlu0 %2605
    %v2607 = vmul.f32 %v2603, %v1211
    %v2608 = vmul.f32 %v2606, %v1211
    %v2609 = vsub.f32 %v2597, %v2607
    %v2610 = vsub.f32 %v2598, %v2608
    %v2611 = vmul.f32 %v2609, %v2609
    %v2612 = vmul.f32 %v2610, %v2610
    %v2613 = vsel %vm152, %v2611, 0.0
    %2614 = vadd.xlane.f32.xlu0 %v2613
    %v2615 = vpop.xlane.xlu0 %2614
    %v2616 = vsel %vm152, %v2612, 0.0
    %2617 = vadd.xlane.f32.xlu0 %v2616
    %v2618 = vpop.xlane.xlu0 %2617
    %v2619 = vmul.f32 %v2615, %v1211
    %v2620 = vmul.f32 %v2618, %v1211
    %v2621 = vadd.f32 %v2619, 1e-05
    %v2622 = vadd.f32 %v2620, 1e-05
    %v2623 = vrsqrt.pop %v2621
    %v2624 = vrsqrt.pop %v2622
    %v2625 = vmul.f32 %v2609, %v2623
    %v2626 = vmul.f32 %v2610, %v2624
    %v2628 = vlaneseq
    %v2629 = vshrl.u32 %v2628, 7
    %v2630 = vsub.s32 0, %v2629
    %v2631 = vrot.slane %v2599, %v2630
    %v2633 = vmul.f32 %v2625, %v2631
    %v2634 = vmul.f32 %v2626, %v2631
    %v2636 = vlaneseq
    %v2637 = vshrl.u32 %v2636, 7
    %v2638 = vsub.s32 0, %v2637
    %v2639 = vrot.slane %v2600, %v2638
    %v2641 = vadd.f32 %v2633, %v2639
    %v2642 = vadd.f32 %v2634, %v2639
    %v2643 = vpack.c.bf16 %v2642, %v2641
    %v2644 = vld [vmem:[%s47] sm:$0xf]
    %v2645 = vld [vmem:[%s47 + $0x4] sm:$0xf]
    %v2646 = vld [vmem:[%s47 + $0x8] sm:$0xf]
    %v2647 = vld [vmem:[%s47 + $0xc] sm:$0xf]
    %v2648 = vld [vmem:[%s49] sm:$0x1]
    %v2650 = vlaneseq
    %v2651 = vshrl.u32 %v2650, 7
    %v2652 = vsub.s32 0, %v2651
    %v2653 = vrot.slane %v2648, %v2652
    %v2659 = vunpack.c.l.b16 %v2644
    %v2660 = vunpack.c.l.b16 %v2645
    %v2661 = vunpack.c.l.b16 %v2646
    %v2662 = vunpack.c.l.b16 %v2647
    %v2663 = vpack.c.b16 %v2660, %v2659
    %v2664 = vpack.c.b16 %v2662, %v2661
    %v2668 = vsel %vm152, %v2643, 0
    %2670 = vmatprep.subr.bf16.mxu0 0
    %2671 = vmatpush1.bf16.msra.mxu0 0
    %2672 = vmatprep.subr.bf16.mxu0 0
    %2673 = vmatpush1.bf16.msra.mxu0 0
    %2674 = vmatprep.subr.bf16.mxu0 0
    %2675 = vmatpush1.bf16.msra.mxu0 0
    %2676 = vmatprep.subr.bf16.mxu0 0
    %2677 = vmatpush1.bf16.msra.mxu0 0
    %2678 = vmatprep.subr.bf16.mxu0 0
    %2679 = vmatpush1.bf16.msra.mxu0 0
    %2680 = vmatprep.subr.bf16.mxu0 0
    %2681 = vmatpush1.bf16.msra.mxu0 0
    %2682 = vmatprep.subr.bf16.mxu0 0
    %2683 = vmatpush1.bf16.msra.mxu0 %v2664
    %2684 = vmatprep.subr.bf16.mxu0 0
    %2685 = vmatpush1.bf16.msra.mxu0 %v2663
    %2686 = vmatprep.subr.bf16.mxu0 0
    %2687 = vmatpush2.bf16.msra.mxu0 0
    %2688 = vmatprep.subr.bf16.mxu0 0
    %2689 = vmatpush2.bf16.msra.mxu0 0
    %2690 = vmatprep.subr.bf16.mxu0 0
    %2691 = vmatpush2.bf16.msra.mxu0 0
    %2692 = vmatprep.subr.bf16.mxu0 0
    %2693 = vmatpush2.bf16.msra.mxu0 0
    %2694 = vmatprep.subr.bf16.mxu0 0
    %2695 = vmatpush2.bf16.msra.mxu0 0
    %2696 = vmatprep.subr.bf16.mxu0 0
    %2697 = vmatpush2.bf16.msra.mxu0 0
    %2698 = vmatprep.subr.bf16.mxu0 0
    %2699 = vmatpush2.bf16.msra.mxu0 0
    %2700 = vmatprep.subr.bf16.mxu0 0
    %2701 = vmatpush2.bf16.msra.mxu0 0
    %2702 = vmatprep.mubr.bf16.mxu0 0
    %2703 = vmatmul.mubr.bf16.gmra.mxu0 %v2668
    %v2704 = vpop.f32.mrf.mxu0
    %v2705 = vadd.f32 %v2653, %v2704
    %v2706 = vpop.f32.mrf.mxu0
    %v2707 = vpop.f32.mrf.mxu0
    %v2708 = vadd.f32 %v2653, %v2707
    %v2709 = vpop.f32.mrf.mxu0
    %2710 = vdwg.mxu0
    %v2711 = vmax.f32 %v2705, 0.0
    %v2712 = vmax.f32 %v2708, 0.0
    %v2713 = vpack.c.bf16 %v2712, %v2711
    %v2714 = vld [vmem:[%s51] sm:$0xf]
    %v2715 = vld [vmem:[%s51 + $0x4] sm:$0xf]
    %v2716 = vld [vmem:[%s51 + $0x8] sm:$0xf]
    %v2717 = vld [vmem:[%s51 + $0xc] sm:$0xf]
    %v2718 = vld [vmem:[%s51 + $0x10] sm:$0xf]
    %v2719 = vld [vmem:[%s51 + $0x14] sm:$0xf]
    %v2720 = vld [vmem:[%s51 + $0x18] sm:$0xf]
    %v2721 = vld [vmem:[%s51 + $0x1c] sm:$0xf]
    %v2722 = vld [vmem:[%s51 + $0x20] sm:$0xf]
    %v2723 = vld [vmem:[%s51 + $0x24] sm:$0xf]
    %v2724 = vld [vmem:[%s51 + $0x28] sm:$0xf]
    %v2725 = vld [vmem:[%s51 + $0x2c] sm:$0xf]
    %v2726 = vld [vmem:[%s51 + $0x30] sm:$0xf]
    %v2727 = vld [vmem:[%s51 + $0x34] sm:$0xf]
    %v2728 = vld [vmem:[%s51 + $0x38] sm:$0xf]
    %v2729 = vld [vmem:[%s51 + $0x3c] sm:$0xf]
    %v2730 = vld [vmem:[%s53] sm:$0x1]
    %v2732 = vlaneseq
    %v2733 = vshrl.u32 %v2732, 7
    %v2734 = vsub.s32 0, %v2733
    %v2735 = vrot.slane %v2730, %v2734
    %v2753 = vunpack.c.l.b16 %v2714
    %v2754 = vunpack.c.l.b16 %v2715
    %v2755 = vunpack.c.l.b16 %v2716
    %v2756 = vunpack.c.l.b16 %v2717
    %v2757 = vunpack.c.l.b16 %v2718
    %v2758 = vunpack.c.l.b16 %v2719
    %v2759 = vunpack.c.l.b16 %v2720
    %v2760 = vunpack.c.l.b16 %v2721
    %v2761 = vunpack.c.l.b16 %v2722
    %v2762 = vunpack.c.l.b16 %v2723
    %v2763 = vunpack.c.l.b16 %v2724
    %v2764 = vunpack.c.l.b16 %v2725
    %v2765 = vunpack.c.l.b16 %v2726
    %v2766 = vunpack.c.l.b16 %v2727
    %v2767 = vunpack.c.l.b16 %v2728
    %v2768 = vunpack.c.l.b16 %v2729
    %v2769 = vpack.c.b16 %v2754, %v2753
    %v2770 = vpack.c.b16 %v2756, %v2755
    %v2771 = vpack.c.b16 %v2758, %v2757
    %v2772 = vpack.c.b16 %v2760, %v2759
    %v2773 = vpack.c.b16 %v2762, %v2761
    %v2774 = vpack.c.b16 %v2764, %v2763
    %v2775 = vpack.c.b16 %v2766, %v2765
    %v2776 = vpack.c.b16 %v2768, %v2767
    %2785 = vmatprep.subr.bf16.mxu0 0
    %2786 = vmatpush1.bf16.msra.mxu0 %v2776
    %2787 = vmatprep.subr.bf16.mxu0 0
    %2788 = vmatpush1.bf16.msra.mxu0 %v2775
    %2789 = vmatprep.subr.bf16.mxu0 0
    %2790 = vmatpush1.bf16.msra.mxu0 %v2774
    %2791 = vmatprep.subr.bf16.mxu0 0
    %2792 = vmatpush1.bf16.msra.mxu0 %v2773
    %2793 = vmatprep.subr.bf16.mxu0 0
    %2794 = vmatpush1.bf16.msra.mxu0 %v2772
    %2795 = vmatprep.subr.bf16.mxu0 0
    %2796 = vmatpush1.bf16.msra.mxu0 %v2771
    %2797 = vmatprep.subr.bf16.mxu0 0
    %2798 = vmatpush1.bf16.msra.mxu0 %v2770
    %2799 = vmatprep.subr.bf16.mxu0 0
    %2800 = vmatpush1.bf16.msra.mxu0 %v2769
    %2801 = vmatprep.subr.bf16.mxu0 0
    %2802 = vmatpush2.bf16.msra.mxu0 0
    %2803 = vmatprep.subr.bf16.mxu0 0
    %2804 = vmatpush2.bf16.msra.mxu0 0
    %2805 = vmatprep.subr.bf16.mxu0 0
    %2806 = vmatpush2.bf16.msra.mxu0 0
    %2807 = vmatprep.subr.bf16.mxu0 0
    %2808 = vmatpush2.bf16.msra.mxu0 0
    %2809 = vmatprep.subr.bf16.mxu0 0
    %2810 = vmatpush2.bf16.msra.mxu0 0
    %2811 = vmatprep.subr.bf16.mxu0 0
    %2812 = vmatpush2.bf16.msra.mxu0 0
    %2813 = vmatprep.subr.bf16.mxu0 0
    %2814 = vmatpush2.bf16.msra.mxu0 0
    %2815 = vmatprep.subr.bf16.mxu0 0
    %2816 = vmatpush2.bf16.msra.mxu0 0
    %2817 = vmatprep.mubr.bf16.mxu0 0
    %2818 = vmatmul.mubr.bf16.gmra.mxu0 %v2713
    %v2819 = vpop.f32.mrf.mxu0
    %v2820 = vadd.f32 %v2735, %v2819
    %v2821 = vpop.f32.mrf.mxu0
    %v2822 = vpop.f32.mrf.mxu0
    %v2823 = vadd.f32 %v2735, %v2822
    %v2824 = vpop.f32.mrf.mxu0
    %2825 = vdwg.mxu0
    %v2826 = vadd.f32 %v2820, %v2641
    %v2827 = vadd.f32 %v2823, %v2642
    %v2828 = vld [vmem:[%s55] sm:$0x1]
    %v2829 = vld [vmem:[%s57] sm:$0x1]
    %v2830 = vsel %vm152, %v2826, 0.0
    %2831 = vadd.xlane.f32.xlu0 %v2830
    %v2832 = vpop.xlane.xlu0 %2831
    %v2833 = vsel %vm152, %v2827, 0.0
    %2834 = vadd.xlane.f32.xlu0 %v2833
    %v2835 = vpop.xlane.xlu0 %2834
    %v2836 = vmul.f32 %v2832, %v1211
    %v2837 = vmul.f32 %v2835, %v1211
    %v2838 = vsub.f32 %v2826, %v2836
    %v2839 = vsub.f32 %v2827, %v2837
    %v2840 = vmul.f32 %v2838, %v2838
    %v2841 = vmul.f32 %v2839, %v2839
    %v2842 = vsel %vm152, %v2840, 0.0
    %2843 = vadd.xlane.f32.xlu0 %v2842
    %v2844 = vpop.xlane.xlu0 %2843
    %v2845 = vsel %vm152, %v2841, 0.0
    %2846 = vadd.xlane.f32.xlu0 %v2845
    %v2847 = vpop.xlane.xlu0 %2846
    %v2848 = vmul.f32 %v2844, %v1211
    %v2849 = vmul.f32 %v2847, %v1211
    %v2850 = vadd.f32 %v2848, 1e-05
    %v2851 = vadd.f32 %v2849, 1e-05
    %v2852 = vrsqrt.pop %v2850
    %v2853 = vrsqrt.pop %v2851
    %v2854 = vmul.f32 %v2838, %v2852
    %v2855 = vmul.f32 %v2839, %v2853
    %v2857 = vlaneseq
    %v2858 = vshrl.u32 %v2857, 7
    %v2859 = vsub.s32 0, %v2858
    %v2860 = vrot.slane %v2828, %v2859
    %v2862 = vmul.f32 %v2854, %v2860
    %v2863 = vmul.f32 %v2855, %v2860
    %v2865 = vlaneseq
    %v2866 = vshrl.u32 %v2865, 7
    %v2867 = vsub.s32 0, %v2866
    %v2868 = vrot.slane %v2829, %v2867
    %v2870 = vadd.f32 %v2862, %v2868
    %v2871 = vadd.f32 %v2863, %v2868
    %2872 = vst.msk [vmem:[#allocation2] sm:$0xff] %vm152, %v2870
    %2873 = vst.msk [vmem:[#allocation2 + $0x8] sm:$0xff] %vm152, %v2871
    // Predicated region
    $region118: #{tpu_custom_call.1} parent=1 // pred_check
      _
    $region119: #{tpu_custom_call.1} parent=1 // pred_check_branch
      %2875 = sbr.rel (0) target = $region121
    $region120: #{tpu_custom_call.1} parent=1 // pred_region
      %s2877 = ssub.s32 256, 256
      %2878 = vsyncadd [#allocation3], %s2877
      %s2879 = sshll.u32 [#allocation2], 4
      %s2880 = int_to_ptr.vmem [resolvable:$true] %s2879
      %2885 = dma.vmem_to_hbm [thread:$0]  %s2880, 256, %s59, [#allocation3], 128, 128, 8
    $region121: #{tpu_custom_call.1} parent=1 // pred_fallthru
      _
    // Predicated region
    $region122: #{tpu_custom_call.1} parent=1 // pred_check
      _
    $region123: #{tpu_custom_call.1} parent=1 // pred_check_branch
      %2887 = sbr.rel (0) target = $region125
    $region124: #{tpu_custom_call.1} parent=1 // pred_region
      %2888 = dma.done [#allocation3], 256
    $region125: #{tpu_custom_call.1} parent=1 // pred_fallthru
      _
    %2889 = vsyncpa [#allocation3], 1

</llo_original>
